<compile_context>
chip_gen: v6e
topology: v6e:2x2x1
jax: 0.10.0
libtpu: 0.0.40
codegen_flags: <defaults>
</compile_context>

<pallas_src>
import functools

import jax
import jax.numpy as jnp
from jax import lax
from jax.experimental import pallas as pl
from jax.experimental.pallas import tpu as pltpu


def _state_rnn_kernel(x_ref, w_ref, b_ref, o_ref, w_scr, *, valid_h, unroll):
    """x_ref: (Bp, Hp) padded initial state; w_ref: (H, H) raw torch weight
    (out, in); b_ref: (1, Hp) padded bias; o_ref: (pred_len, Bp, Hp) time-major
    output; w_scr: (Hp, Hp) VMEM scratch holding the zero-padded weight."""
    pred_len = o_ref.shape[0]

    # Zero-pad the raw weight once into an aligned VMEM scratch (zeros keep the
    # affine recurrence exact on the valid block), then hoist the load.
    w_scr[...] = jnp.zeros_like(w_scr)
    w_scr[:valid_h, :valid_h] = w_ref[...]
    w = w_scr[...]                                      # hoisted weight load

    b = jnp.broadcast_to(b_ref[...], x_ref.shape)       # hoisted bias broadcast

    def body(t, h):
        o_ref[t] = h                                    # lane-dense (Bp, Hp) store
        # h <- h @ W.T + b : contract on the weight's input dim (torch Linear),
        # serial dependence, exact-f32 MXU path so error does not compound.
        return lax.dot_general(
            h, w, (((1,), (1,)), ((), ())),
            preferred_element_type=jnp.float32,
            precision=lax.Precision.HIGHEST,
        ) + b

    lax.fori_loop(0, pred_len, body, x_ref[...], unroll=unroll)


def _round_up(n, m):
    return ((n + m - 1) // m) * m


@functools.partial(jax.jit, static_argnames=("pred_len",))
def state_only_rnn(x, weight, bias, pred_len):
    """x: (B, H) f32; weight: (H, H) = torch Linear.weight (out, in); bias: (H,)."""
    B, H = x.shape
    Bp = max(8, _round_up(B, 8))          # sublane-aligned batch
    Hp = _round_up(H, 128)                # lane-aligned hidden

    # Only the tiny x / bias pads remain in the wrapper (B*H and H elements);
    # the H^2-sized weight pad happens in-kernel and the transpose is avoided.
    x_p = jnp.zeros((Bp, Hp), jnp.float32).at[:B, :H].set(x)
    b_p = jnp.zeros((1, Hp), jnp.float32).at[0, :H].set(bias)

    # Full unroll only for short chains; partial unroll keeps LLO visibility
    # without blowing up code size / vreg live ranges for long pred_len.
    unroll = True if pred_len <= 32 else 8

    flops = 2 * pred_len * Bp * Hp * Hp
    bytes_accessed = 4 * (Bp * Hp + H * H + Hp + pred_len * Bp * Hp)

    out_tmajor = pl.pallas_call(
        functools.partial(_state_rnn_kernel, valid_h=H, unroll=unroll),
        out_shape=jax.ShapeDtypeStruct((pred_len, Bp, Hp), jnp.float32),
        in_specs=[
            pl.BlockSpec(memory_space=pltpu.MemorySpace.VMEM),   # x (padded)
            pl.BlockSpec(memory_space=pltpu.MemorySpace.VMEM),   # weight (raw)
            pl.BlockSpec(memory_space=pltpu.MemorySpace.VMEM),   # bias (padded)
        ],
        out_specs=pl.BlockSpec(memory_space=pltpu.MemorySpace.VMEM),
        scratch_shapes=[pltpu.VMEM((Hp, Hp), jnp.float32)],
        compiler_params=pltpu.CompilerParams(vmem_limit_bytes=32 * 1024 * 1024),
        cost_estimate=pl.CostEstimate(
            flops=flops, transcendentals=0, bytes_accessed=bytes_accessed),
    )(x_p, weight, b_p)

    # (pred_len, Bp, Hp) -> (B, H, pred_len) to match the PyTorch layout.
    return jnp.transpose(out_tmajor[:, :B, :H], (1, 2, 0))


def _reference(x, weight, bias, pred_len):
    # Pure-JAX reference mirroring the PyTorch loop (same f32-exact precision).
    outs = []
    h = x
    for _ in range(pred_len):
        outs.append(h)
        h = jnp.dot(h, weight.T, precision=lax.Precision.HIGHEST) + bias
    return jnp.stack(outs, axis=-1)        # (B, H, pred_len)


if __name__ == "__main__":
    B, H_dim, pred_len = 2, 32, 8

    key = jax.random.PRNGKey(0)
    kx, kw, kb = jax.random.split(key, 3)
    x = jax.random.normal(kx, (B, H_dim), dtype=jnp.float32)
    # Deterministic synthetic Linear parameters (same shapes as torch.nn.Linear(H, H)).
    bound = 1.0 / (H_dim ** 0.5)
    weight = jax.random.uniform(kw, (H_dim, H_dim), jnp.float32, -bound, bound)
    bias = jax.random.uniform(kb, (H_dim,), jnp.float32, -bound, bound)

    out = state_only_rnn(x, weight, bias, pred_len)
    out = jax.block_until_ready(out)

    ref = _reference(x, weight, bias, pred_len)
    assert out.shape == (B, H_dim, pred_len)
    assert jnp.allclose(out, ref, atol=1e-5, rtol=1e-5)

    print("KERNEL_OK")
</pallas_src>

<mosaic_0001>
module attributes {stable_mosaic.version = 11 : i64} {
  func.func @_state_rnn_kernel(%arg0: memref<8x128xf32, #tpu.memory_space<vmem>>, %arg1: memref<32x32xf32, #tpu.memory_space<vmem>>, %arg2: memref<1x128xf32, #tpu.memory_space<vmem>>, %arg3: memref<8x8x128xf32, #tpu.memory_space<vmem>>, %arg4: memref<128x128xf32, #tpu.memory_space<vmem>>) attributes {dimension_semantics = [], scalar_prefetch = 0 : i64, scratch_operands = 1 : i64, tpu.core_type = #tpu.core_type<tc>} {
    %cst = arith.constant 0.000000e+00 : f32
    %0 = vector.broadcast %cst : f32 to vector<128x128xf32>
    %c0 = arith.constant 0 : index
    %c0_0 = arith.constant 0 : index
    %1 = vector.load %arg4[%c0, %c0_0] : memref<128x128xf32, #tpu.memory_space<vmem>>, vector<128x128xf32>
    tpu.vector_store %arg4[%c0, %c0_0], %0 {strides = array<i32>} : memref<128x128xf32, #tpu.memory_space<vmem>>, vector<128x128xf32>,
    %c0_1 = arith.constant 0 : index
    %c0_2 = arith.constant 0 : index
    %2 = vector.load %arg1[%c0_1, %c0_2] : memref<32x32xf32, #tpu.memory_space<vmem>>, vector<32x32xf32>
    %c0_3 = arith.constant 0 : index
    %c0_4 = arith.constant 0 : index
    %3 = vector.load %arg4[%c0_3, %c0_4] : memref<128x128xf32, #tpu.memory_space<vmem>>, vector<32x32xf32>
    tpu.vector_store %arg4[%c0_3, %c0_4], %2 {strides = array<i32>} : memref<128x128xf32, #tpu.memory_space<vmem>>, vector<32x32xf32>,
    %c0_5 = arith.constant 0 : index
    %c0_6 = arith.constant 0 : index
    %4 = vector.load %arg4[%c0_5, %c0_6] : memref<128x128xf32, #tpu.memory_space<vmem>>, vector<128x128xf32>
    %c0_7 = arith.constant 0 : index
    %c0_8 = arith.constant 0 : index
    %5 = vector.load %arg2[%c0_7, %c0_8] : memref<1x128xf32, #tpu.memory_space<vmem>>, vector<1x128xf32>
    %6 = vector.shape_cast %5 : vector<1x128xf32> to vector<1x128xf32>
    %7 = vector.broadcast %6 : vector<1x128xf32> to vector<8x128xf32>
    %c0_9 = arith.constant 0 : index
    %c0_10 = arith.constant 0 : index
    %8 = vector.load %arg0[%c0_9, %c0_10] : memref<8x128xf32, #tpu.memory_space<vmem>>, vector<8x128xf32>
    %c0_i32 = arith.constant 0 : i32
    %9 = arith.index_cast %c0_i32 : i32 to index
    %c0_11 = arith.constant 0 : index
    %c0_12 = arith.constant 0 : index
    %10 = vector.load %arg3[%9, %c0_11, %c0_12] : memref<8x8x128xf32, #tpu.memory_space<vmem>>, vector<1x8x128xf32>
    %11 = vector.shape_cast %10 : vector<1x8x128xf32> to vector<8x128xf32>
    %12 = vector.shape_cast %8 : vector<8x128xf32> to vector<1x8x128xf32>
    tpu.vector_store %arg3[%9, %c0_11, %c0_12], %12 {strides = array<i32>} : memref<8x8x128xf32, #tpu.memory_space<vmem>>, vector<1x8x128xf32>,
    %cst_13 = arith.constant dense<0.000000e+00> : vector<8x128xf32>
    %13 = tpu.matmul %8, %4, %cst_13 {dimension_numbers = #tpu.dot_dimension_numbers<[1], [1], [0], [0], [0, 0, 1, 0], [], []>, precision = #tpu.contract_precision<fp32>} : vector<8x128xf32>, vector<128x128xf32>, vector<8x128xf32> -> vector<8x128xf32>
    %14 = arith.addf %13, %7 : vector<8x128xf32>
    %c1_i32 = arith.constant 1 : i32
    %15 = arith.index_cast %c1_i32 : i32 to index
    %c0_14 = arith.constant 0 : index
    %c0_15 = arith.constant 0 : index
    %16 = vector.load %arg3[%15, %c0_14, %c0_15] : memref<8x8x128xf32, #tpu.memory_space<vmem>>, vector<1x8x128xf32>
    %17 = vector.shape_cast %16 : vector<1x8x128xf32> to vector<8x128xf32>
    %18 = vector.shape_cast %14 : vector<8x128xf32> to vector<1x8x128xf32>
    tpu.vector_store %arg3[%15, %c0_14, %c0_15], %18 {strides = array<i32>} : memref<8x8x128xf32, #tpu.memory_space<vmem>>, vector<1x8x128xf32>,
    %cst_16 = arith.constant dense<0.000000e+00> : vector<8x128xf32>
    %19 = tpu.matmul %14, %4, %cst_16 {dimension_numbers = #tpu.dot_dimension_numbers<[1], [1], [0], [0], [0, 0, 1, 0], [], []>, precision = #tpu.contract_precision<fp32>} : vector<8x128xf32>, vector<128x128xf32>, vector<8x128xf32> -> vector<8x128xf32>
    %20 = arith.addf %19, %7 : vector<8x128xf32>
    %c2_i32 = arith.constant 2 : i32
    %21 = arith.index_cast %c2_i32 : i32 to index
    %c0_17 = arith.constant 0 : index
    %c0_18 = arith.constant 0 : index
    %22 = vector.load %arg3[%21, %c0_17, %c0_18] : memref<8x8x128xf32, #tpu.memory_space<vmem>>, vector<1x8x128xf32>
    %23 = vector.shape_cast %22 : vector<1x8x128xf32> to vector<8x128xf32>
    %24 = vector.shape_cast %20 : vector<8x128xf32> to vector<1x8x128xf32>
    tpu.vector_store %arg3[%21, %c0_17, %c0_18], %24 {strides = array<i32>} : memref<8x8x128xf32, #tpu.memory_space<vmem>>, vector<1x8x128xf32>,
    %cst_19 = arith.constant dense<0.000000e+00> : vector<8x128xf32>
    %25 = tpu.matmul %20, %4, %cst_19 {dimension_numbers = #tpu.dot_dimension_numbers<[1], [1], [0], [0], [0, 0, 1, 0], [], []>, precision = #tpu.contract_precision<fp32>} : vector<8x128xf32>, vector<128x128xf32>, vector<8x128xf32> -> vector<8x128xf32>
    %26 = arith.addf %25, %7 : vector<8x128xf32>
    %c3_i32 = arith.constant 3 : i32
    %27 = arith.index_cast %c3_i32 : i32 to index
    %c0_20 = arith.constant 0 : index
    %c0_21 = arith.constant 0 : index
    %28 = vector.load %arg3[%27, %c0_20, %c0_21] : memref<8x8x128xf32, #tpu.memory_space<vmem>>, vector<1x8x128xf32>
    %29 = vector.shape_cast %28 : vector<1x8x128xf32> to vector<8x128xf32>
    %30 = vector.shape_cast %26 : vector<8x128xf32> to vector<1x8x128xf32>
    tpu.vector_store %arg3[%27, %c0_20, %c0_21], %30 {strides = array<i32>} : memref<8x8x128xf32, #tpu.memory_space<vmem>>, vector<1x8x128xf32>,
    %cst_22 = arith.constant dense<0.000000e+00> : vector<8x128xf32>
    %31 = tpu.matmul %26, %4, %cst_22 {dimension_numbers = #tpu.dot_dimension_numbers<[1], [1], [0], [0], [0, 0, 1, 0], [], []>, precision = #tpu.contract_precision<fp32>} : vector<8x128xf32>, vector<128x128xf32>, vector<8x128xf32> -> vector<8x128xf32>
    %32 = arith.addf %31, %7 : vector<8x128xf32>
    %c4_i32 = arith.constant 4 : i32
    %33 = arith.index_cast %c4_i32 : i32 to index
    %c0_23 = arith.constant 0 : index
    %c0_24 = arith.constant 0 : index
    %34 = vector.load %arg3[%33, %c0_23, %c0_24] : memref<8x8x128xf32, #tpu.memory_space<vmem>>, vector<1x8x128xf32>
    %35 = vector.shape_cast %34 : vector<1x8x128xf32> to vector<8x128xf32>
    %36 = vector.shape_cast %32 : vector<8x128xf32> to vector<1x8x128xf32>
    tpu.vector_store %arg3[%33, %c0_23, %c0_24], %36 {strides = array<i32>} : memref<8x8x128xf32, #tpu.memory_space<vmem>>, vector<1x8x128xf32>,
    %cst_25 = arith.constant dense<0.000000e+00> : vector<8x128xf32>
    %37 = tpu.matmul %32, %4, %cst_25 {dimension_numbers = #tpu.dot_dimension_numbers<[1], [1], [0], [0], [0, 0, 1, 0], [], []>, precision = #tpu.contract_precision<fp32>} : vector<8x128xf32>, vector<128x128xf32>, vector<8x128xf32> -> vector<8x128xf32>
    %38 = arith.addf %37, %7 : vector<8x128xf32>
    %c5_i32 = arith.constant 5 : i32
    %39 = arith.index_cast %c5_i32 : i32 to index
    %c0_26 = arith.constant 0 : index
    %c0_27 = arith.constant 0 : index
    %40 = vector.load %arg3[%39, %c0_26, %c0_27] : memref<8x8x128xf32, #tpu.memory_space<vmem>>, vector<1x8x128xf32>
    %41 = vector.shape_cast %40 : vector<1x8x128xf32> to vector<8x128xf32>
    %42 = vector.shape_cast %38 : vector<8x128xf32> to vector<1x8x128xf32>
    tpu.vector_store %arg3[%39, %c0_26, %c0_27], %42 {strides = array<i32>} : memref<8x8x128xf32, #tpu.memory_space<vmem>>, vector<1x8x128xf32>,
    %cst_28 = arith.constant dense<0.000000e+00> : vector<8x128xf32>
    %43 = tpu.matmul %38, %4, %cst_28 {dimension_numbers = #tpu.dot_dimension_numbers<[1], [1], [0], [0], [0, 0, 1, 0], [], []>, precision = #tpu.contract_precision<fp32>} : vector<8x128xf32>, vector<128x128xf32>, vector<8x128xf32> -> vector<8x128xf32>
    %44 = arith.addf %43, %7 : vector<8x128xf32>
    %c6_i32 = arith.constant 6 : i32
    %45 = arith.index_cast %c6_i32 : i32 to index
    %c0_29 = arith.constant 0 : index
    %c0_30 = arith.constant 0 : index
    %46 = vector.load %arg3[%45, %c0_29, %c0_30] : memref<8x8x128xf32, #tpu.memory_space<vmem>>, vector<1x8x128xf32>
    %47 = vector.shape_cast %46 : vector<1x8x128xf32> to vector<8x128xf32>
    %48 = vector.shape_cast %44 : vector<8x128xf32> to vector<1x8x128xf32>
    tpu.vector_store %arg3[%45, %c0_29, %c0_30], %48 {strides = array<i32>} : memref<8x8x128xf32, #tpu.memory_space<vmem>>, vector<1x8x128xf32>,
    %cst_31 = arith.constant dense<0.000000e+00> : vector<8x128xf32>
    %49 = tpu.matmul %44, %4, %cst_31 {dimension_numbers = #tpu.dot_dimension_numbers<[1], [1], [0], [0], [0, 0, 1, 0], [], []>, precision = #tpu.contract_precision<fp32>} : vector<8x128xf32>, vector<128x128xf32>, vector<8x128xf32> -> vector<8x128xf32>
    %50 = arith.addf %49, %7 : vector<8x128xf32>
    %c7_i32 = arith.constant 7 : i32
    %51 = arith.index_cast %c7_i32 : i32 to index
    %c0_32 = arith.constant 0 : index
    %c0_33 = arith.constant 0 : index
    %52 = vector.load %arg3[%51, %c0_32, %c0_33] : memref<8x8x128xf32, #tpu.memory_space<vmem>>, vector<1x8x128xf32>
    %53 = vector.shape_cast %52 : vector<1x8x128xf32> to vector<8x128xf32>
    %54 = vector.shape_cast %50 : vector<8x128xf32> to vector<1x8x128xf32>
    tpu.vector_store %arg3[%51, %c0_32, %c0_33], %54 {strides = array<i32>} : memref<8x8x128xf32, #tpu.memory_space<vmem>>, vector<1x8x128xf32>,
    %cst_34 = arith.constant dense<0.000000e+00> : vector<8x128xf32>
    %55 = tpu.matmul %50, %4, %cst_34 {dimension_numbers = #tpu.dot_dimension_numbers<[1], [1], [0], [0], [0, 0, 1, 0], [], []>, precision = #tpu.contract_precision<fp32>} : vector<8x128xf32>, vector<128x128xf32>, vector<8x128xf32> -> vector<8x128xf32>
    %56 = arith.addf %55, %7 : vector<8x128xf32>
    %c8_i32 = arith.constant 8 : i32
    return
  }
}

</mosaic_0001>

<llo_original>
// kernel: state_only_rnn.1
$region0: #{state_only_rnn.1}
  #allocation0 [shape = 'u32[]', space=smem, size = 0x4, offset = 0x4, fixed_abs, tag = 'smem constant byte address 0x4 - core index']
  #allocation1 [shape = 'u32[144,128]{1,0:T(1,128)}', space=vmem, size = 0x12000, scoped, tag = 'internal scratch']
  #allocation2 [shape = 'f32[128,128]{1,0:T(8,128)}', space=vmem, size = 0x10000, scoped, tag = 'scratch operand']
  %s0 = inlined_call_operand.vmem [shape: f32[8,128], index: 0, kind: input, shape index: {}]
  %s1 = inlined_call_operand.hbm [shape: f32[32,32], index: 1, kind: input, shape index: {}]
  %s2 = inlined_call_operand.vmem [shape: f32[1,128], index: 2, kind: input, shape index: {}]
  %s3 = inlined_call_operand.vmem [shape: f32[8,8,128], index: 3, kind: output, shape index: {}]
  %s4 = sld [smem:[#allocation0]]
  $region26: #{state_only_rnn.1} parent=0
    _
  %s6 = ssub.s32 1, %s4
  %s7 = scalar_select 0, %s6, %s4
  $region1: #{state_only_rnn.1} parent=0
    #allocation3 [shape = 'u8[16384]{0}', space=vmem, size = 0x4000, scoped, tag = 'input window, operand 1, single buffered']
    #allocation4 [shape = 's32[1]{0}', space=sflag, size = 0x4, scoped, tag = 'scoped memory for state_only_rnn.1']
    %8 = vsyncpa [#allocation4], 0
    // Predicated region
    $region2: #{state_only_rnn.1} parent=1 // pred_check
      _
    $region3: #{state_only_rnn.1} parent=1 // pred_check_branch
      %10 = sbr.rel (0) target = $region5
    $region4: #{state_only_rnn.1} parent=1 // pred_region
      _
    $region5: #{state_only_rnn.1} parent=1 // pred_fallthru
      _
    // Predicated region
    $region6: #{state_only_rnn.1} parent=1 // pred_check
      _
    $region7: #{state_only_rnn.1} parent=1 // pred_check_branch
      %12 = sbr.rel (0) target = $region9
    $region8: #{state_only_rnn.1} parent=1 // pred_region
      %s14 = ssub.s32 512, 512
      %15 = vsyncadd [#allocation4], %s14
      %s16 = sshll.u32 [#allocation3], 4
      %s17 = int_to_ptr.vmem [resolvable:$true] %s16
      %22 = dma.hbm_to_vmem [thread:$0]  %s1, 512, %s17, [#allocation4], 128, 128, 8
    $region9: #{state_only_rnn.1} parent=1 // pred_fallthru
      _
    // Predicated region
    $region10: #{state_only_rnn.1} parent=1 // pred_check
      _
    $region11: #{state_only_rnn.1} parent=1 // pred_check_branch
      %24 = sbr.rel (0) target = $region13
    $region12: #{state_only_rnn.1} parent=1 // pred_region
      _
    $region13: #{state_only_rnn.1} parent=1 // pred_fallthru
      _
    // Predicated region
    $region14: #{state_only_rnn.1} parent=1 // pred_check
      _
    $region15: #{state_only_rnn.1} parent=1 // pred_check_branch
      %26 = sbr.rel (0) target = $region17
    $region16: #{state_only_rnn.1} parent=1 // pred_region
      %27 = dma.done [#allocation4], 512
    $region17: #{state_only_rnn.1} parent=1 // pred_fallthru
      _
    %28 = vst [vmem:[#allocation2] sm:$0xff] 0.0
    %29 = vst [vmem:[#allocation2 + $0x8] sm:$0xff] 0.0
    %30 = vst [vmem:[#allocation2 + $0x10] sm:$0xff] 0.0
    %31 = vst [vmem:[#allocation2 + $0x18] sm:$0xff] 0.0
    %32 = vst [vmem:[#allocation2 + $0x20] sm:$0xff] 0.0
    %33 = vst [vmem:[#allocation2 + $0x28] sm:$0xff] 0.0
    %34 = vst [vmem:[#allocation2 + $0x30] sm:$0xff] 0.0
    %35 = vst [vmem:[#allocation2 + $0x38] sm:$0xff] 0.0
    %36 = vst [vmem:[#allocation2 + $0x40] sm:$0xff] 0.0
    %37 = vst [vmem:[#allocation2 + $0x48] sm:$0xff] 0.0
    %38 = vst [vmem:[#allocation2 + $0x50] sm:$0xff] 0.0
    %39 = vst [vmem:[#allocation2 + $0x58] sm:$0xff] 0.0
    %40 = vst [vmem:[#allocation2 + $0x60] sm:$0xff] 0.0
    %41 = vst [vmem:[#allocation2 + $0x68] sm:$0xff] 0.0
    %42 = vst [vmem:[#allocation2 + $0x70] sm:$0xff] 0.0
    %43 = vst [vmem:[#allocation2 + $0x78] sm:$0xff] 0.0
    %v44 = vld [vmem:[#allocation3] sm:$0xff]
    %v45 = vld [vmem:[#allocation3 + $0x8] sm:$0xff]
    %v46 = vld [vmem:[#allocation3 + $0x10] sm:$0xff]
    %v47 = vld [vmem:[#allocation3 + $0x18] sm:$0xff]
    %vm48 = vcmask 261120
    %49 = vst.msk [vmem:[#allocation2] sm:$0xff] %vm48, %v44
    %50 = vst.msk [vmem:[#allocation2 + $0x8] sm:$0xff] %vm48, %v45
    %51 = vst.msk [vmem:[#allocation2 + $0x10] sm:$0xff] %vm48, %v46
    %52 = vst.msk [vmem:[#allocation2 + $0x18] sm:$0xff] %vm48, %v47
    %v53 = vld [vmem:[#allocation2] sm:$0xff]
    %v54 = vld [vmem:[#allocation2 + $0x8] sm:$0xff]
    %v55 = vld [vmem:[#allocation2 + $0x10] sm:$0xff]
    %v56 = vld [vmem:[#allocation2 + $0x18] sm:$0xff]
    %v57 = vld [vmem:[#allocation2 + $0x20] sm:$0xff]
    %v58 = vld [vmem:[#allocation2 + $0x28] sm:$0xff]
    %v59 = vld [vmem:[#allocation2 + $0x30] sm:$0xff]
    %v60 = vld [vmem:[#allocation2 + $0x38] sm:$0xff]
    %v61 = vld [vmem:[#allocation2 + $0x40] sm:$0xff]
    %v62 = vld [vmem:[#allocation2 + $0x48] sm:$0xff]
    %v63 = vld [vmem:[#allocation2 + $0x50] sm:$0xff]
    %v64 = vld [vmem:[#allocation2 + $0x58] sm:$0xff]
    %v65 = vld [vmem:[#allocation2 + $0x60] sm:$0xff]
    %v66 = vld [vmem:[#allocation2 + $0x68] sm:$0xff]
    %v67 = vld [vmem:[#allocation2 + $0x70] sm:$0xff]
    %v68 = vld [vmem:[#allocation2 + $0x78] sm:$0xff]
    %v69 = vld [vmem:[%s2] sm:$0x1]
    %v71 = vlaneseq
    %v72 = vshrl.u32 %v71, 7
    %v73 = vsub.s32 0, %v72
    %v74 = vrot.slane %v69, %v73
    %v76 = vld [vmem:[%s0] sm:$0xff]
    %77 = vst [vmem:[%s3] sm:$0xff] %v76
    %78 = vmatprep.subr.mxu0 0.0
    %v79 = vand.u32 %v68, 4294901760
    %80 = vmatpush1.xpose.msra.mxu0 %v79
    %81 = vmatprep.subr.mxu0 0.0
    %v82 = vand.u32 %v67, 4294901760
    %83 = vmatpush1.xpose.msra.mxu0 %v82
    %84 = vmatprep.subr.mxu0 0.0
    %v85 = vand.u32 %v66, 4294901760
    %86 = vmatpush1.xpose.msra.mxu0 %v85
    %87 = vmatprep.subr.mxu0 0.0
    %v88 = vand.u32 %v65, 4294901760
    %89 = vmatpush1.xpose.msra.mxu0 %v88
    %90 = vmatprep.subr.mxu0 0.0
    %v91 = vand.u32 %v64, 4294901760
    %92 = vmatpush1.xpose.msra.mxu0 %v91
    %93 = vmatprep.subr.mxu0 0.0
    %v94 = vand.u32 %v63, 4294901760
    %95 = vmatpush1.xpose.msra.mxu0 %v94
    %96 = vmatprep.subr.mxu0 0.0
    %v97 = vand.u32 %v62, 4294901760
    %98 = vmatpush1.xpose.msra.mxu0 %v97
    %99 = vmatprep.subr.mxu0 0.0
    %v100 = vand.u32 %v61, 4294901760
    %101 = vmatpush1.xpose.msra.mxu0 %v100
    %102 = vmatprep.subr.mxu0 0.0
    %v103 = vand.u32 %v60, 4294901760
    %104 = vmatpush1.xpose.msra.mxu0 %v103
    %105 = vmatprep.subr.mxu0 0.0
    %v106 = vand.u32 %v59, 4294901760
    %107 = vmatpush1.xpose.msra.mxu0 %v106
    %108 = vmatprep.subr.mxu0 0.0
    %v109 = vand.u32 %v58, 4294901760
    %110 = vmatpush1.xpose.msra.mxu0 %v109
    %111 = vmatprep.subr.mxu0 0.0
    %v112 = vand.u32 %v57, 4294901760
    %113 = vmatpush1.xpose.msra.mxu0 %v112
    %114 = vmatprep.subr.mxu0 0.0
    %v115 = vand.u32 %v56, 4294901760
    %116 = vmatpush1.xpose.msra.mxu0 %v115
    %117 = vmatprep.subr.mxu0 0.0
    %v118 = vand.u32 %v55, 4294901760
    %119 = vmatpush1.xpose.msra.mxu0 %v118
    %120 = vmatprep.subr.mxu0 0.0
    %v121 = vand.u32 %v54, 4294901760
    %122 = vmatpush1.xpose.msra.mxu0 %v121
    %123 = vmatprep.subr.mxu0 0.0
    %v124 = vand.u32 %v53, 4294901760
    %125 = vmatpush1.xpose.msra.mxu0 %v124
    %126 = vmatprep.subr.mxu0 0.0
    %127 = vmatpush2.xpose.msra.mxu0 0.0
    %128 = vmatprep.subr.mxu0 0.0
    %129 = vmatpush2.xpose.msra.mxu0 0.0
    %130 = vmatprep.subr.mxu0 0.0
    %131 = vmatpush2.xpose.msra.mxu0 0.0
    %132 = vmatprep.subr.mxu0 0.0
    %133 = vmatpush2.xpose.msra.mxu0 0.0
    %134 = vmatprep.subr.mxu0 0.0
    %135 = vmatpush2.xpose.msra.mxu0 0.0
    %136 = vmatprep.subr.mxu0 0.0
    %137 = vmatpush2.xpose.msra.mxu0 0.0
    %138 = vmatprep.subr.mxu0 0.0
    %139 = vmatpush2.xpose.msra.mxu0 0.0
    %140 = vmatprep.subr.mxu0 0.0
    %141 = vmatpush2.xpose.msra.mxu0 0.0
    %142 = vmatprep.subr.mxu0 0.0
    %143 = vmatpush2.xpose.msra.mxu0 0.0
    %144 = vmatprep.subr.mxu0 0.0
    %145 = vmatpush2.xpose.msra.mxu0 0.0
    %146 = vmatprep.subr.mxu0 0.0
    %147 = vmatpush2.xpose.msra.mxu0 0.0
    %148 = vmatprep.subr.mxu0 0.0
    %149 = vmatpush2.xpose.msra.mxu0 0.0
    %150 = vmatprep.subr.mxu0 0.0
    %151 = vmatpush2.xpose.msra.mxu0 0.0
    %152 = vmatprep.subr.mxu0 0.0
    %153 = vmatpush2.xpose.msra.mxu0 0.0
    %154 = vmatprep.subr.mxu0 0.0
    %155 = vmatpush2.xpose.msra.mxu0 0.0
    %156 = vmatprep.subr.mxu0 0.0
    %157 = vmatpush2.xpose.msra.mxu0 0.0
    %158 = vmatprep.mubr.f32.mxu0 0.0
    %v159 = vand.u32 %v76, 4294901760
    %v160 = vsub.f32 %v76, %v159
    %v161 = vand.u32 %v160, 4294901760
    %v162 = vsub.f32 %v160, %v161
    %v163 = vand.u32 %v162, 4294901760
    %164 = vmatmul.mubr.f32.gmra.mxu0 %v163
    %v165 = vpop.f32.mrf.mxu0
    %v166 = vadd.f32 %v74, %v165
    %v167 = vpop.f32.mrf.mxu0
    %168 = vdwg.mxu0
    %169 = vmatprep.subr.mxu0 0.0
    %v170 = vand.u32 %v68, 4294901760
    %v171 = vsub.f32 %v68, %v170
    %v172 = vand.u32 %v171, 4294901760
    %v173 = vsub.f32 %v171, %v172
    %v174 = vand.u32 %v173, 4294901760
    %175 = vmatpush1.xpose.msra.mxu0 %v174
    %176 = vmatprep.subr.mxu0 0.0
    %v177 = vand.u32 %v67, 4294901760
    %v178 = vsub.f32 %v67, %v177
    %v179 = vand.u32 %v178, 4294901760
    %v180 = vsub.f32 %v178, %v179
    %v181 = vand.u32 %v180, 4294901760
    %182 = vmatpush1.xpose.msra.mxu0 %v181
    %183 = vmatprep.subr.mxu0 0.0
    %v184 = vand.u32 %v66, 4294901760
    %v185 = vsub.f32 %v66, %v184
    %v186 = vand.u32 %v185, 4294901760
    %v187 = vsub.f32 %v185, %v186
    %v188 = vand.u32 %v187, 4294901760
    %189 = vmatpush1.xpose.msra.mxu0 %v188
    %190 = vmatprep.subr.mxu0 0.0
    %v191 = vand.u32 %v65, 4294901760
    %v192 = vsub.f32 %v65, %v191
    %v193 = vand.u32 %v192, 4294901760
    %v194 = vsub.f32 %v192, %v193
    %v195 = vand.u32 %v194, 4294901760
    %196 = vmatpush1.xpose.msra.mxu0 %v195
    %197 = vmatprep.subr.mxu0 0.0
    %v198 = vand.u32 %v64, 4294901760
    %v199 = vsub.f32 %v64, %v198
    %v200 = vand.u32 %v199, 4294901760
    %v201 = vsub.f32 %v199, %v200
    %v202 = vand.u32 %v201, 4294901760
    %203 = vmatpush1.xpose.msra.mxu0 %v202
    %204 = vmatprep.subr.mxu0 0.0
    %v205 = vand.u32 %v63, 4294901760
    %v206 = vsub.f32 %v63, %v205
    %v207 = vand.u32 %v206, 4294901760
    %v208 = vsub.f32 %v206, %v207
    %v209 = vand.u32 %v208, 4294901760
    %210 = vmatpush1.xpose.msra.mxu0 %v209
    %211 = vmatprep.subr.mxu0 0.0
    %v212 = vand.u32 %v62, 4294901760
    %v213 = vsub.f32 %v62, %v212
    %v214 = vand.u32 %v213, 4294901760
    %v215 = vsub.f32 %v213, %v214
    %v216 = vand.u32 %v215, 4294901760
    %217 = vmatpush1.xpose.msra.mxu0 %v216
    %218 = vmatprep.subr.mxu0 0.0
    %v219 = vand.u32 %v61, 4294901760
    %v220 = vsub.f32 %v61, %v219
    %v221 = vand.u32 %v220, 4294901760
    %v222 = vsub.f32 %v220, %v221
    %v223 = vand.u32 %v222, 4294901760
    %224 = vmatpush1.xpose.msra.mxu0 %v223
    %225 = vmatprep.subr.mxu0 0.0
    %v226 = vand.u32 %v60, 4294901760
    %v227 = vsub.f32 %v60, %v226
    %v228 = vand.u32 %v227, 4294901760
    %v229 = vsub.f32 %v227, %v228
    %v230 = vand.u32 %v229, 4294901760
    %231 = vmatpush1.xpose.msra.mxu0 %v230
    %232 = vmatprep.subr.mxu0 0.0
    %v233 = vand.u32 %v59, 4294901760
    %v234 = vsub.f32 %v59, %v233
    %v235 = vand.u32 %v234, 4294901760
    %v236 = vsub.f32 %v234, %v235
    %v237 = vand.u32 %v236, 4294901760
    %238 = vmatpush1.xpose.msra.mxu0 %v237
    %239 = vmatprep.subr.mxu0 0.0
    %v240 = vand.u32 %v58, 4294901760
    %v241 = vsub.f32 %v58, %v240
    %v242 = vand.u32 %v241, 4294901760
    %v243 = vsub.f32 %v241, %v242
    %v244 = vand.u32 %v243, 4294901760
    %245 = vmatpush1.xpose.msra.mxu0 %v244
    %246 = vmatprep.subr.mxu0 0.0
    %v247 = vand.u32 %v57, 4294901760
    %v248 = vsub.f32 %v57, %v247
    %v249 = vand.u32 %v248, 4294901760
    %v250 = vsub.f32 %v248, %v249
    %v251 = vand.u32 %v250, 4294901760
    %252 = vmatpush1.xpose.msra.mxu0 %v251
    %253 = vmatprep.subr.mxu0 0.0
    %v254 = vand.u32 %v56, 4294901760
    %v255 = vsub.f32 %v56, %v254
    %v256 = vand.u32 %v255, 4294901760
    %v257 = vsub.f32 %v255, %v256
    %v258 = vand.u32 %v257, 4294901760
    %259 = vmatpush1.xpose.msra.mxu0 %v258
    %260 = vmatprep.subr.mxu0 0.0
    %v261 = vand.u32 %v55, 4294901760
    %v262 = vsub.f32 %v55, %v261
    %v263 = vand.u32 %v262, 4294901760
    %v264 = vsub.f32 %v262, %v263
    %v265 = vand.u32 %v264, 4294901760
    %266 = vmatpush1.xpose.msra.mxu0 %v265
    %267 = vmatprep.subr.mxu0 0.0
    %v268 = vand.u32 %v54, 4294901760
    %v269 = vsub.f32 %v54, %v268
    %v270 = vand.u32 %v269, 4294901760
    %v271 = vsub.f32 %v269, %v270
    %v272 = vand.u32 %v271, 4294901760
    %273 = vmatpush1.xpose.msra.mxu0 %v272
    %274 = vmatprep.subr.mxu0 0.0
    %v275 = vand.u32 %v53, 4294901760
    %v276 = vsub.f32 %v53, %v275
    %v277 = vand.u32 %v276, 4294901760
    %v278 = vsub.f32 %v276, %v277
    %v279 = vand.u32 %v278, 4294901760
    %280 = vmatpush1.xpose.msra.mxu0 %v279
    %281 = vmatprep.subr.mxu0 0.0
    %282 = vmatpush2.xpose.msra.mxu0 0.0
    %283 = vmatprep.subr.mxu0 0.0
    %284 = vmatpush2.xpose.msra.mxu0 0.0
    %285 = vmatprep.subr.mxu0 0.0
    %286 = vmatpush2.xpose.msra.mxu0 0.0
    %287 = vmatprep.subr.mxu0 0.0
    %288 = vmatpush2.xpose.msra.mxu0 0.0
    %289 = vmatprep.subr.mxu0 0.0
    %290 = vmatpush2.xpose.msra.mxu0 0.0
    %291 = vmatprep.subr.mxu0 0.0
    %292 = vmatpush2.xpose.msra.mxu0 0.0
    %293 = vmatprep.subr.mxu0 0.0
    %294 = vmatpush2.xpose.msra.mxu0 0.0
    %295 = vmatprep.subr.mxu0 0.0
    %296 = vmatpush2.xpose.msra.mxu0 0.0
    %297 = vmatprep.subr.mxu0 0.0
    %298 = vmatpush2.xpose.msra.mxu0 0.0
    %299 = vmatprep.subr.mxu0 0.0
    %300 = vmatpush2.xpose.msra.mxu0 0.0
    %301 = vmatprep.subr.mxu0 0.0
    %302 = vmatpush2.xpose.msra.mxu0 0.0
    %303 = vmatprep.subr.mxu0 0.0
    %304 = vmatpush2.xpose.msra.mxu0 0.0
    %305 = vmatprep.subr.mxu0 0.0
    %306 = vmatpush2.xpose.msra.mxu0 0.0
    %307 = vmatprep.subr.mxu0 0.0
    %308 = vmatpush2.xpose.msra.mxu0 0.0
    %309 = vmatprep.subr.mxu0 0.0
    %310 = vmatpush2.xpose.msra.mxu0 0.0
    %311 = vmatprep.subr.mxu0 0.0
    %312 = vmatpush2.xpose.msra.mxu0 0.0
    %313 = vmatprep.mubr.f32.mxu0 0.0
    %v314 = vand.u32 %v76, 4294901760
    %315 = vmatmul.mubr.f32.gmra.mxu0 %v314
    %v316 = vpop.f32.mrf.mxu0
    %v317 = vadd.f32 %v166, %v316
    %v318 = vpop.f32.mrf.mxu0
    %319 = vdwg.mxu0
    %320 = vmatprep.subr.mxu0 0.0
    %v321 = vand.u32 %v68, 4294901760
    %v322 = vsub.f32 %v68, %v321
    %323 = vmatpush1.xpose.msra.mxu0 %v322
    %324 = vmatprep.subr.mxu0 0.0
    %v325 = vand.u32 %v67, 4294901760
    %v326 = vsub.f32 %v67, %v325
    %327 = vmatpush1.xpose.msra.mxu0 %v326
    %328 = vmatprep.subr.mxu0 0.0
    %v329 = vand.u32 %v66, 4294901760
    %v330 = vsub.f32 %v66, %v329
    %331 = vmatpush1.xpose.msra.mxu0 %v330
    %332 = vmatprep.subr.mxu0 0.0
    %v333 = vand.u32 %v65, 4294901760
    %v334 = vsub.f32 %v65, %v333
    %335 = vmatpush1.xpose.msra.mxu0 %v334
    %336 = vmatprep.subr.mxu0 0.0
    %v337 = vand.u32 %v64, 4294901760
    %v338 = vsub.f32 %v64, %v337
    %339 = vmatpush1.xpose.msra.mxu0 %v338
    %340 = vmatprep.subr.mxu0 0.0
    %v341 = vand.u32 %v63, 4294901760
    %v342 = vsub.f32 %v63, %v341
    %343 = vmatpush1.xpose.msra.mxu0 %v342
    %344 = vmatprep.subr.mxu0 0.0
    %v345 = vand.u32 %v62, 4294901760
    %v346 = vsub.f32 %v62, %v345
    %347 = vmatpush1.xpose.msra.mxu0 %v346
    %348 = vmatprep.subr.mxu0 0.0
    %v349 = vand.u32 %v61, 4294901760
    %v350 = vsub.f32 %v61, %v349
    %351 = vmatpush1.xpose.msra.mxu0 %v350
    %352 = vmatprep.subr.mxu0 0.0
    %v353 = vand.u32 %v60, 4294901760
    %v354 = vsub.f32 %v60, %v353
    %355 = vmatpush1.xpose.msra.mxu0 %v354
    %356 = vmatprep.subr.mxu0 0.0
    %v357 = vand.u32 %v59, 4294901760
    %v358 = vsub.f32 %v59, %v357
    %359 = vmatpush1.xpose.msra.mxu0 %v358
    %360 = vmatprep.subr.mxu0 0.0
    %v361 = vand.u32 %v58, 4294901760
    %v362 = vsub.f32 %v58, %v361
    %363 = vmatpush1.xpose.msra.mxu0 %v362
    %364 = vmatprep.subr.mxu0 0.0
    %v365 = vand.u32 %v57, 4294901760
    %v366 = vsub.f32 %v57, %v365
    %367 = vmatpush1.xpose.msra.mxu0 %v366
    %368 = vmatprep.subr.mxu0 0.0
    %v369 = vand.u32 %v56, 4294901760
    %v370 = vsub.f32 %v56, %v369
    %371 = vmatpush1.xpose.msra.mxu0 %v370
    %372 = vmatprep.subr.mxu0 0.0
    %v373 = vand.u32 %v55, 4294901760
    %v374 = vsub.f32 %v55, %v373
    %375 = vmatpush1.xpose.msra.mxu0 %v374
    %376 = vmatprep.subr.mxu0 0.0
    %v377 = vand.u32 %v54, 4294901760
    %v378 = vsub.f32 %v54, %v377
    %379 = vmatpush1.xpose.msra.mxu0 %v378
    %380 = vmatprep.subr.mxu0 0.0
    %v381 = vand.u32 %v53, 4294901760
    %v382 = vsub.f32 %v53, %v381
    %383 = vmatpush1.xpose.msra.mxu0 %v382
    %384 = vmatprep.subr.mxu0 0.0
    %385 = vmatpush2.xpose.msra.mxu0 0.0
    %386 = vmatprep.subr.mxu0 0.0
    %387 = vmatpush2.xpose.msra.mxu0 0.0
    %388 = vmatprep.subr.mxu0 0.0
    %389 = vmatpush2.xpose.msra.mxu0 0.0
    %390 = vmatprep.subr.mxu0 0.0
    %391 = vmatpush2.xpose.msra.mxu0 0.0
    %392 = vmatprep.subr.mxu0 0.0
    %393 = vmatpush2.xpose.msra.mxu0 0.0
    %394 = vmatprep.subr.mxu0 0.0
    %395 = vmatpush2.xpose.msra.mxu0 0.0
    %396 = vmatprep.subr.mxu0 0.0
    %397 = vmatpush2.xpose.msra.mxu0 0.0
    %398 = vmatprep.subr.mxu0 0.0
    %399 = vmatpush2.xpose.msra.mxu0 0.0
    %400 = vmatprep.subr.mxu0 0.0
    %401 = vmatpush2.xpose.msra.mxu0 0.0
    %402 = vmatprep.subr.mxu0 0.0
    %403 = vmatpush2.xpose.msra.mxu0 0.0
    %404 = vmatprep.subr.mxu0 0.0
    %405 = vmatpush2.xpose.msra.mxu0 0.0
    %406 = vmatprep.subr.mxu0 0.0
    %407 = vmatpush2.xpose.msra.mxu0 0.0
    %408 = vmatprep.subr.mxu0 0.0
    %409 = vmatpush2.xpose.msra.mxu0 0.0
    %410 = vmatprep.subr.mxu0 0.0
    %411 = vmatpush2.xpose.msra.mxu0 0.0
    %412 = vmatprep.subr.mxu0 0.0
    %413 = vmatpush2.xpose.msra.mxu0 0.0
    %414 = vmatprep.subr.mxu0 0.0
    %415 = vmatpush2.xpose.msra.mxu0 0.0
    %416 = vmatprep.mubr.f32.mxu0 0.0
    %v417 = vand.u32 %v76, 4294901760
    %v418 = vsub.f32 %v76, %v417
    %419 = vmatmul.mubr.f32.gmra.mxu0 %v418
    %v420 = vpop.f32.mrf.mxu0
    %v421 = vadd.f32 %v317, %v420
    %v422 = vpop.f32.mrf.mxu0
    %423 = vdwg.mxu0
    %424 = vmatprep.subr.mxu0 0.0
    %v425 = vand.u32 %v68, 4294901760
    %426 = vmatpush1.xpose.msra.mxu0 %v425
    %427 = vmatprep.subr.mxu0 0.0
    %v428 = vand.u32 %v67, 4294901760
    %429 = vmatpush1.xpose.msra.mxu0 %v428
    %430 = vmatprep.subr.mxu0 0.0
    %v431 = vand.u32 %v66, 4294901760
    %432 = vmatpush1.xpose.msra.mxu0 %v431
    %433 = vmatprep.subr.mxu0 0.0
    %v434 = vand.u32 %v65, 4294901760
    %435 = vmatpush1.xpose.msra.mxu0 %v434
    %436 = vmatprep.subr.mxu0 0.0
    %v437 = vand.u32 %v64, 4294901760
    %438 = vmatpush1.xpose.msra.mxu0 %v437
    %439 = vmatprep.subr.mxu0 0.0
    %v440 = vand.u32 %v63, 4294901760
    %441 = vmatpush1.xpose.msra.mxu0 %v440
    %442 = vmatprep.subr.mxu0 0.0
    %v443 = vand.u32 %v62, 4294901760
    %444 = vmatpush1.xpose.msra.mxu0 %v443
    %445 = vmatprep.subr.mxu0 0.0
    %v446 = vand.u32 %v61, 4294901760
    %447 = vmatpush1.xpose.msra.mxu0 %v446
    %448 = vmatprep.subr.mxu0 0.0
    %v449 = vand.u32 %v60, 4294901760
    %450 = vmatpush1.xpose.msra.mxu0 %v449
    %451 = vmatprep.subr.mxu0 0.0
    %v452 = vand.u32 %v59, 4294901760
    %453 = vmatpush1.xpose.msra.mxu0 %v452
    %454 = vmatprep.subr.mxu0 0.0
    %v455 = vand.u32 %v58, 4294901760
    %456 = vmatpush1.xpose.msra.mxu0 %v455
    %457 = vmatprep.subr.mxu0 0.0
    %v458 = vand.u32 %v57, 4294901760
    %459 = vmatpush1.xpose.msra.mxu0 %v458
    %460 = vmatprep.subr.mxu0 0.0
    %v461 = vand.u32 %v56, 4294901760
    %462 = vmatpush1.xpose.msra.mxu0 %v461
    %463 = vmatprep.subr.mxu0 0.0
    %v464 = vand.u32 %v55, 4294901760
    %465 = vmatpush1.xpose.msra.mxu0 %v464
    %466 = vmatprep.subr.mxu0 0.0
    %v467 = vand.u32 %v54, 4294901760
    %468 = vmatpush1.xpose.msra.mxu0 %v467
    %469 = vmatprep.subr.mxu0 0.0
    %v470 = vand.u32 %v53, 4294901760
    %471 = vmatpush1.xpose.msra.mxu0 %v470
    %472 = vmatprep.subr.mxu0 0.0
    %473 = vmatpush2.xpose.msra.mxu0 0.0
    %474 = vmatprep.subr.mxu0 0.0
    %475 = vmatpush2.xpose.msra.mxu0 0.0
    %476 = vmatprep.subr.mxu0 0.0
    %477 = vmatpush2.xpose.msra.mxu0 0.0
    %478 = vmatprep.subr.mxu0 0.0
    %479 = vmatpush2.xpose.msra.mxu0 0.0
    %480 = vmatprep.subr.mxu0 0.0
    %481 = vmatpush2.xpose.msra.mxu0 0.0
    %482 = vmatprep.subr.mxu0 0.0
    %483 = vmatpush2.xpose.msra.mxu0 0.0
    %484 = vmatprep.subr.mxu0 0.0
    %485 = vmatpush2.xpose.msra.mxu0 0.0
    %486 = vmatprep.subr.mxu0 0.0
    %487 = vmatpush2.xpose.msra.mxu0 0.0
    %488 = vmatprep.subr.mxu0 0.0
    %489 = vmatpush2.xpose.msra.mxu0 0.0
    %490 = vmatprep.subr.mxu0 0.0
    %491 = vmatpush2.xpose.msra.mxu0 0.0
    %492 = vmatprep.subr.mxu0 0.0
    %493 = vmatpush2.xpose.msra.mxu0 0.0
    %494 = vmatprep.subr.mxu0 0.0
    %495 = vmatpush2.xpose.msra.mxu0 0.0
    %496 = vmatprep.subr.mxu0 0.0
    %497 = vmatpush2.xpose.msra.mxu0 0.0
    %498 = vmatprep.subr.mxu0 0.0
    %499 = vmatpush2.xpose.msra.mxu0 0.0
    %500 = vmatprep.subr.mxu0 0.0
    %501 = vmatpush2.xpose.msra.mxu0 0.0
    %502 = vmatprep.subr.mxu0 0.0
    %503 = vmatpush2.xpose.msra.mxu0 0.0
    %504 = vmatprep.mubr.f32.mxu0 0.0
    %v505 = vand.u32 %v76, 4294901760
    %v506 = vsub.f32 %v76, %v505
    %v507 = vand.u32 %v506, 4294901760
    %508 = vmatmul.mubr.f32.gmra.mxu0 %v507
    %v509 = vpop.f32.mrf.mxu0
    %v510 = vadd.f32 %v421, %v509
    %v511 = vpop.f32.mrf.mxu0
    %512 = vdwg.mxu0
    %513 = vmatprep.subr.mxu0 0.0
    %v514 = vand.u32 %v68, 4294901760
    %v515 = vsub.f32 %v68, %v514
    %v516 = vand.u32 %v515, 4294901760
    %517 = vmatpush1.xpose.msra.mxu0 %v516
    %518 = vmatprep.subr.mxu0 0.0
    %v519 = vand.u32 %v67, 4294901760
    %v520 = vsub.f32 %v67, %v519
    %v521 = vand.u32 %v520, 4294901760
    %522 = vmatpush1.xpose.msra.mxu0 %v521
    %523 = vmatprep.subr.mxu0 0.0
    %v524 = vand.u32 %v66, 4294901760
    %v525 = vsub.f32 %v66, %v524
    %v526 = vand.u32 %v525, 4294901760
    %527 = vmatpush1.xpose.msra.mxu0 %v526
    %528 = vmatprep.subr.mxu0 0.0
    %v529 = vand.u32 %v65, 4294901760
    %v530 = vsub.f32 %v65, %v529
    %v531 = vand.u32 %v530, 4294901760
    %532 = vmatpush1.xpose.msra.mxu0 %v531
    %533 = vmatprep.subr.mxu0 0.0
    %v534 = vand.u32 %v64, 4294901760
    %v535 = vsub.f32 %v64, %v534
    %v536 = vand.u32 %v535, 4294901760
    %537 = vmatpush1.xpose.msra.mxu0 %v536
    %538 = vmatprep.subr.mxu0 0.0
    %v539 = vand.u32 %v63, 4294901760
    %v540 = vsub.f32 %v63, %v539
    %v541 = vand.u32 %v540, 4294901760
    %542 = vmatpush1.xpose.msra.mxu0 %v541
    %543 = vmatprep.subr.mxu0 0.0
    %v544 = vand.u32 %v62, 4294901760
    %v545 = vsub.f32 %v62, %v544
    %v546 = vand.u32 %v545, 4294901760
    %547 = vmatpush1.xpose.msra.mxu0 %v546
    %548 = vmatprep.subr.mxu0 0.0
    %v549 = vand.u32 %v61, 4294901760
    %v550 = vsub.f32 %v61, %v549
    %v551 = vand.u32 %v550, 4294901760
    %552 = vmatpush1.xpose.msra.mxu0 %v551
    %553 = vmatprep.subr.mxu0 0.0
    %v554 = vand.u32 %v60, 4294901760
    %v555 = vsub.f32 %v60, %v554
    %v556 = vand.u32 %v555, 4294901760
    %557 = vmatpush1.xpose.msra.mxu0 %v556
    %558 = vmatprep.subr.mxu0 0.0
    %v559 = vand.u32 %v59, 4294901760
    %v560 = vsub.f32 %v59, %v559
    %v561 = vand.u32 %v560, 4294901760
    %562 = vmatpush1.xpose.msra.mxu0 %v561
    %563 = vmatprep.subr.mxu0 0.0
    %v564 = vand.u32 %v58, 4294901760
    %v565 = vsub.f32 %v58, %v564
    %v566 = vand.u32 %v565, 4294901760
    %567 = vmatpush1.xpose.msra.mxu0 %v566
    %568 = vmatprep.subr.mxu0 0.0
    %v569 = vand.u32 %v57, 4294901760
    %v570 = vsub.f32 %v57, %v569
    %v571 = vand.u32 %v570, 4294901760
    %572 = vmatpush1.xpose.msra.mxu0 %v571
    %573 = vmatprep.subr.mxu0 0.0
    %v574 = vand.u32 %v56, 4294901760
    %v575 = vsub.f32 %v56, %v574
    %v576 = vand.u32 %v575, 4294901760
    %577 = vmatpush1.xpose.msra.mxu0 %v576
    %578 = vmatprep.subr.mxu0 0.0
    %v579 = vand.u32 %v55, 4294901760
    %v580 = vsub.f32 %v55, %v579
    %v581 = vand.u32 %v580, 4294901760
    %582 = vmatpush1.xpose.msra.mxu0 %v581
    %583 = vmatprep.subr.mxu0 0.0
    %v584 = vand.u32 %v54, 4294901760
    %v585 = vsub.f32 %v54, %v584
    %v586 = vand.u32 %v585, 4294901760
    %587 = vmatpush1.xpose.msra.mxu0 %v586
    %588 = vmatprep.subr.mxu0 0.0
    %v589 = vand.u32 %v53, 4294901760
    %v590 = vsub.f32 %v53, %v589
    %v591 = vand.u32 %v590, 4294901760
    %592 = vmatpush1.xpose.msra.mxu0 %v591
    %593 = vmatprep.subr.mxu0 0.0
    %594 = vmatpush2.xpose.msra.mxu0 0.0
    %595 = vmatprep.subr.mxu0 0.0
    %596 = vmatpush2.xpose.msra.mxu0 0.0
    %597 = vmatprep.subr.mxu0 0.0
    %598 = vmatpush2.xpose.msra.mxu0 0.0
    %599 = vmatprep.subr.mxu0 0.0
    %600 = vmatpush2.xpose.msra.mxu0 0.0
    %601 = vmatprep.subr.mxu0 0.0
    %602 = vmatpush2.xpose.msra.mxu0 0.0
    %603 = vmatprep.subr.mxu0 0.0
    %604 = vmatpush2.xpose.msra.mxu0 0.0
    %605 = vmatprep.subr.mxu0 0.0
    %606 = vmatpush2.xpose.msra.mxu0 0.0
    %607 = vmatprep.subr.mxu0 0.0
    %608 = vmatpush2.xpose.msra.mxu0 0.0
    %609 = vmatprep.subr.mxu0 0.0
    %610 = vmatpush2.xpose.msra.mxu0 0.0
    %611 = vmatprep.subr.mxu0 0.0
    %612 = vmatpush2.xpose.msra.mxu0 0.0
    %613 = vmatprep.subr.mxu0 0.0
    %614 = vmatpush2.xpose.msra.mxu0 0.0
    %615 = vmatprep.subr.mxu0 0.0
    %616 = vmatpush2.xpose.msra.mxu0 0.0
    %617 = vmatprep.subr.mxu0 0.0
    %618 = vmatpush2.xpose.msra.mxu0 0.0
    %619 = vmatprep.subr.mxu0 0.0
    %620 = vmatpush2.xpose.msra.mxu0 0.0
    %621 = vmatprep.subr.mxu0 0.0
    %622 = vmatpush2.xpose.msra.mxu0 0.0
    %623 = vmatprep.subr.mxu0 0.0
    %624 = vmatpush2.xpose.msra.mxu0 0.0
    %625 = vmatprep.mubr.f32.mxu0 0.0
    %v626 = vand.u32 %v76, 4294901760
    %627 = vmatmul.mubr.f32.gmra.mxu0 %v626
    %v628 = vpop.f32.mrf.mxu0
    %v629 = vadd.f32 %v510, %v628
    %v630 = vpop.f32.mrf.mxu0
    %631 = vdwg.mxu0
    %632 = vmatprep.subr.mxu0 0.0
    %v633 = vand.u32 %v68, 4294901760
    %634 = vmatpush1.xpose.msra.mxu0 %v633
    %635 = vmatprep.subr.mxu0 0.0
    %v636 = vand.u32 %v67, 4294901760
    %637 = vmatpush1.xpose.msra.mxu0 %v636
    %638 = vmatprep.subr.mxu0 0.0
    %v639 = vand.u32 %v66, 4294901760
    %640 = vmatpush1.xpose.msra.mxu0 %v639
    %641 = vmatprep.subr.mxu0 0.0
    %v642 = vand.u32 %v65, 4294901760
    %643 = vmatpush1.xpose.msra.mxu0 %v642
    %644 = vmatprep.subr.mxu0 0.0
    %v645 = vand.u32 %v64, 4294901760
    %646 = vmatpush1.xpose.msra.mxu0 %v645
    %647 = vmatprep.subr.mxu0 0.0
    %v648 = vand.u32 %v63, 4294901760
    %649 = vmatpush1.xpose.msra.mxu0 %v648
    %650 = vmatprep.subr.mxu0 0.0
    %v651 = vand.u32 %v62, 4294901760
    %652 = vmatpush1.xpose.msra.mxu0 %v651
    %653 = vmatprep.subr.mxu0 0.0
    %v654 = vand.u32 %v61, 4294901760
    %655 = vmatpush1.xpose.msra.mxu0 %v654
    %656 = vmatprep.subr.mxu0 0.0
    %v657 = vand.u32 %v60, 4294901760
    %658 = vmatpush1.xpose.msra.mxu0 %v657
    %659 = vmatprep.subr.mxu0 0.0
    %v660 = vand.u32 %v59, 4294901760
    %661 = vmatpush1.xpose.msra.mxu0 %v660
    %662 = vmatprep.subr.mxu0 0.0
    %v663 = vand.u32 %v58, 4294901760
    %664 = vmatpush1.xpose.msra.mxu0 %v663
    %665 = vmatprep.subr.mxu0 0.0
    %v666 = vand.u32 %v57, 4294901760
    %667 = vmatpush1.xpose.msra.mxu0 %v666
    %668 = vmatprep.subr.mxu0 0.0
    %v669 = vand.u32 %v56, 4294901760
    %670 = vmatpush1.xpose.msra.mxu0 %v669
    %671 = vmatprep.subr.mxu0 0.0
    %v672 = vand.u32 %v55, 4294901760
    %673 = vmatpush1.xpose.msra.mxu0 %v672
    %674 = vmatprep.subr.mxu0 0.0
    %v675 = vand.u32 %v54, 4294901760
    %676 = vmatpush1.xpose.msra.mxu0 %v675
    %677 = vmatprep.subr.mxu0 0.0
    %v678 = vand.u32 %v53, 4294901760
    %679 = vmatpush1.xpose.msra.mxu0 %v678
    %680 = vmatprep.subr.mxu0 0.0
    %681 = vmatpush2.xpose.msra.mxu0 0.0
    %682 = vmatprep.subr.mxu0 0.0
    %683 = vmatpush2.xpose.msra.mxu0 0.0
    %684 = vmatprep.subr.mxu0 0.0
    %685 = vmatpush2.xpose.msra.mxu0 0.0
    %686 = vmatprep.subr.mxu0 0.0
    %687 = vmatpush2.xpose.msra.mxu0 0.0
    %688 = vmatprep.subr.mxu0 0.0
    %689 = vmatpush2.xpose.msra.mxu0 0.0
    %690 = vmatprep.subr.mxu0 0.0
    %691 = vmatpush2.xpose.msra.mxu0 0.0
    %692 = vmatprep.subr.mxu0 0.0
    %693 = vmatpush2.xpose.msra.mxu0 0.0
    %694 = vmatprep.subr.mxu0 0.0
    %695 = vmatpush2.xpose.msra.mxu0 0.0
    %696 = vmatprep.subr.mxu0 0.0
    %697 = vmatpush2.xpose.msra.mxu0 0.0
    %698 = vmatprep.subr.mxu0 0.0
    %699 = vmatpush2.xpose.msra.mxu0 0.0
    %700 = vmatprep.subr.mxu0 0.0
    %701 = vmatpush2.xpose.msra.mxu0 0.0
    %702 = vmatprep.subr.mxu0 0.0
    %703 = vmatpush2.xpose.msra.mxu0 0.0
    %704 = vmatprep.subr.mxu0 0.0
    %705 = vmatpush2.xpose.msra.mxu0 0.0
    %706 = vmatprep.subr.mxu0 0.0
    %707 = vmatpush2.xpose.msra.mxu0 0.0
    %708 = vmatprep.subr.mxu0 0.0
    %709 = vmatpush2.xpose.msra.mxu0 0.0
    %710 = vmatprep.subr.mxu0 0.0
    %711 = vmatpush2.xpose.msra.mxu0 0.0
    %712 = vmatprep.mubr.f32.mxu0 0.0
    %v713 = vand.u32 %v76, 4294901760
    %714 = vmatmul.mubr.f32.gmra.mxu0 %v713
    %v715 = vpop.f32.mrf.mxu0
    %v716 = vadd.f32 %v629, %v715
    %v717 = vpop.f32.mrf.mxu0
    %718 = vdwg.mxu0
    %s719 = scalar_lea.vmem %s3, 8
    %720 = vst [vmem:[%s719] sm:$0xff] %v716
    %721 = vmatprep.subr.mxu0 0.0
    %v722 = vand.u32 %v68, 4294901760
    %723 = vmatpush1.xpose.msra.mxu0 %v722
    %724 = vmatprep.subr.mxu0 0.0
    %v725 = vand.u32 %v67, 4294901760
    %726 = vmatpush1.xpose.msra.mxu0 %v725
    %727 = vmatprep.subr.mxu0 0.0
    %v728 = vand.u32 %v66, 4294901760
    %729 = vmatpush1.xpose.msra.mxu0 %v728
    %730 = vmatprep.subr.mxu0 0.0
    %v731 = vand.u32 %v65, 4294901760
    %732 = vmatpush1.xpose.msra.mxu0 %v731
    %733 = vmatprep.subr.mxu0 0.0
    %v734 = vand.u32 %v64, 4294901760
    %735 = vmatpush1.xpose.msra.mxu0 %v734
    %736 = vmatprep.subr.mxu0 0.0
    %v737 = vand.u32 %v63, 4294901760
    %738 = vmatpush1.xpose.msra.mxu0 %v737
    %739 = vmatprep.subr.mxu0 0.0
    %v740 = vand.u32 %v62, 4294901760
    %741 = vmatpush1.xpose.msra.mxu0 %v740
    %742 = vmatprep.subr.mxu0 0.0
    %v743 = vand.u32 %v61, 4294901760
    %744 = vmatpush1.xpose.msra.mxu0 %v743
    %745 = vmatprep.subr.mxu0 0.0
    %v746 = vand.u32 %v60, 4294901760
    %747 = vmatpush1.xpose.msra.mxu0 %v746
    %748 = vmatprep.subr.mxu0 0.0
    %v749 = vand.u32 %v59, 4294901760
    %750 = vmatpush1.xpose.msra.mxu0 %v749
    %751 = vmatprep.subr.mxu0 0.0
    %v752 = vand.u32 %v58, 4294901760
    %753 = vmatpush1.xpose.msra.mxu0 %v752
    %754 = vmatprep.subr.mxu0 0.0
    %v755 = vand.u32 %v57, 4294901760
    %756 = vmatpush1.xpose.msra.mxu0 %v755
    %757 = vmatprep.subr.mxu0 0.0
    %v758 = vand.u32 %v56, 4294901760
    %759 = vmatpush1.xpose.msra.mxu0 %v758
    %760 = vmatprep.subr.mxu0 0.0
    %v761 = vand.u32 %v55, 4294901760
    %762 = vmatpush1.xpose.msra.mxu0 %v761
    %763 = vmatprep.subr.mxu0 0.0
    %v764 = vand.u32 %v54, 4294901760
    %765 = vmatpush1.xpose.msra.mxu0 %v764
    %766 = vmatprep.subr.mxu0 0.0
    %v767 = vand.u32 %v53, 4294901760
    %768 = vmatpush1.xpose.msra.mxu0 %v767
    %769 = vmatprep.subr.mxu0 0.0
    %770 = vmatpush2.xpose.msra.mxu0 0.0
    %771 = vmatprep.subr.mxu0 0.0
    %772 = vmatpush2.xpose.msra.mxu0 0.0
    %773 = vmatprep.subr.mxu0 0.0
    %774 = vmatpush2.xpose.msra.mxu0 0.0
    %775 = vmatprep.subr.mxu0 0.0
    %776 = vmatpush2.xpose.msra.mxu0 0.0
    %777 = vmatprep.subr.mxu0 0.0
    %778 = vmatpush2.xpose.msra.mxu0 0.0
    %779 = vmatprep.subr.mxu0 0.0
    %780 = vmatpush2.xpose.msra.mxu0 0.0
    %781 = vmatprep.subr.mxu0 0.0
    %782 = vmatpush2.xpose.msra.mxu0 0.0
    %783 = vmatprep.subr.mxu0 0.0
    %784 = vmatpush2.xpose.msra.mxu0 0.0
    %785 = vmatprep.subr.mxu0 0.0
    %786 = vmatpush2.xpose.msra.mxu0 0.0
    %787 = vmatprep.subr.mxu0 0.0
    %788 = vmatpush2.xpose.msra.mxu0 0.0
    %789 = vmatprep.subr.mxu0 0.0
    %790 = vmatpush2.xpose.msra.mxu0 0.0
    %791 = vmatprep.subr.mxu0 0.0
    %792 = vmatpush2.xpose.msra.mxu0 0.0
    %793 = vmatprep.subr.mxu0 0.0
    %794 = vmatpush2.xpose.msra.mxu0 0.0
    %795 = vmatprep.subr.mxu0 0.0
    %796 = vmatpush2.xpose.msra.mxu0 0.0
    %797 = vmatprep.subr.mxu0 0.0
    %798 = vmatpush2.xpose.msra.mxu0 0.0
    %799 = vmatprep.subr.mxu0 0.0
    %800 = vmatpush2.xpose.msra.mxu0 0.0
    %801 = vmatprep.mubr.f32.mxu0 0.0
    %v802 = vand.u32 %v716, 4294901760
    %v803 = vsub.f32 %v716, %v802
    %v804 = vand.u32 %v803, 4294901760
    %v805 = vsub.f32 %v803, %v804
    %v806 = vand.u32 %v805, 4294901760
    %807 = vmatmul.mubr.f32.gmra.mxu0 %v806
    %v808 = vpop.f32.mrf.mxu0
    %v809 = vadd.f32 %v74, %v808
    %v810 = vpop.f32.mrf.mxu0
    %811 = vdwg.mxu0
    %812 = vmatprep.subr.mxu0 0.0
    %v813 = vand.u32 %v68, 4294901760
    %v814 = vsub.f32 %v68, %v813
    %v815 = vand.u32 %v814, 4294901760
    %v816 = vsub.f32 %v814, %v815
    %v817 = vand.u32 %v816, 4294901760
    %818 = vmatpush1.xpose.msra.mxu0 %v817
    %819 = vmatprep.subr.mxu0 0.0
    %v820 = vand.u32 %v67, 4294901760
    %v821 = vsub.f32 %v67, %v820
    %v822 = vand.u32 %v821, 4294901760
    %v823 = vsub.f32 %v821, %v822
    %v824 = vand.u32 %v823, 4294901760
    %825 = vmatpush1.xpose.msra.mxu0 %v824
    %826 = vmatprep.subr.mxu0 0.0
    %v827 = vand.u32 %v66, 4294901760
    %v828 = vsub.f32 %v66, %v827
    %v829 = vand.u32 %v828, 4294901760
    %v830 = vsub.f32 %v828, %v829
    %v831 = vand.u32 %v830, 4294901760
    %832 = vmatpush1.xpose.msra.mxu0 %v831
    %833 = vmatprep.subr.mxu0 0.0
    %v834 = vand.u32 %v65, 4294901760
    %v835 = vsub.f32 %v65, %v834
    %v836 = vand.u32 %v835, 4294901760
    %v837 = vsub.f32 %v835, %v836
    %v838 = vand.u32 %v837, 4294901760
    %839 = vmatpush1.xpose.msra.mxu0 %v838
    %840 = vmatprep.subr.mxu0 0.0
    %v841 = vand.u32 %v64, 4294901760
    %v842 = vsub.f32 %v64, %v841
    %v843 = vand.u32 %v842, 4294901760
    %v844 = vsub.f32 %v842, %v843
    %v845 = vand.u32 %v844, 4294901760
    %846 = vmatpush1.xpose.msra.mxu0 %v845
    %847 = vmatprep.subr.mxu0 0.0
    %v848 = vand.u32 %v63, 4294901760
    %v849 = vsub.f32 %v63, %v848
    %v850 = vand.u32 %v849, 4294901760
    %v851 = vsub.f32 %v849, %v850
    %v852 = vand.u32 %v851, 4294901760
    %853 = vmatpush1.xpose.msra.mxu0 %v852
    %854 = vmatprep.subr.mxu0 0.0
    %v855 = vand.u32 %v62, 4294901760
    %v856 = vsub.f32 %v62, %v855
    %v857 = vand.u32 %v856, 4294901760
    %v858 = vsub.f32 %v856, %v857
    %v859 = vand.u32 %v858, 4294901760
    %860 = vmatpush1.xpose.msra.mxu0 %v859
    %861 = vmatprep.subr.mxu0 0.0
    %v862 = vand.u32 %v61, 4294901760
    %v863 = vsub.f32 %v61, %v862
    %v864 = vand.u32 %v863, 4294901760
    %v865 = vsub.f32 %v863, %v864
    %v866 = vand.u32 %v865, 4294901760
    %867 = vmatpush1.xpose.msra.mxu0 %v866
    %868 = vmatprep.subr.mxu0 0.0
    %v869 = vand.u32 %v60, 4294901760
    %v870 = vsub.f32 %v60, %v869
    %v871 = vand.u32 %v870, 4294901760
    %v872 = vsub.f32 %v870, %v871
    %v873 = vand.u32 %v872, 4294901760
    %874 = vmatpush1.xpose.msra.mxu0 %v873
    %875 = vmatprep.subr.mxu0 0.0
    %v876 = vand.u32 %v59, 4294901760
    %v877 = vsub.f32 %v59, %v876
    %v878 = vand.u32 %v877, 4294901760
    %v879 = vsub.f32 %v877, %v878
    %v880 = vand.u32 %v879, 4294901760
    %881 = vmatpush1.xpose.msra.mxu0 %v880
    %882 = vmatprep.subr.mxu0 0.0
    %v883 = vand.u32 %v58, 4294901760
    %v884 = vsub.f32 %v58, %v883
    %v885 = vand.u32 %v884, 4294901760
    %v886 = vsub.f32 %v884, %v885
    %v887 = vand.u32 %v886, 4294901760
    %888 = vmatpush1.xpose.msra.mxu0 %v887
    %889 = vmatprep.subr.mxu0 0.0
    %v890 = vand.u32 %v57, 4294901760
    %v891 = vsub.f32 %v57, %v890
    %v892 = vand.u32 %v891, 4294901760
    %v893 = vsub.f32 %v891, %v892
    %v894 = vand.u32 %v893, 4294901760
    %895 = vmatpush1.xpose.msra.mxu0 %v894
    %896 = vmatprep.subr.mxu0 0.0
    %v897 = vand.u32 %v56, 4294901760
    %v898 = vsub.f32 %v56, %v897
    %v899 = vand.u32 %v898, 4294901760
    %v900 = vsub.f32 %v898, %v899
    %v901 = vand.u32 %v900, 4294901760
    %902 = vmatpush1.xpose.msra.mxu0 %v901
    %903 = vmatprep.subr.mxu0 0.0
    %v904 = vand.u32 %v55, 4294901760
    %v905 = vsub.f32 %v55, %v904
    %v906 = vand.u32 %v905, 4294901760
    %v907 = vsub.f32 %v905, %v906
    %v908 = vand.u32 %v907, 4294901760
    %909 = vmatpush1.xpose.msra.mxu0 %v908
    %910 = vmatprep.subr.mxu0 0.0
    %v911 = vand.u32 %v54, 4294901760
    %v912 = vsub.f32 %v54, %v911
    %v913 = vand.u32 %v912, 4294901760
    %v914 = vsub.f32 %v912, %v913
    %v915 = vand.u32 %v914, 4294901760
    %916 = vmatpush1.xpose.msra.mxu0 %v915
    %917 = vmatprep.subr.mxu0 0.0
    %v918 = vand.u32 %v53, 4294901760
    %v919 = vsub.f32 %v53, %v918
    %v920 = vand.u32 %v919, 4294901760
    %v921 = vsub.f32 %v919, %v920
    %v922 = vand.u32 %v921, 4294901760
    %923 = vmatpush1.xpose.msra.mxu0 %v922
    %924 = vmatprep.subr.mxu0 0.0
    %925 = vmatpush2.xpose.msra.mxu0 0.0
    %926 = vmatprep.subr.mxu0 0.0
    %927 = vmatpush2.xpose.msra.mxu0 0.0
    %928 = vmatprep.subr.mxu0 0.0
    %929 = vmatpush2.xpose.msra.mxu0 0.0
    %930 = vmatprep.subr.mxu0 0.0
    %931 = vmatpush2.xpose.msra.mxu0 0.0
    %932 = vmatprep.subr.mxu0 0.0
    %933 = vmatpush2.xpose.msra.mxu0 0.0
    %934 = vmatprep.subr.mxu0 0.0
    %935 = vmatpush2.xpose.msra.mxu0 0.0
    %936 = vmatprep.subr.mxu0 0.0
    %937 = vmatpush2.xpose.msra.mxu0 0.0
    %938 = vmatprep.subr.mxu0 0.0
    %939 = vmatpush2.xpose.msra.mxu0 0.0
    %940 = vmatprep.subr.mxu0 0.0
    %941 = vmatpush2.xpose.msra.mxu0 0.0
    %942 = vmatprep.subr.mxu0 0.0
    %943 = vmatpush2.xpose.msra.mxu0 0.0
    %944 = vmatprep.subr.mxu0 0.0
    %945 = vmatpush2.xpose.msra.mxu0 0.0
    %946 = vmatprep.subr.mxu0 0.0
    %947 = vmatpush2.xpose.msra.mxu0 0.0
    %948 = vmatprep.subr.mxu0 0.0
    %949 = vmatpush2.xpose.msra.mxu0 0.0
    %950 = vmatprep.subr.mxu0 0.0
    %951 = vmatpush2.xpose.msra.mxu0 0.0
    %952 = vmatprep.subr.mxu0 0.0
    %953 = vmatpush2.xpose.msra.mxu0 0.0
    %954 = vmatprep.subr.mxu0 0.0
    %955 = vmatpush2.xpose.msra.mxu0 0.0
    %956 = vmatprep.mubr.f32.mxu0 0.0
    %v957 = vand.u32 %v716, 4294901760
    %958 = vmatmul.mubr.f32.gmra.mxu0 %v957
    %v959 = vpop.f32.mrf.mxu0
    %v960 = vadd.f32 %v809, %v959
    %v961 = vpop.f32.mrf.mxu0
    %962 = vdwg.mxu0
    %963 = vmatprep.subr.mxu0 0.0
    %v964 = vand.u32 %v68, 4294901760
    %v965 = vsub.f32 %v68, %v964
    %966 = vmatpush1.xpose.msra.mxu0 %v965
    %967 = vmatprep.subr.mxu0 0.0
    %v968 = vand.u32 %v67, 4294901760
    %v969 = vsub.f32 %v67, %v968
    %970 = vmatpush1.xpose.msra.mxu0 %v969
    %971 = vmatprep.subr.mxu0 0.0
    %v972 = vand.u32 %v66, 4294901760
    %v973 = vsub.f32 %v66, %v972
    %974 = vmatpush1.xpose.msra.mxu0 %v973
    %975 = vmatprep.subr.mxu0 0.0
    %v976 = vand.u32 %v65, 4294901760
    %v977 = vsub.f32 %v65, %v976
    %978 = vmatpush1.xpose.msra.mxu0 %v977
    %979 = vmatprep.subr.mxu0 0.0
    %v980 = vand.u32 %v64, 4294901760
    %v981 = vsub.f32 %v64, %v980
    %982 = vmatpush1.xpose.msra.mxu0 %v981
    %983 = vmatprep.subr.mxu0 0.0
    %v984 = vand.u32 %v63, 4294901760
    %v985 = vsub.f32 %v63, %v984
    %986 = vmatpush1.xpose.msra.mxu0 %v985
    %987 = vmatprep.subr.mxu0 0.0
    %v988 = vand.u32 %v62, 4294901760
    %v989 = vsub.f32 %v62, %v988
    %990 = vmatpush1.xpose.msra.mxu0 %v989
    %991 = vmatprep.subr.mxu0 0.0
    %v992 = vand.u32 %v61, 4294901760
    %v993 = vsub.f32 %v61, %v992
    %994 = vmatpush1.xpose.msra.mxu0 %v993
    %995 = vmatprep.subr.mxu0 0.0
    %v996 = vand.u32 %v60, 4294901760
    %v997 = vsub.f32 %v60, %v996
    %998 = vmatpush1.xpose.msra.mxu0 %v997
    %999 = vmatprep.subr.mxu0 0.0
    %v1000 = vand.u32 %v59, 4294901760
    %v1001 = vsub.f32 %v59, %v1000
    %1002 = vmatpush1.xpose.msra.mxu0 %v1001
    %1003 = vmatprep.subr.mxu0 0.0
    %v1004 = vand.u32 %v58, 4294901760
    %v1005 = vsub.f32 %v58, %v1004
    %1006 = vmatpush1.xpose.msra.mxu0 %v1005
    %1007 = vmatprep.subr.mxu0 0.0
    %v1008 = vand.u32 %v57, 4294901760
    %v1009 = vsub.f32 %v57, %v1008
    %1010 = vmatpush1.xpose.msra.mxu0 %v1009
    %1011 = vmatprep.subr.mxu0 0.0
    %v1012 = vand.u32 %v56, 4294901760
    %v1013 = vsub.f32 %v56, %v1012
    %1014 = vmatpush1.xpose.msra.mxu0 %v1013
    %1015 = vmatprep.subr.mxu0 0.0
    %v1016 = vand.u32 %v55, 4294901760
    %v1017 = vsub.f32 %v55, %v1016
    %1018 = vmatpush1.xpose.msra.mxu0 %v1017
    %1019 = vmatprep.subr.mxu0 0.0
    %v1020 = vand.u32 %v54, 4294901760
    %v1021 = vsub.f32 %v54, %v1020
    %1022 = vmatpush1.xpose.msra.mxu0 %v1021
    %1023 = vmatprep.subr.mxu0 0.0
    %v1024 = vand.u32 %v53, 4294901760
    %v1025 = vsub.f32 %v53, %v1024
    %1026 = vmatpush1.xpose.msra.mxu0 %v1025
    %1027 = vmatprep.subr.mxu0 0.0
    %1028 = vmatpush2.xpose.msra.mxu0 0.0
    %1029 = vmatprep.subr.mxu0 0.0
    %1030 = vmatpush2.xpose.msra.mxu0 0.0
    %1031 = vmatprep.subr.mxu0 0.0
    %1032 = vmatpush2.xpose.msra.mxu0 0.0
    %1033 = vmatprep.subr.mxu0 0.0
    %1034 = vmatpush2.xpose.msra.mxu0 0.0
    %1035 = vmatprep.subr.mxu0 0.0
    %1036 = vmatpush2.xpose.msra.mxu0 0.0
    %1037 = vmatprep.subr.mxu0 0.0
    %1038 = vmatpush2.xpose.msra.mxu0 0.0
    %1039 = vmatprep.subr.mxu0 0.0
    %1040 = vmatpush2.xpose.msra.mxu0 0.0
    %1041 = vmatprep.subr.mxu0 0.0
    %1042 = vmatpush2.xpose.msra.mxu0 0.0
    %1043 = vmatprep.subr.mxu0 0.0
    %1044 = vmatpush2.xpose.msra.mxu0 0.0
    %1045 = vmatprep.subr.mxu0 0.0
    %1046 = vmatpush2.xpose.msra.mxu0 0.0
    %1047 = vmatprep.subr.mxu0 0.0
    %1048 = vmatpush2.xpose.msra.mxu0 0.0
    %1049 = vmatprep.subr.mxu0 0.0
    %1050 = vmatpush2.xpose.msra.mxu0 0.0
    %1051 = vmatprep.subr.mxu0 0.0
    %1052 = vmatpush2.xpose.msra.mxu0 0.0
    %1053 = vmatprep.subr.mxu0 0.0
    %1054 = vmatpush2.xpose.msra.mxu0 0.0
    %1055 = vmatprep.subr.mxu0 0.0
    %1056 = vmatpush2.xpose.msra.mxu0 0.0
    %1057 = vmatprep.subr.mxu0 0.0
    %1058 = vmatpush2.xpose.msra.mxu0 0.0
    %1059 = vmatprep.mubr.f32.mxu0 0.0
    %v1060 = vand.u32 %v716, 4294901760
    %v1061 = vsub.f32 %v716, %v1060
    %1062 = vmatmul.mubr.f32.gmra.mxu0 %v1061
    %v1063 = vpop.f32.mrf.mxu0
    %v1064 = vadd.f32 %v960, %v1063
    %v1065 = vpop.f32.mrf.mxu0
    %1066 = vdwg.mxu0
    %1067 = vmatprep.subr.mxu0 0.0
    %v1068 = vand.u32 %v68, 4294901760
    %1069 = vmatpush1.xpose.msra.mxu0 %v1068
    %1070 = vmatprep.subr.mxu0 0.0
    %v1071 = vand.u32 %v67, 4294901760
    %1072 = vmatpush1.xpose.msra.mxu0 %v1071
    %1073 = vmatprep.subr.mxu0 0.0
    %v1074 = vand.u32 %v66, 4294901760
    %1075 = vmatpush1.xpose.msra.mxu0 %v1074
    %1076 = vmatprep.subr.mxu0 0.0
    %v1077 = vand.u32 %v65, 4294901760
    %1078 = vmatpush1.xpose.msra.mxu0 %v1077
    %1079 = vmatprep.subr.mxu0 0.0
    %v1080 = vand.u32 %v64, 4294901760
    %1081 = vmatpush1.xpose.msra.mxu0 %v1080
    %1082 = vmatprep.subr.mxu0 0.0
    %v1083 = vand.u32 %v63, 4294901760
    %1084 = vmatpush1.xpose.msra.mxu0 %v1083
    %1085 = vmatprep.subr.mxu0 0.0
    %v1086 = vand.u32 %v62, 4294901760
    %1087 = vmatpush1.xpose.msra.mxu0 %v1086
    %1088 = vmatprep.subr.mxu0 0.0
    %v1089 = vand.u32 %v61, 4294901760
    %1090 = vmatpush1.xpose.msra.mxu0 %v1089
    %1091 = vmatprep.subr.mxu0 0.0
    %v1092 = vand.u32 %v60, 4294901760
    %1093 = vmatpush1.xpose.msra.mxu0 %v1092
    %1094 = vmatprep.subr.mxu0 0.0
    %v1095 = vand.u32 %v59, 4294901760
    %1096 = vmatpush1.xpose.msra.mxu0 %v1095
    %1097 = vmatprep.subr.mxu0 0.0
    %v1098 = vand.u32 %v58, 4294901760
    %1099 = vmatpush1.xpose.msra.mxu0 %v1098
    %1100 = vmatprep.subr.mxu0 0.0
    %v1101 = vand.u32 %v57, 4294901760
    %1102 = vmatpush1.xpose.msra.mxu0 %v1101
    %1103 = vmatprep.subr.mxu0 0.0
    %v1104 = vand.u32 %v56, 4294901760
    %1105 = vmatpush1.xpose.msra.mxu0 %v1104
    %1106 = vmatprep.subr.mxu0 0.0
    %v1107 = vand.u32 %v55, 4294901760
    %1108 = vmatpush1.xpose.msra.mxu0 %v1107
    %1109 = vmatprep.subr.mxu0 0.0
    %v1110 = vand.u32 %v54, 4294901760
    %1111 = vmatpush1.xpose.msra.mxu0 %v1110
    %1112 = vmatprep.subr.mxu0 0.0
    %v1113 = vand.u32 %v53, 4294901760
    %1114 = vmatpush1.xpose.msra.mxu0 %v1113
    %1115 = vmatprep.subr.mxu0 0.0
    %1116 = vmatpush2.xpose.msra.mxu0 0.0
    %1117 = vmatprep.subr.mxu0 0.0
    %1118 = vmatpush2.xpose.msra.mxu0 0.0
    %1119 = vmatprep.subr.mxu0 0.0
    %1120 = vmatpush2.xpose.msra.mxu0 0.0
    %1121 = vmatprep.subr.mxu0 0.0
    %1122 = vmatpush2.xpose.msra.mxu0 0.0
    %1123 = vmatprep.subr.mxu0 0.0
    %1124 = vmatpush2.xpose.msra.mxu0 0.0
    %1125 = vmatprep.subr.mxu0 0.0
    %1126 = vmatpush2.xpose.msra.mxu0 0.0
    %1127 = vmatprep.subr.mxu0 0.0
    %1128 = vmatpush2.xpose.msra.mxu0 0.0
    %1129 = vmatprep.subr.mxu0 0.0
    %1130 = vmatpush2.xpose.msra.mxu0 0.0
    %1131 = vmatprep.subr.mxu0 0.0
    %1132 = vmatpush2.xpose.msra.mxu0 0.0
    %1133 = vmatprep.subr.mxu0 0.0
    %1134 = vmatpush2.xpose.msra.mxu0 0.0
    %1135 = vmatprep.subr.mxu0 0.0
    %1136 = vmatpush2.xpose.msra.mxu0 0.0
    %1137 = vmatprep.subr.mxu0 0.0
    %1138 = vmatpush2.xpose.msra.mxu0 0.0
    %1139 = vmatprep.subr.mxu0 0.0
    %1140 = vmatpush2.xpose.msra.mxu0 0.0
    %1141 = vmatprep.subr.mxu0 0.0
    %1142 = vmatpush2.xpose.msra.mxu0 0.0
    %1143 = vmatprep.subr.mxu0 0.0
    %1144 = vmatpush2.xpose.msra.mxu0 0.0
    %1145 = vmatprep.subr.mxu0 0.0
    %1146 = vmatpush2.xpose.msra.mxu0 0.0
    %1147 = vmatprep.mubr.f32.mxu0 0.0
    %v1148 = vand.u32 %v716, 4294901760
    %v1149 = vsub.f32 %v716, %v1148
    %v1150 = vand.u32 %v1149, 4294901760
    %1151 = vmatmul.mubr.f32.gmra.mxu0 %v1150
    %v1152 = vpop.f32.mrf.mxu0
    %v1153 = vadd.f32 %v1064, %v1152
    %v1154 = vpop.f32.mrf.mxu0
    %1155 = vdwg.mxu0
    %1156 = vmatprep.subr.mxu0 0.0
    %v1157 = vand.u32 %v68, 4294901760
    %v1158 = vsub.f32 %v68, %v1157
    %v1159 = vand.u32 %v1158, 4294901760
    %1160 = vmatpush1.xpose.msra.mxu0 %v1159
    %1161 = vmatprep.subr.mxu0 0.0
    %v1162 = vand.u32 %v67, 4294901760
    %v1163 = vsub.f32 %v67, %v1162
    %v1164 = vand.u32 %v1163, 4294901760
    %1165 = vmatpush1.xpose.msra.mxu0 %v1164
    %1166 = vmatprep.subr.mxu0 0.0
    %v1167 = vand.u32 %v66, 4294901760
    %v1168 = vsub.f32 %v66, %v1167
    %v1169 = vand.u32 %v1168, 4294901760
    %1170 = vmatpush1.xpose.msra.mxu0 %v1169
    %1171 = vmatprep.subr.mxu0 0.0
    %v1172 = vand.u32 %v65, 4294901760
    %v1173 = vsub.f32 %v65, %v1172
    %v1174 = vand.u32 %v1173, 4294901760
    %1175 = vmatpush1.xpose.msra.mxu0 %v1174
    %1176 = vmatprep.subr.mxu0 0.0
    %v1177 = vand.u32 %v64, 4294901760
    %v1178 = vsub.f32 %v64, %v1177
    %v1179 = vand.u32 %v1178, 4294901760
    %1180 = vmatpush1.xpose.msra.mxu0 %v1179
    %1181 = vmatprep.subr.mxu0 0.0
    %v1182 = vand.u32 %v63, 4294901760
    %v1183 = vsub.f32 %v63, %v1182
    %v1184 = vand.u32 %v1183, 4294901760
    %1185 = vmatpush1.xpose.msra.mxu0 %v1184
    %1186 = vmatprep.subr.mxu0 0.0
    %v1187 = vand.u32 %v62, 4294901760
    %v1188 = vsub.f32 %v62, %v1187
    %v1189 = vand.u32 %v1188, 4294901760
    %1190 = vmatpush1.xpose.msra.mxu0 %v1189
    %1191 = vmatprep.subr.mxu0 0.0
    %v1192 = vand.u32 %v61, 4294901760
    %v1193 = vsub.f32 %v61, %v1192
    %v1194 = vand.u32 %v1193, 4294901760
    %1195 = vmatpush1.xpose.msra.mxu0 %v1194
    %1196 = vmatprep.subr.mxu0 0.0
    %v1197 = vand.u32 %v60, 4294901760
    %v1198 = vsub.f32 %v60, %v1197
    %v1199 = vand.u32 %v1198, 4294901760
    %1200 = vmatpush1.xpose.msra.mxu0 %v1199
    %1201 = vmatprep.subr.mxu0 0.0
    %v1202 = vand.u32 %v59, 4294901760
    %v1203 = vsub.f32 %v59, %v1202
    %v1204 = vand.u32 %v1203, 4294901760
    %1205 = vmatpush1.xpose.msra.mxu0 %v1204
    %1206 = vmatprep.subr.mxu0 0.0
    %v1207 = vand.u32 %v58, 4294901760
    %v1208 = vsub.f32 %v58, %v1207
    %v1209 = vand.u32 %v1208, 4294901760
    %1210 = vmatpush1.xpose.msra.mxu0 %v1209
    %1211 = vmatprep.subr.mxu0 0.0
    %v1212 = vand.u32 %v57, 4294901760
    %v1213 = vsub.f32 %v57, %v1212
    %v1214 = vand.u32 %v1213, 4294901760
    %1215 = vmatpush1.xpose.msra.mxu0 %v1214
    %1216 = vmatprep.subr.mxu0 0.0
    %v1217 = vand.u32 %v56, 4294901760
    %v1218 = vsub.f32 %v56, %v1217
    %v1219 = vand.u32 %v1218, 4294901760
    %1220 = vmatpush1.xpose.msra.mxu0 %v1219
    %1221 = vmatprep.subr.mxu0 0.0
    %v1222 = vand.u32 %v55, 4294901760
    %v1223 = vsub.f32 %v55, %v1222
    %v1224 = vand.u32 %v1223, 4294901760
    %1225 = vmatpush1.xpose.msra.mxu0 %v1224
    %1226 = vmatprep.subr.mxu0 0.0
    %v1227 = vand.u32 %v54, 4294901760
    %v1228 = vsub.f32 %v54, %v1227
    %v1229 = vand.u32 %v1228, 4294901760
    %1230 = vmatpush1.xpose.msra.mxu0 %v1229
    %1231 = vmatprep.subr.mxu0 0.0
    %v1232 = vand.u32 %v53, 4294901760
    %v1233 = vsub.f32 %v53, %v1232
    %v1234 = vand.u32 %v1233, 4294901760
    %1235 = vmatpush1.xpose.msra.mxu0 %v1234
    %1236 = vmatprep.subr.mxu0 0.0
    %1237 = vmatpush2.xpose.msra.mxu0 0.0
    %1238 = vmatprep.subr.mxu0 0.0
    %1239 = vmatpush2.xpose.msra.mxu0 0.0
    %1240 = vmatprep.subr.mxu0 0.0
    %1241 = vmatpush2.xpose.msra.mxu0 0.0
    %1242 = vmatprep.subr.mxu0 0.0
    %1243 = vmatpush2.xpose.msra.mxu0 0.0
    %1244 = vmatprep.subr.mxu0 0.0
    %1245 = vmatpush2.xpose.msra.mxu0 0.0
    %1246 = vmatprep.subr.mxu0 0.0
    %1247 = vmatpush2.xpose.msra.mxu0 0.0
    %1248 = vmatprep.subr.mxu0 0.0
    %1249 = vmatpush2.xpose.msra.mxu0 0.0
    %1250 = vmatprep.subr.mxu0 0.0
    %1251 = vmatpush2.xpose.msra.mxu0 0.0
    %1252 = vmatprep.subr.mxu0 0.0
    %1253 = vmatpush2.xpose.msra.mxu0 0.0
    %1254 = vmatprep.subr.mxu0 0.0
    %1255 = vmatpush2.xpose.msra.mxu0 0.0
    %1256 = vmatprep.subr.mxu0 0.0
    %1257 = vmatpush2.xpose.msra.mxu0 0.0
    %1258 = vmatprep.subr.mxu0 0.0
    %1259 = vmatpush2.xpose.msra.mxu0 0.0
    %1260 = vmatprep.subr.mxu0 0.0
    %1261 = vmatpush2.xpose.msra.mxu0 0.0
    %1262 = vmatprep.subr.mxu0 0.0
    %1263 = vmatpush2.xpose.msra.mxu0 0.0
    %1264 = vmatprep.subr.mxu0 0.0
    %1265 = vmatpush2.xpose.msra.mxu0 0.0
    %1266 = vmatprep.subr.mxu0 0.0
    %1267 = vmatpush2.xpose.msra.mxu0 0.0
    %1268 = vmatprep.mubr.f32.mxu0 0.0
    %v1269 = vand.u32 %v716, 4294901760
    %1270 = vmatmul.mubr.f32.gmra.mxu0 %v1269
    %v1271 = vpop.f32.mrf.mxu0
    %v1272 = vadd.f32 %v1153, %v1271
    %v1273 = vpop.f32.mrf.mxu0
    %1274 = vdwg.mxu0
    %1275 = vmatprep.subr.mxu0 0.0
    %v1276 = vand.u32 %v68, 4294901760
    %1277 = vmatpush1.xpose.msra.mxu0 %v1276
    %1278 = vmatprep.subr.mxu0 0.0
    %v1279 = vand.u32 %v67, 4294901760
    %1280 = vmatpush1.xpose.msra.mxu0 %v1279
    %1281 = vmatprep.subr.mxu0 0.0
    %v1282 = vand.u32 %v66, 4294901760
    %1283 = vmatpush1.xpose.msra.mxu0 %v1282
    %1284 = vmatprep.subr.mxu0 0.0
    %v1285 = vand.u32 %v65, 4294901760
    %1286 = vmatpush1.xpose.msra.mxu0 %v1285
    %1287 = vmatprep.subr.mxu0 0.0
    %v1288 = vand.u32 %v64, 4294901760
    %1289 = vmatpush1.xpose.msra.mxu0 %v1288
    %1290 = vmatprep.subr.mxu0 0.0
    %v1291 = vand.u32 %v63, 4294901760
    %1292 = vmatpush1.xpose.msra.mxu0 %v1291
    %1293 = vmatprep.subr.mxu0 0.0
    %v1294 = vand.u32 %v62, 4294901760
    %1295 = vmatpush1.xpose.msra.mxu0 %v1294
    %1296 = vmatprep.subr.mxu0 0.0
    %v1297 = vand.u32 %v61, 4294901760
    %1298 = vmatpush1.xpose.msra.mxu0 %v1297
    %1299 = vmatprep.subr.mxu0 0.0
    %v1300 = vand.u32 %v60, 4294901760
    %1301 = vmatpush1.xpose.msra.mxu0 %v1300
    %1302 = vmatprep.subr.mxu0 0.0
    %v1303 = vand.u32 %v59, 4294901760
    %1304 = vmatpush1.xpose.msra.mxu0 %v1303
    %1305 = vmatprep.subr.mxu0 0.0
    %v1306 = vand.u32 %v58, 4294901760
    %1307 = vmatpush1.xpose.msra.mxu0 %v1306
    %1308 = vmatprep.subr.mxu0 0.0
    %v1309 = vand.u32 %v57, 4294901760
    %1310 = vmatpush1.xpose.msra.mxu0 %v1309
    %1311 = vmatprep.subr.mxu0 0.0
    %v1312 = vand.u32 %v56, 4294901760
    %1313 = vmatpush1.xpose.msra.mxu0 %v1312
    %1314 = vmatprep.subr.mxu0 0.0
    %v1315 = vand.u32 %v55, 4294901760
    %1316 = vmatpush1.xpose.msra.mxu0 %v1315
    %1317 = vmatprep.subr.mxu0 0.0
    %v1318 = vand.u32 %v54, 4294901760
    %1319 = vmatpush1.xpose.msra.mxu0 %v1318
    %1320 = vmatprep.subr.mxu0 0.0
    %v1321 = vand.u32 %v53, 4294901760
    %1322 = vmatpush1.xpose.msra.mxu0 %v1321
    %1323 = vmatprep.subr.mxu0 0.0
    %1324 = vmatpush2.xpose.msra.mxu0 0.0
    %1325 = vmatprep.subr.mxu0 0.0
    %1326 = vmatpush2.xpose.msra.mxu0 0.0
    %1327 = vmatprep.subr.mxu0 0.0
    %1328 = vmatpush2.xpose.msra.mxu0 0.0
    %1329 = vmatprep.subr.mxu0 0.0
    %1330 = vmatpush2.xpose.msra.mxu0 0.0
    %1331 = vmatprep.subr.mxu0 0.0
    %1332 = vmatpush2.xpose.msra.mxu0 0.0
    %1333 = vmatprep.subr.mxu0 0.0
    %1334 = vmatpush2.xpose.msra.mxu0 0.0
    %1335 = vmatprep.subr.mxu0 0.0
    %1336 = vmatpush2.xpose.msra.mxu0 0.0
    %1337 = vmatprep.subr.mxu0 0.0
    %1338 = vmatpush2.xpose.msra.mxu0 0.0
    %1339 = vmatprep.subr.mxu0 0.0
    %1340 = vmatpush2.xpose.msra.mxu0 0.0
    %1341 = vmatprep.subr.mxu0 0.0
    %1342 = vmatpush2.xpose.msra.mxu0 0.0
    %1343 = vmatprep.subr.mxu0 0.0
    %1344 = vmatpush2.xpose.msra.mxu0 0.0
    %1345 = vmatprep.subr.mxu0 0.0
    %1346 = vmatpush2.xpose.msra.mxu0 0.0
    %1347 = vmatprep.subr.mxu0 0.0
    %1348 = vmatpush2.xpose.msra.mxu0 0.0
    %1349 = vmatprep.subr.mxu0 0.0
    %1350 = vmatpush2.xpose.msra.mxu0 0.0
    %1351 = vmatprep.subr.mxu0 0.0
    %1352 = vmatpush2.xpose.msra.mxu0 0.0
    %1353 = vmatprep.subr.mxu0 0.0
    %1354 = vmatpush2.xpose.msra.mxu0 0.0
    %1355 = vmatprep.mubr.f32.mxu0 0.0
    %v1356 = vand.u32 %v716, 4294901760
    %1357 = vmatmul.mubr.f32.gmra.mxu0 %v1356
    %v1358 = vpop.f32.mrf.mxu0
    %v1359 = vadd.f32 %v1272, %v1358
    %v1360 = vpop.f32.mrf.mxu0
    %1361 = vdwg.mxu0
    %s1362 = scalar_lea.vmem %s3, 16
    %1363 = vst [vmem:[%s1362] sm:$0xff] %v1359
    %1364 = vmatprep.subr.mxu0 0.0
    %v1365 = vand.u32 %v68, 4294901760
    %1366 = vmatpush1.xpose.msra.mxu0 %v1365
    %1367 = vmatprep.subr.mxu0 0.0
    %v1368 = vand.u32 %v67, 4294901760
    %1369 = vmatpush1.xpose.msra.mxu0 %v1368
    %1370 = vmatprep.subr.mxu0 0.0
    %v1371 = vand.u32 %v66, 4294901760
    %1372 = vmatpush1.xpose.msra.mxu0 %v1371
    %1373 = vmatprep.subr.mxu0 0.0
    %v1374 = vand.u32 %v65, 4294901760
    %1375 = vmatpush1.xpose.msra.mxu0 %v1374
    %1376 = vmatprep.subr.mxu0 0.0
    %v1377 = vand.u32 %v64, 4294901760
    %1378 = vmatpush1.xpose.msra.mxu0 %v1377
    %1379 = vmatprep.subr.mxu0 0.0
    %v1380 = vand.u32 %v63, 4294901760
    %1381 = vmatpush1.xpose.msra.mxu0 %v1380
    %1382 = vmatprep.subr.mxu0 0.0
    %v1383 = vand.u32 %v62, 4294901760
    %1384 = vmatpush1.xpose.msra.mxu0 %v1383
    %1385 = vmatprep.subr.mxu0 0.0
    %v1386 = vand.u32 %v61, 4294901760
    %1387 = vmatpush1.xpose.msra.mxu0 %v1386
    %1388 = vmatprep.subr.mxu0 0.0
    %v1389 = vand.u32 %v60, 4294901760
    %1390 = vmatpush1.xpose.msra.mxu0 %v1389
    %1391 = vmatprep.subr.mxu0 0.0
    %v1392 = vand.u32 %v59, 4294901760
    %1393 = vmatpush1.xpose.msra.mxu0 %v1392
    %1394 = vmatprep.subr.mxu0 0.0
    %v1395 = vand.u32 %v58, 4294901760
    %1396 = vmatpush1.xpose.msra.mxu0 %v1395
    %1397 = vmatprep.subr.mxu0 0.0
    %v1398 = vand.u32 %v57, 4294901760
    %1399 = vmatpush1.xpose.msra.mxu0 %v1398
    %1400 = vmatprep.subr.mxu0 0.0
    %v1401 = vand.u32 %v56, 4294901760
    %1402 = vmatpush1.xpose.msra.mxu0 %v1401
    %1403 = vmatprep.subr.mxu0 0.0
    %v1404 = vand.u32 %v55, 4294901760
    %1405 = vmatpush1.xpose.msra.mxu0 %v1404
    %1406 = vmatprep.subr.mxu0 0.0
    %v1407 = vand.u32 %v54, 4294901760
    %1408 = vmatpush1.xpose.msra.mxu0 %v1407
    %1409 = vmatprep.subr.mxu0 0.0
    %v1410 = vand.u32 %v53, 4294901760
    %1411 = vmatpush1.xpose.msra.mxu0 %v1410
    %1412 = vmatprep.subr.mxu0 0.0
    %1413 = vmatpush2.xpose.msra.mxu0 0.0
    %1414 = vmatprep.subr.mxu0 0.0
    %1415 = vmatpush2.xpose.msra.mxu0 0.0
    %1416 = vmatprep.subr.mxu0 0.0
    %1417 = vmatpush2.xpose.msra.mxu0 0.0
    %1418 = vmatprep.subr.mxu0 0.0
    %1419 = vmatpush2.xpose.msra.mxu0 0.0
    %1420 = vmatprep.subr.mxu0 0.0
    %1421 = vmatpush2.xpose.msra.mxu0 0.0
    %1422 = vmatprep.subr.mxu0 0.0
    %1423 = vmatpush2.xpose.msra.mxu0 0.0
    %1424 = vmatprep.subr.mxu0 0.0
    %1425 = vmatpush2.xpose.msra.mxu0 0.0
    %1426 = vmatprep.subr.mxu0 0.0
    %1427 = vmatpush2.xpose.msra.mxu0 0.0
    %1428 = vmatprep.subr.mxu0 0.0
    %1429 = vmatpush2.xpose.msra.mxu0 0.0
    %1430 = vmatprep.subr.mxu0 0.0
    %1431 = vmatpush2.xpose.msra.mxu0 0.0
    %1432 = vmatprep.subr.mxu0 0.0
    %1433 = vmatpush2.xpose.msra.mxu0 0.0
    %1434 = vmatprep.subr.mxu0 0.0
    %1435 = vmatpush2.xpose.msra.mxu0 0.0
    %1436 = vmatprep.subr.mxu0 0.0
    %1437 = vmatpush2.xpose.msra.mxu0 0.0
    %1438 = vmatprep.subr.mxu0 0.0
    %1439 = vmatpush2.xpose.msra.mxu0 0.0
    %1440 = vmatprep.subr.mxu0 0.0
    %1441 = vmatpush2.xpose.msra.mxu0 0.0
    %1442 = vmatprep.subr.mxu0 0.0
    %1443 = vmatpush2.xpose.msra.mxu0 0.0
    %1444 = vmatprep.mubr.f32.mxu0 0.0
    %v1445 = vand.u32 %v1359, 4294901760
    %v1446 = vsub.f32 %v1359, %v1445
    %v1447 = vand.u32 %v1446, 4294901760
    %v1448 = vsub.f32 %v1446, %v1447
    %v1449 = vand.u32 %v1448, 4294901760
    %1450 = vmatmul.mubr.f32.gmra.mxu0 %v1449
    %v1451 = vpop.f32.mrf.mxu0
    %v1452 = vadd.f32 %v74, %v1451
    %v1453 = vpop.f32.mrf.mxu0
    %1454 = vdwg.mxu0
    %1455 = vmatprep.subr.mxu0 0.0
    %v1456 = vand.u32 %v68, 4294901760
    %v1457 = vsub.f32 %v68, %v1456
    %v1458 = vand.u32 %v1457, 4294901760
    %v1459 = vsub.f32 %v1457, %v1458
    %v1460 = vand.u32 %v1459, 4294901760
    %1461 = vmatpush1.xpose.msra.mxu0 %v1460
    %1462 = vmatprep.subr.mxu0 0.0
    %v1463 = vand.u32 %v67, 4294901760
    %v1464 = vsub.f32 %v67, %v1463
    %v1465 = vand.u32 %v1464, 4294901760
    %v1466 = vsub.f32 %v1464, %v1465
    %v1467 = vand.u32 %v1466, 4294901760
    %1468 = vmatpush1.xpose.msra.mxu0 %v1467
    %1469 = vmatprep.subr.mxu0 0.0
    %v1470 = vand.u32 %v66, 4294901760
    %v1471 = vsub.f32 %v66, %v1470
    %v1472 = vand.u32 %v1471, 4294901760
    %v1473 = vsub.f32 %v1471, %v1472
    %v1474 = vand.u32 %v1473, 4294901760
    %1475 = vmatpush1.xpose.msra.mxu0 %v1474
    %1476 = vmatprep.subr.mxu0 0.0
    %v1477 = vand.u32 %v65, 4294901760
    %v1478 = vsub.f32 %v65, %v1477
    %v1479 = vand.u32 %v1478, 4294901760
    %v1480 = vsub.f32 %v1478, %v1479
    %v1481 = vand.u32 %v1480, 4294901760
    %1482 = vmatpush1.xpose.msra.mxu0 %v1481
    %1483 = vmatprep.subr.mxu0 0.0
    %v1484 = vand.u32 %v64, 4294901760
    %v1485 = vsub.f32 %v64, %v1484
    %v1486 = vand.u32 %v1485, 4294901760
    %v1487 = vsub.f32 %v1485, %v1486
    %v1488 = vand.u32 %v1487, 4294901760
    %1489 = vmatpush1.xpose.msra.mxu0 %v1488
    %1490 = vmatprep.subr.mxu0 0.0
    %v1491 = vand.u32 %v63, 4294901760
    %v1492 = vsub.f32 %v63, %v1491
    %v1493 = vand.u32 %v1492, 4294901760
    %v1494 = vsub.f32 %v1492, %v1493
    %v1495 = vand.u32 %v1494, 4294901760
    %1496 = vmatpush1.xpose.msra.mxu0 %v1495
    %1497 = vmatprep.subr.mxu0 0.0
    %v1498 = vand.u32 %v62, 4294901760
    %v1499 = vsub.f32 %v62, %v1498
    %v1500 = vand.u32 %v1499, 4294901760
    %v1501 = vsub.f32 %v1499, %v1500
    %v1502 = vand.u32 %v1501, 4294901760
    %1503 = vmatpush1.xpose.msra.mxu0 %v1502
    %1504 = vmatprep.subr.mxu0 0.0
    %v1505 = vand.u32 %v61, 4294901760
    %v1506 = vsub.f32 %v61, %v1505
    %v1507 = vand.u32 %v1506, 4294901760
    %v1508 = vsub.f32 %v1506, %v1507
    %v1509 = vand.u32 %v1508, 4294901760
    %1510 = vmatpush1.xpose.msra.mxu0 %v1509
    %1511 = vmatprep.subr.mxu0 0.0
    %v1512 = vand.u32 %v60, 4294901760
    %v1513 = vsub.f32 %v60, %v1512
    %v1514 = vand.u32 %v1513, 4294901760
    %v1515 = vsub.f32 %v1513, %v1514
    %v1516 = vand.u32 %v1515, 4294901760
    %1517 = vmatpush1.xpose.msra.mxu0 %v1516
    %1518 = vmatprep.subr.mxu0 0.0
    %v1519 = vand.u32 %v59, 4294901760
    %v1520 = vsub.f32 %v59, %v1519
    %v1521 = vand.u32 %v1520, 4294901760
    %v1522 = vsub.f32 %v1520, %v1521
    %v1523 = vand.u32 %v1522, 4294901760
    %1524 = vmatpush1.xpose.msra.mxu0 %v1523
    %1525 = vmatprep.subr.mxu0 0.0
    %v1526 = vand.u32 %v58, 4294901760
    %v1527 = vsub.f32 %v58, %v1526
    %v1528 = vand.u32 %v1527, 4294901760
    %v1529 = vsub.f32 %v1527, %v1528
    %v1530 = vand.u32 %v1529, 4294901760
    %1531 = vmatpush1.xpose.msra.mxu0 %v1530
    %1532 = vmatprep.subr.mxu0 0.0
    %v1533 = vand.u32 %v57, 4294901760
    %v1534 = vsub.f32 %v57, %v1533
    %v1535 = vand.u32 %v1534, 4294901760
    %v1536 = vsub.f32 %v1534, %v1535
    %v1537 = vand.u32 %v1536, 4294901760
    %1538 = vmatpush1.xpose.msra.mxu0 %v1537
    %1539 = vmatprep.subr.mxu0 0.0
    %v1540 = vand.u32 %v56, 4294901760
    %v1541 = vsub.f32 %v56, %v1540
    %v1542 = vand.u32 %v1541, 4294901760
    %v1543 = vsub.f32 %v1541, %v1542
    %v1544 = vand.u32 %v1543, 4294901760
    %1545 = vmatpush1.xpose.msra.mxu0 %v1544
    %1546 = vmatprep.subr.mxu0 0.0
    %v1547 = vand.u32 %v55, 4294901760
    %v1548 = vsub.f32 %v55, %v1547
    %v1549 = vand.u32 %v1548, 4294901760
    %v1550 = vsub.f32 %v1548, %v1549
    %v1551 = vand.u32 %v1550, 4294901760
    %1552 = vmatpush1.xpose.msra.mxu0 %v1551
    %1553 = vmatprep.subr.mxu0 0.0
    %v1554 = vand.u32 %v54, 4294901760
    %v1555 = vsub.f32 %v54, %v1554
    %v1556 = vand.u32 %v1555, 4294901760
    %v1557 = vsub.f32 %v1555, %v1556
    %v1558 = vand.u32 %v1557, 4294901760
    %1559 = vmatpush1.xpose.msra.mxu0 %v1558
    %1560 = vmatprep.subr.mxu0 0.0
    %v1561 = vand.u32 %v53, 4294901760
    %v1562 = vsub.f32 %v53, %v1561
    %v1563 = vand.u32 %v1562, 4294901760
    %v1564 = vsub.f32 %v1562, %v1563
    %v1565 = vand.u32 %v1564, 4294901760
    %1566 = vmatpush1.xpose.msra.mxu0 %v1565
    %1567 = vmatprep.subr.mxu0 0.0
    %1568 = vmatpush2.xpose.msra.mxu0 0.0
    %1569 = vmatprep.subr.mxu0 0.0
    %1570 = vmatpush2.xpose.msra.mxu0 0.0
    %1571 = vmatprep.subr.mxu0 0.0
    %1572 = vmatpush2.xpose.msra.mxu0 0.0
    %1573 = vmatprep.subr.mxu0 0.0
    %1574 = vmatpush2.xpose.msra.mxu0 0.0
    %1575 = vmatprep.subr.mxu0 0.0
    %1576 = vmatpush2.xpose.msra.mxu0 0.0
    %1577 = vmatprep.subr.mxu0 0.0
    %1578 = vmatpush2.xpose.msra.mxu0 0.0
    %1579 = vmatprep.subr.mxu0 0.0
    %1580 = vmatpush2.xpose.msra.mxu0 0.0
    %1581 = vmatprep.subr.mxu0 0.0
    %1582 = vmatpush2.xpose.msra.mxu0 0.0
    %1583 = vmatprep.subr.mxu0 0.0
    %1584 = vmatpush2.xpose.msra.mxu0 0.0
    %1585 = vmatprep.subr.mxu0 0.0
    %1586 = vmatpush2.xpose.msra.mxu0 0.0
    %1587 = vmatprep.subr.mxu0 0.0
    %1588 = vmatpush2.xpose.msra.mxu0 0.0
    %1589 = vmatprep.subr.mxu0 0.0
    %1590 = vmatpush2.xpose.msra.mxu0 0.0
    %1591 = vmatprep.subr.mxu0 0.0
    %1592 = vmatpush2.xpose.msra.mxu0 0.0
    %1593 = vmatprep.subr.mxu0 0.0
    %1594 = vmatpush2.xpose.msra.mxu0 0.0
    %1595 = vmatprep.subr.mxu0 0.0
    %1596 = vmatpush2.xpose.msra.mxu0 0.0
    %1597 = vmatprep.subr.mxu0 0.0
    %1598 = vmatpush2.xpose.msra.mxu0 0.0
    %1599 = vmatprep.mubr.f32.mxu0 0.0
    %v1600 = vand.u32 %v1359, 4294901760
    %1601 = vmatmul.mubr.f32.gmra.mxu0 %v1600
    %v1602 = vpop.f32.mrf.mxu0
    %v1603 = vadd.f32 %v1452, %v1602
    %v1604 = vpop.f32.mrf.mxu0
    %1605 = vdwg.mxu0
    %1606 = vmatprep.subr.mxu0 0.0
    %v1607 = vand.u32 %v68, 4294901760
    %v1608 = vsub.f32 %v68, %v1607
    %1609 = vmatpush1.xpose.msra.mxu0 %v1608
    %1610 = vmatprep.subr.mxu0 0.0
    %v1611 = vand.u32 %v67, 4294901760
    %v1612 = vsub.f32 %v67, %v1611
    %1613 = vmatpush1.xpose.msra.mxu0 %v1612
    %1614 = vmatprep.subr.mxu0 0.0
    %v1615 = vand.u32 %v66, 4294901760
    %v1616 = vsub.f32 %v66, %v1615
    %1617 = vmatpush1.xpose.msra.mxu0 %v1616
    %1618 = vmatprep.subr.mxu0 0.0
    %v1619 = vand.u32 %v65, 4294901760
    %v1620 = vsub.f32 %v65, %v1619
    %1621 = vmatpush1.xpose.msra.mxu0 %v1620
    %1622 = vmatprep.subr.mxu0 0.0
    %v1623 = vand.u32 %v64, 4294901760
    %v1624 = vsub.f32 %v64, %v1623
    %1625 = vmatpush1.xpose.msra.mxu0 %v1624
    %1626 = vmatprep.subr.mxu0 0.0
    %v1627 = vand.u32 %v63, 4294901760
    %v1628 = vsub.f32 %v63, %v1627
    %1629 = vmatpush1.xpose.msra.mxu0 %v1628
    %1630 = vmatprep.subr.mxu0 0.0
    %v1631 = vand.u32 %v62, 4294901760
    %v1632 = vsub.f32 %v62, %v1631
    %1633 = vmatpush1.xpose.msra.mxu0 %v1632
    %1634 = vmatprep.subr.mxu0 0.0
    %v1635 = vand.u32 %v61, 4294901760
    %v1636 = vsub.f32 %v61, %v1635
    %1637 = vmatpush1.xpose.msra.mxu0 %v1636
    %1638 = vmatprep.subr.mxu0 0.0
    %v1639 = vand.u32 %v60, 4294901760
    %v1640 = vsub.f32 %v60, %v1639
    %1641 = vmatpush1.xpose.msra.mxu0 %v1640
    %1642 = vmatprep.subr.mxu0 0.0
    %v1643 = vand.u32 %v59, 4294901760
    %v1644 = vsub.f32 %v59, %v1643
    %1645 = vmatpush1.xpose.msra.mxu0 %v1644
    %1646 = vmatprep.subr.mxu0 0.0
    %v1647 = vand.u32 %v58, 4294901760
    %v1648 = vsub.f32 %v58, %v1647
    %1649 = vmatpush1.xpose.msra.mxu0 %v1648
    %1650 = vmatprep.subr.mxu0 0.0
    %v1651 = vand.u32 %v57, 4294901760
    %v1652 = vsub.f32 %v57, %v1651
    %1653 = vmatpush1.xpose.msra.mxu0 %v1652
    %1654 = vmatprep.subr.mxu0 0.0
    %v1655 = vand.u32 %v56, 4294901760
    %v1656 = vsub.f32 %v56, %v1655
    %1657 = vmatpush1.xpose.msra.mxu0 %v1656
    %1658 = vmatprep.subr.mxu0 0.0
    %v1659 = vand.u32 %v55, 4294901760
    %v1660 = vsub.f32 %v55, %v1659
    %1661 = vmatpush1.xpose.msra.mxu0 %v1660
    %1662 = vmatprep.subr.mxu0 0.0
    %v1663 = vand.u32 %v54, 4294901760
    %v1664 = vsub.f32 %v54, %v1663
    %1665 = vmatpush1.xpose.msra.mxu0 %v1664
    %1666 = vmatprep.subr.mxu0 0.0
    %v1667 = vand.u32 %v53, 4294901760
    %v1668 = vsub.f32 %v53, %v1667
    %1669 = vmatpush1.xpose.msra.mxu0 %v1668
    %1670 = vmatprep.subr.mxu0 0.0
    %1671 = vmatpush2.xpose.msra.mxu0 0.0
    %1672 = vmatprep.subr.mxu0 0.0
    %1673 = vmatpush2.xpose.msra.mxu0 0.0
    %1674 = vmatprep.subr.mxu0 0.0
    %1675 = vmatpush2.xpose.msra.mxu0 0.0
    %1676 = vmatprep.subr.mxu0 0.0
    %1677 = vmatpush2.xpose.msra.mxu0 0.0
    %1678 = vmatprep.subr.mxu0 0.0
    %1679 = vmatpush2.xpose.msra.mxu0 0.0
    %1680 = vmatprep.subr.mxu0 0.0
    %1681 = vmatpush2.xpose.msra.mxu0 0.0
    %1682 = vmatprep.subr.mxu0 0.0
    %1683 = vmatpush2.xpose.msra.mxu0 0.0
    %1684 = vmatprep.subr.mxu0 0.0
    %1685 = vmatpush2.xpose.msra.mxu0 0.0
    %1686 = vmatprep.subr.mxu0 0.0
    %1687 = vmatpush2.xpose.msra.mxu0 0.0
    %1688 = vmatprep.subr.mxu0 0.0
    %1689 = vmatpush2.xpose.msra.mxu0 0.0
    %1690 = vmatprep.subr.mxu0 0.0
    %1691 = vmatpush2.xpose.msra.mxu0 0.0
    %1692 = vmatprep.subr.mxu0 0.0
    %1693 = vmatpush2.xpose.msra.mxu0 0.0
    %1694 = vmatprep.subr.mxu0 0.0
    %1695 = vmatpush2.xpose.msra.mxu0 0.0
    %1696 = vmatprep.subr.mxu0 0.0
    %1697 = vmatpush2.xpose.msra.mxu0 0.0
    %1698 = vmatprep.subr.mxu0 0.0
    %1699 = vmatpush2.xpose.msra.mxu0 0.0
    %1700 = vmatprep.subr.mxu0 0.0
    %1701 = vmatpush2.xpose.msra.mxu0 0.0
    %1702 = vmatprep.mubr.f32.mxu0 0.0
    %v1703 = vand.u32 %v1359, 4294901760
    %v1704 = vsub.f32 %v1359, %v1703
    %1705 = vmatmul.mubr.f32.gmra.mxu0 %v1704
    %v1706 = vpop.f32.mrf.mxu0
    %v1707 = vadd.f32 %v1603, %v1706
    %v1708 = vpop.f32.mrf.mxu0
    %1709 = vdwg.mxu0
    %1710 = vmatprep.subr.mxu0 0.0
    %v1711 = vand.u32 %v68, 4294901760
    %1712 = vmatpush1.xpose.msra.mxu0 %v1711
    %1713 = vmatprep.subr.mxu0 0.0
    %v1714 = vand.u32 %v67, 4294901760
    %1715 = vmatpush1.xpose.msra.mxu0 %v1714
    %1716 = vmatprep.subr.mxu0 0.0
    %v1717 = vand.u32 %v66, 4294901760
    %1718 = vmatpush1.xpose.msra.mxu0 %v1717
    %1719 = vmatprep.subr.mxu0 0.0
    %v1720 = vand.u32 %v65, 4294901760
    %1721 = vmatpush1.xpose.msra.mxu0 %v1720
    %1722 = vmatprep.subr.mxu0 0.0
    %v1723 = vand.u32 %v64, 4294901760
    %1724 = vmatpush1.xpose.msra.mxu0 %v1723
    %1725 = vmatprep.subr.mxu0 0.0
    %v1726 = vand.u32 %v63, 4294901760
    %1727 = vmatpush1.xpose.msra.mxu0 %v1726
    %1728 = vmatprep.subr.mxu0 0.0
    %v1729 = vand.u32 %v62, 4294901760
    %1730 = vmatpush1.xpose.msra.mxu0 %v1729
    %1731 = vmatprep.subr.mxu0 0.0
    %v1732 = vand.u32 %v61, 4294901760
    %1733 = vmatpush1.xpose.msra.mxu0 %v1732
    %1734 = vmatprep.subr.mxu0 0.0
    %v1735 = vand.u32 %v60, 4294901760
    %1736 = vmatpush1.xpose.msra.mxu0 %v1735
    %1737 = vmatprep.subr.mxu0 0.0
    %v1738 = vand.u32 %v59, 4294901760
    %1739 = vmatpush1.xpose.msra.mxu0 %v1738
    %1740 = vmatprep.subr.mxu0 0.0
    %v1741 = vand.u32 %v58, 4294901760
    %1742 = vmatpush1.xpose.msra.mxu0 %v1741
    %1743 = vmatprep.subr.mxu0 0.0
    %v1744 = vand.u32 %v57, 4294901760
    %1745 = vmatpush1.xpose.msra.mxu0 %v1744
    %1746 = vmatprep.subr.mxu0 0.0
    %v1747 = vand.u32 %v56, 4294901760
    %1748 = vmatpush1.xpose.msra.mxu0 %v1747
    %1749 = vmatprep.subr.mxu0 0.0
    %v1750 = vand.u32 %v55, 4294901760
    %1751 = vmatpush1.xpose.msra.mxu0 %v1750
    %1752 = vmatprep.subr.mxu0 0.0
    %v1753 = vand.u32 %v54, 4294901760
    %1754 = vmatpush1.xpose.msra.mxu0 %v1753
    %1755 = vmatprep.subr.mxu0 0.0
    %v1756 = vand.u32 %v53, 4294901760
    %1757 = vmatpush1.xpose.msra.mxu0 %v1756
    %1758 = vmatprep.subr.mxu0 0.0
    %1759 = vmatpush2.xpose.msra.mxu0 0.0
    %1760 = vmatprep.subr.mxu0 0.0
    %1761 = vmatpush2.xpose.msra.mxu0 0.0
    %1762 = vmatprep.subr.mxu0 0.0
    %1763 = vmatpush2.xpose.msra.mxu0 0.0
    %1764 = vmatprep.subr.mxu0 0.0
    %1765 = vmatpush2.xpose.msra.mxu0 0.0
    %1766 = vmatprep.subr.mxu0 0.0
    %1767 = vmatpush2.xpose.msra.mxu0 0.0
    %1768 = vmatprep.subr.mxu0 0.0
    %1769 = vmatpush2.xpose.msra.mxu0 0.0
    %1770 = vmatprep.subr.mxu0 0.0
    %1771 = vmatpush2.xpose.msra.mxu0 0.0
    %1772 = vmatprep.subr.mxu0 0.0
    %1773 = vmatpush2.xpose.msra.mxu0 0.0
    %1774 = vmatprep.subr.mxu0 0.0
    %1775 = vmatpush2.xpose.msra.mxu0 0.0
    %1776 = vmatprep.subr.mxu0 0.0
    %1777 = vmatpush2.xpose.msra.mxu0 0.0
    %1778 = vmatprep.subr.mxu0 0.0
    %1779 = vmatpush2.xpose.msra.mxu0 0.0
    %1780 = vmatprep.subr.mxu0 0.0
    %1781 = vmatpush2.xpose.msra.mxu0 0.0
    %1782 = vmatprep.subr.mxu0 0.0
    %1783 = vmatpush2.xpose.msra.mxu0 0.0
    %1784 = vmatprep.subr.mxu0 0.0
    %1785 = vmatpush2.xpose.msra.mxu0 0.0
    %1786 = vmatprep.subr.mxu0 0.0
    %1787 = vmatpush2.xpose.msra.mxu0 0.0
    %1788 = vmatprep.subr.mxu0 0.0
    %1789 = vmatpush2.xpose.msra.mxu0 0.0
    %1790 = vmatprep.mubr.f32.mxu0 0.0
    %v1791 = vand.u32 %v1359, 4294901760
    %v1792 = vsub.f32 %v1359, %v1791
    %v1793 = vand.u32 %v1792, 4294901760
    %1794 = vmatmul.mubr.f32.gmra.mxu0 %v1793
    %v1795 = vpop.f32.mrf.mxu0
    %v1796 = vadd.f32 %v1707, %v1795
    %v1797 = vpop.f32.mrf.mxu0
    %1798 = vdwg.mxu0
    %1799 = vmatprep.subr.mxu0 0.0
    %v1800 = vand.u32 %v68, 4294901760
    %v1801 = vsub.f32 %v68, %v1800
    %v1802 = vand.u32 %v1801, 4294901760
    %1803 = vmatpush1.xpose.msra.mxu0 %v1802
    %1804 = vmatprep.subr.mxu0 0.0
    %v1805 = vand.u32 %v67, 4294901760
    %v1806 = vsub.f32 %v67, %v1805
    %v1807 = vand.u32 %v1806, 4294901760
    %1808 = vmatpush1.xpose.msra.mxu0 %v1807
    %1809 = vmatprep.subr.mxu0 0.0
    %v1810 = vand.u32 %v66, 4294901760
    %v1811 = vsub.f32 %v66, %v1810
    %v1812 = vand.u32 %v1811, 4294901760
    %1813 = vmatpush1.xpose.msra.mxu0 %v1812
    %1814 = vmatprep.subr.mxu0 0.0
    %v1815 = vand.u32 %v65, 4294901760
    %v1816 = vsub.f32 %v65, %v1815
    %v1817 = vand.u32 %v1816, 4294901760
    %1818 = vmatpush1.xpose.msra.mxu0 %v1817
    %1819 = vmatprep.subr.mxu0 0.0
    %v1820 = vand.u32 %v64, 4294901760
    %v1821 = vsub.f32 %v64, %v1820
    %v1822 = vand.u32 %v1821, 4294901760
    %1823 = vmatpush1.xpose.msra.mxu0 %v1822
    %1824 = vmatprep.subr.mxu0 0.0
    %v1825 = vand.u32 %v63, 4294901760
    %v1826 = vsub.f32 %v63, %v1825
    %v1827 = vand.u32 %v1826, 4294901760
    %1828 = vmatpush1.xpose.msra.mxu0 %v1827
    %1829 = vmatprep.subr.mxu0 0.0
    %v1830 = vand.u32 %v62, 4294901760
    %v1831 = vsub.f32 %v62, %v1830
    %v1832 = vand.u32 %v1831, 4294901760
    %1833 = vmatpush1.xpose.msra.mxu0 %v1832
    %1834 = vmatprep.subr.mxu0 0.0
    %v1835 = vand.u32 %v61, 4294901760
    %v1836 = vsub.f32 %v61, %v1835
    %v1837 = vand.u32 %v1836, 4294901760
    %1838 = vmatpush1.xpose.msra.mxu0 %v1837
    %1839 = vmatprep.subr.mxu0 0.0
    %v1840 = vand.u32 %v60, 4294901760
    %v1841 = vsub.f32 %v60, %v1840
    %v1842 = vand.u32 %v1841, 4294901760
    %1843 = vmatpush1.xpose.msra.mxu0 %v1842
    %1844 = vmatprep.subr.mxu0 0.0
    %v1845 = vand.u32 %v59, 4294901760
    %v1846 = vsub.f32 %v59, %v1845
    %v1847 = vand.u32 %v1846, 4294901760
    %1848 = vmatpush1.xpose.msra.mxu0 %v1847
    %1849 = vmatprep.subr.mxu0 0.0
    %v1850 = vand.u32 %v58, 4294901760
    %v1851 = vsub.f32 %v58, %v1850
    %v1852 = vand.u32 %v1851, 4294901760
    %1853 = vmatpush1.xpose.msra.mxu0 %v1852
    %1854 = vmatprep.subr.mxu0 0.0
    %v1855 = vand.u32 %v57, 4294901760
    %v1856 = vsub.f32 %v57, %v1855
    %v1857 = vand.u32 %v1856, 4294901760
    %1858 = vmatpush1.xpose.msra.mxu0 %v1857
    %1859 = vmatprep.subr.mxu0 0.0
    %v1860 = vand.u32 %v56, 4294901760
    %v1861 = vsub.f32 %v56, %v1860
    %v1862 = vand.u32 %v1861, 4294901760
    %1863 = vmatpush1.xpose.msra.mxu0 %v1862
    %1864 = vmatprep.subr.mxu0 0.0
    %v1865 = vand.u32 %v55, 4294901760
    %v1866 = vsub.f32 %v55, %v1865
    %v1867 = vand.u32 %v1866, 4294901760
    %1868 = vmatpush1.xpose.msra.mxu0 %v1867
    %1869 = vmatprep.subr.mxu0 0.0
    %v1870 = vand.u32 %v54, 4294901760
    %v1871 = vsub.f32 %v54, %v1870
    %v1872 = vand.u32 %v1871, 4294901760
    %1873 = vmatpush1.xpose.msra.mxu0 %v1872
    %1874 = vmatprep.subr.mxu0 0.0
    %v1875 = vand.u32 %v53, 4294901760
    %v1876 = vsub.f32 %v53, %v1875
    %v1877 = vand.u32 %v1876, 4294901760
    %1878 = vmatpush1.xpose.msra.mxu0 %v1877
    %1879 = vmatprep.subr.mxu0 0.0
    %1880 = vmatpush2.xpose.msra.mxu0 0.0
    %1881 = vmatprep.subr.mxu0 0.0
    %1882 = vmatpush2.xpose.msra.mxu0 0.0
    %1883 = vmatprep.subr.mxu0 0.0
    %1884 = vmatpush2.xpose.msra.mxu0 0.0
    %1885 = vmatprep.subr.mxu0 0.0
    %1886 = vmatpush2.xpose.msra.mxu0 0.0
    %1887 = vmatprep.subr.mxu0 0.0
    %1888 = vmatpush2.xpose.msra.mxu0 0.0
    %1889 = vmatprep.subr.mxu0 0.0
    %1890 = vmatpush2.xpose.msra.mxu0 0.0
    %1891 = vmatprep.subr.mxu0 0.0
    %1892 = vmatpush2.xpose.msra.mxu0 0.0
    %1893 = vmatprep.subr.mxu0 0.0
    %1894 = vmatpush2.xpose.msra.mxu0 0.0
    %1895 = vmatprep.subr.mxu0 0.0
    %1896 = vmatpush2.xpose.msra.mxu0 0.0
    %1897 = vmatprep.subr.mxu0 0.0
    %1898 = vmatpush2.xpose.msra.mxu0 0.0
    %1899 = vmatprep.subr.mxu0 0.0
    %1900 = vmatpush2.xpose.msra.mxu0 0.0
    %1901 = vmatprep.subr.mxu0 0.0
    %1902 = vmatpush2.xpose.msra.mxu0 0.0
    %1903 = vmatprep.subr.mxu0 0.0
    %1904 = vmatpush2.xpose.msra.mxu0 0.0
    %1905 = vmatprep.subr.mxu0 0.0
    %1906 = vmatpush2.xpose.msra.mxu0 0.0
    %1907 = vmatprep.subr.mxu0 0.0
    %1908 = vmatpush2.xpose.msra.mxu0 0.0
    %1909 = vmatprep.subr.mxu0 0.0
    %1910 = vmatpush2.xpose.msra.mxu0 0.0
    %1911 = vmatprep.mubr.f32.mxu0 0.0
    %v1912 = vand.u32 %v1359, 4294901760
    %1913 = vmatmul.mubr.f32.gmra.mxu0 %v1912
    %v1914 = vpop.f32.mrf.mxu0
    %v1915 = vadd.f32 %v1796, %v1914
    %v1916 = vpop.f32.mrf.mxu0
    %1917 = vdwg.mxu0
    %1918 = vmatprep.subr.mxu0 0.0
    %v1919 = vand.u32 %v68, 4294901760
    %1920 = vmatpush1.xpose.msra.mxu0 %v1919
    %1921 = vmatprep.subr.mxu0 0.0
    %v1922 = vand.u32 %v67, 4294901760
    %1923 = vmatpush1.xpose.msra.mxu0 %v1922
    %1924 = vmatprep.subr.mxu0 0.0
    %v1925 = vand.u32 %v66, 4294901760
    %1926 = vmatpush1.xpose.msra.mxu0 %v1925
    %1927 = vmatprep.subr.mxu0 0.0
    %v1928 = vand.u32 %v65, 4294901760
    %1929 = vmatpush1.xpose.msra.mxu0 %v1928
    %1930 = vmatprep.subr.mxu0 0.0
    %v1931 = vand.u32 %v64, 4294901760
    %1932 = vmatpush1.xpose.msra.mxu0 %v1931
    %1933 = vmatprep.subr.mxu0 0.0
    %v1934 = vand.u32 %v63, 4294901760
    %1935 = vmatpush1.xpose.msra.mxu0 %v1934
    %1936 = vmatprep.subr.mxu0 0.0
    %v1937 = vand.u32 %v62, 4294901760
    %1938 = vmatpush1.xpose.msra.mxu0 %v1937
    %1939 = vmatprep.subr.mxu0 0.0
    %v1940 = vand.u32 %v61, 4294901760
    %1941 = vmatpush1.xpose.msra.mxu0 %v1940
    %1942 = vmatprep.subr.mxu0 0.0
    %v1943 = vand.u32 %v60, 4294901760
    %1944 = vmatpush1.xpose.msra.mxu0 %v1943
    %1945 = vmatprep.subr.mxu0 0.0
    %v1946 = vand.u32 %v59, 4294901760
    %1947 = vmatpush1.xpose.msra.mxu0 %v1946
    %1948 = vmatprep.subr.mxu0 0.0
    %v1949 = vand.u32 %v58, 4294901760
    %1950 = vmatpush1.xpose.msra.mxu0 %v1949
    %1951 = vmatprep.subr.mxu0 0.0
    %v1952 = vand.u32 %v57, 4294901760
    %1953 = vmatpush1.xpose.msra.mxu0 %v1952
    %1954 = vmatprep.subr.mxu0 0.0
    %v1955 = vand.u32 %v56, 4294901760
    %1956 = vmatpush1.xpose.msra.mxu0 %v1955
    %1957 = vmatprep.subr.mxu0 0.0
    %v1958 = vand.u32 %v55, 4294901760
    %1959 = vmatpush1.xpose.msra.mxu0 %v1958
    %1960 = vmatprep.subr.mxu0 0.0
    %v1961 = vand.u32 %v54, 4294901760
    %1962 = vmatpush1.xpose.msra.mxu0 %v1961
    %1963 = vmatprep.subr.mxu0 0.0
    %v1964 = vand.u32 %v53, 4294901760
    %1965 = vmatpush1.xpose.msra.mxu0 %v1964
    %1966 = vmatprep.subr.mxu0 0.0
    %1967 = vmatpush2.xpose.msra.mxu0 0.0
    %1968 = vmatprep.subr.mxu0 0.0
    %1969 = vmatpush2.xpose.msra.mxu0 0.0
    %1970 = vmatprep.subr.mxu0 0.0
    %1971 = vmatpush2.xpose.msra.mxu0 0.0
    %1972 = vmatprep.subr.mxu0 0.0
    %1973 = vmatpush2.xpose.msra.mxu0 0.0
    %1974 = vmatprep.subr.mxu0 0.0
    %1975 = vmatpush2.xpose.msra.mxu0 0.0
    %1976 = vmatprep.subr.mxu0 0.0
    %1977 = vmatpush2.xpose.msra.mxu0 0.0
    %1978 = vmatprep.subr.mxu0 0.0
    %1979 = vmatpush2.xpose.msra.mxu0 0.0
    %1980 = vmatprep.subr.mxu0 0.0
    %1981 = vmatpush2.xpose.msra.mxu0 0.0
    %1982 = vmatprep.subr.mxu0 0.0
    %1983 = vmatpush2.xpose.msra.mxu0 0.0
    %1984 = vmatprep.subr.mxu0 0.0
    %1985 = vmatpush2.xpose.msra.mxu0 0.0
    %1986 = vmatprep.subr.mxu0 0.0
    %1987 = vmatpush2.xpose.msra.mxu0 0.0
    %1988 = vmatprep.subr.mxu0 0.0
    %1989 = vmatpush2.xpose.msra.mxu0 0.0
    %1990 = vmatprep.subr.mxu0 0.0
    %1991 = vmatpush2.xpose.msra.mxu0 0.0
    %1992 = vmatprep.subr.mxu0 0.0
    %1993 = vmatpush2.xpose.msra.mxu0 0.0
    %1994 = vmatprep.subr.mxu0 0.0
    %1995 = vmatpush2.xpose.msra.mxu0 0.0
    %1996 = vmatprep.subr.mxu0 0.0
    %1997 = vmatpush2.xpose.msra.mxu0 0.0
    %1998 = vmatprep.mubr.f32.mxu0 0.0
    %v1999 = vand.u32 %v1359, 4294901760
    %2000 = vmatmul.mubr.f32.gmra.mxu0 %v1999
    %v2001 = vpop.f32.mrf.mxu0
    %v2002 = vadd.f32 %v1915, %v2001
    %v2003 = vpop.f32.mrf.mxu0
    %2004 = vdwg.mxu0
    %s2005 = scalar_lea.vmem %s3, 24
    %2006 = vst [vmem:[%s2005] sm:$0xff] %v2002
    %2007 = vmatprep.subr.mxu0 0.0
    %v2008 = vand.u32 %v68, 4294901760
    %2009 = vmatpush1.xpose.msra.mxu0 %v2008
    %2010 = vmatprep.subr.mxu0 0.0
    %v2011 = vand.u32 %v67, 4294901760
    %2012 = vmatpush1.xpose.msra.mxu0 %v2011
    %2013 = vmatprep.subr.mxu0 0.0
    %v2014 = vand.u32 %v66, 4294901760
    %2015 = vmatpush1.xpose.msra.mxu0 %v2014
    %2016 = vmatprep.subr.mxu0 0.0
    %v2017 = vand.u32 %v65, 4294901760
    %2018 = vmatpush1.xpose.msra.mxu0 %v2017
    %2019 = vmatprep.subr.mxu0 0.0
    %v2020 = vand.u32 %v64, 4294901760
    %2021 = vmatpush1.xpose.msra.mxu0 %v2020
    %2022 = vmatprep.subr.mxu0 0.0
    %v2023 = vand.u32 %v63, 4294901760
    %2024 = vmatpush1.xpose.msra.mxu0 %v2023
    %2025 = vmatprep.subr.mxu0 0.0
    %v2026 = vand.u32 %v62, 4294901760
    %2027 = vmatpush1.xpose.msra.mxu0 %v2026
    %2028 = vmatprep.subr.mxu0 0.0
    %v2029 = vand.u32 %v61, 4294901760
    %2030 = vmatpush1.xpose.msra.mxu0 %v2029
    %2031 = vmatprep.subr.mxu0 0.0
    %v2032 = vand.u32 %v60, 4294901760
    %2033 = vmatpush1.xpose.msra.mxu0 %v2032
    %2034 = vmatprep.subr.mxu0 0.0
    %v2035 = vand.u32 %v59, 4294901760
    %2036 = vmatpush1.xpose.msra.mxu0 %v2035
    %2037 = vmatprep.subr.mxu0 0.0
    %v2038 = vand.u32 %v58, 4294901760
    %2039 = vmatpush1.xpose.msra.mxu0 %v2038
    %2040 = vmatprep.subr.mxu0 0.0
    %v2041 = vand.u32 %v57, 4294901760
    %2042 = vmatpush1.xpose.msra.mxu0 %v2041
    %2043 = vmatprep.subr.mxu0 0.0
    %v2044 = vand.u32 %v56, 4294901760
    %2045 = vmatpush1.xpose.msra.mxu0 %v2044
    %2046 = vmatprep.subr.mxu0 0.0
    %v2047 = vand.u32 %v55, 4294901760
    %2048 = vmatpush1.xpose.msra.mxu0 %v2047
    %2049 = vmatprep.subr.mxu0 0.0
    %v2050 = vand.u32 %v54, 4294901760
    %2051 = vmatpush1.xpose.msra.mxu0 %v2050
    %2052 = vmatprep.subr.mxu0 0.0
    %v2053 = vand.u32 %v53, 4294901760
    %2054 = vmatpush1.xpose.msra.mxu0 %v2053
    %2055 = vmatprep.subr.mxu0 0.0
    %2056 = vmatpush2.xpose.msra.mxu0 0.0
    %2057 = vmatprep.subr.mxu0 0.0
    %2058 = vmatpush2.xpose.msra.mxu0 0.0
    %2059 = vmatprep.subr.mxu0 0.0
    %2060 = vmatpush2.xpose.msra.mxu0 0.0
    %2061 = vmatprep.subr.mxu0 0.0
    %2062 = vmatpush2.xpose.msra.mxu0 0.0
    %2063 = vmatprep.subr.mxu0 0.0
    %2064 = vmatpush2.xpose.msra.mxu0 0.0
    %2065 = vmatprep.subr.mxu0 0.0
    %2066 = vmatpush2.xpose.msra.mxu0 0.0
    %2067 = vmatprep.subr.mxu0 0.0
    %2068 = vmatpush2.xpose.msra.mxu0 0.0
    %2069 = vmatprep.subr.mxu0 0.0
    %2070 = vmatpush2.xpose.msra.mxu0 0.0
    %2071 = vmatprep.subr.mxu0 0.0
    %2072 = vmatpush2.xpose.msra.mxu0 0.0
    %2073 = vmatprep.subr.mxu0 0.0
    %2074 = vmatpush2.xpose.msra.mxu0 0.0
    %2075 = vmatprep.subr.mxu0 0.0
    %2076 = vmatpush2.xpose.msra.mxu0 0.0
    %2077 = vmatprep.subr.mxu0 0.0
    %2078 = vmatpush2.xpose.msra.mxu0 0.0
    %2079 = vmatprep.subr.mxu0 0.0
    %2080 = vmatpush2.xpose.msra.mxu0 0.0
    %2081 = vmatprep.subr.mxu0 0.0
    %2082 = vmatpush2.xpose.msra.mxu0 0.0
    %2083 = vmatprep.subr.mxu0 0.0
    %2084 = vmatpush2.xpose.msra.mxu0 0.0
    %2085 = vmatprep.subr.mxu0 0.0
    %2086 = vmatpush2.xpose.msra.mxu0 0.0
    %2087 = vmatprep.mubr.f32.mxu0 0.0
    %v2088 = vand.u32 %v2002, 4294901760
    %v2089 = vsub.f32 %v2002, %v2088
    %v2090 = vand.u32 %v2089, 4294901760
    %v2091 = vsub.f32 %v2089, %v2090
    %v2092 = vand.u32 %v2091, 4294901760
    %2093 = vmatmul.mubr.f32.gmra.mxu0 %v2092
    %v2094 = vpop.f32.mrf.mxu0
    %v2095 = vadd.f32 %v74, %v2094
    %v2096 = vpop.f32.mrf.mxu0
    %2097 = vdwg.mxu0
    %2098 = vmatprep.subr.mxu0 0.0
    %v2099 = vand.u32 %v68, 4294901760
    %v2100 = vsub.f32 %v68, %v2099
    %v2101 = vand.u32 %v2100, 4294901760
    %v2102 = vsub.f32 %v2100, %v2101
    %v2103 = vand.u32 %v2102, 4294901760
    %2104 = vmatpush1.xpose.msra.mxu0 %v2103
    %2105 = vmatprep.subr.mxu0 0.0
    %v2106 = vand.u32 %v67, 4294901760
    %v2107 = vsub.f32 %v67, %v2106
    %v2108 = vand.u32 %v2107, 4294901760
    %v2109 = vsub.f32 %v2107, %v2108
    %v2110 = vand.u32 %v2109, 4294901760
    %2111 = vmatpush1.xpose.msra.mxu0 %v2110
    %2112 = vmatprep.subr.mxu0 0.0
    %v2113 = vand.u32 %v66, 4294901760
    %v2114 = vsub.f32 %v66, %v2113
    %v2115 = vand.u32 %v2114, 4294901760
    %v2116 = vsub.f32 %v2114, %v2115
    %v2117 = vand.u32 %v2116, 4294901760
    %2118 = vmatpush1.xpose.msra.mxu0 %v2117
    %2119 = vmatprep.subr.mxu0 0.0
    %v2120 = vand.u32 %v65, 4294901760
    %v2121 = vsub.f32 %v65, %v2120
    %v2122 = vand.u32 %v2121, 4294901760
    %v2123 = vsub.f32 %v2121, %v2122
    %v2124 = vand.u32 %v2123, 4294901760
    %2125 = vmatpush1.xpose.msra.mxu0 %v2124
    %2126 = vmatprep.subr.mxu0 0.0
    %v2127 = vand.u32 %v64, 4294901760
    %v2128 = vsub.f32 %v64, %v2127
    %v2129 = vand.u32 %v2128, 4294901760
    %v2130 = vsub.f32 %v2128, %v2129
    %v2131 = vand.u32 %v2130, 4294901760
    %2132 = vmatpush1.xpose.msra.mxu0 %v2131
    %2133 = vmatprep.subr.mxu0 0.0
    %v2134 = vand.u32 %v63, 4294901760
    %v2135 = vsub.f32 %v63, %v2134
    %v2136 = vand.u32 %v2135, 4294901760
    %v2137 = vsub.f32 %v2135, %v2136
    %v2138 = vand.u32 %v2137, 4294901760
    %2139 = vmatpush1.xpose.msra.mxu0 %v2138
    %2140 = vmatprep.subr.mxu0 0.0
    %v2141 = vand.u32 %v62, 4294901760
    %v2142 = vsub.f32 %v62, %v2141
    %v2143 = vand.u32 %v2142, 4294901760
    %v2144 = vsub.f32 %v2142, %v2143
    %v2145 = vand.u32 %v2144, 4294901760
    %2146 = vmatpush1.xpose.msra.mxu0 %v2145
    %2147 = vmatprep.subr.mxu0 0.0
    %v2148 = vand.u32 %v61, 4294901760
    %v2149 = vsub.f32 %v61, %v2148
    %v2150 = vand.u32 %v2149, 4294901760
    %v2151 = vsub.f32 %v2149, %v2150
    %v2152 = vand.u32 %v2151, 4294901760
    %2153 = vmatpush1.xpose.msra.mxu0 %v2152
    %2154 = vmatprep.subr.mxu0 0.0
    %v2155 = vand.u32 %v60, 4294901760
    %v2156 = vsub.f32 %v60, %v2155
    %v2157 = vand.u32 %v2156, 4294901760
    %v2158 = vsub.f32 %v2156, %v2157
    %v2159 = vand.u32 %v2158, 4294901760
    %2160 = vmatpush1.xpose.msra.mxu0 %v2159
    %2161 = vmatprep.subr.mxu0 0.0
    %v2162 = vand.u32 %v59, 4294901760
    %v2163 = vsub.f32 %v59, %v2162
    %v2164 = vand.u32 %v2163, 4294901760
    %v2165 = vsub.f32 %v2163, %v2164
    %v2166 = vand.u32 %v2165, 4294901760
    %2167 = vmatpush1.xpose.msra.mxu0 %v2166
    %2168 = vmatprep.subr.mxu0 0.0
    %v2169 = vand.u32 %v58, 4294901760
    %v2170 = vsub.f32 %v58, %v2169
    %v2171 = vand.u32 %v2170, 4294901760
    %v2172 = vsub.f32 %v2170, %v2171
    %v2173 = vand.u32 %v2172, 4294901760
    %2174 = vmatpush1.xpose.msra.mxu0 %v2173
    %2175 = vmatprep.subr.mxu0 0.0
    %v2176 = vand.u32 %v57, 4294901760
    %v2177 = vsub.f32 %v57, %v2176
    %v2178 = vand.u32 %v2177, 4294901760
    %v2179 = vsub.f32 %v2177, %v2178
    %v2180 = vand.u32 %v2179, 4294901760
    %2181 = vmatpush1.xpose.msra.mxu0 %v2180
    %2182 = vmatprep.subr.mxu0 0.0
    %v2183 = vand.u32 %v56, 4294901760
    %v2184 = vsub.f32 %v56, %v2183
    %v2185 = vand.u32 %v2184, 4294901760
    %v2186 = vsub.f32 %v2184, %v2185
    %v2187 = vand.u32 %v2186, 4294901760
    %2188 = vmatpush1.xpose.msra.mxu0 %v2187
    %2189 = vmatprep.subr.mxu0 0.0
    %v2190 = vand.u32 %v55, 4294901760
    %v2191 = vsub.f32 %v55, %v2190
    %v2192 = vand.u32 %v2191, 4294901760
    %v2193 = vsub.f32 %v2191, %v2192
    %v2194 = vand.u32 %v2193, 4294901760
    %2195 = vmatpush1.xpose.msra.mxu0 %v2194
    %2196 = vmatprep.subr.mxu0 0.0
    %v2197 = vand.u32 %v54, 4294901760
    %v2198 = vsub.f32 %v54, %v2197
    %v2199 = vand.u32 %v2198, 4294901760
    %v2200 = vsub.f32 %v2198, %v2199
    %v2201 = vand.u32 %v2200, 4294901760
    %2202 = vmatpush1.xpose.msra.mxu0 %v2201
    %2203 = vmatprep.subr.mxu0 0.0
    %v2204 = vand.u32 %v53, 4294901760
    %v2205 = vsub.f32 %v53, %v2204
    %v2206 = vand.u32 %v2205, 4294901760
    %v2207 = vsub.f32 %v2205, %v2206
    %v2208 = vand.u32 %v2207, 4294901760
    %2209 = vmatpush1.xpose.msra.mxu0 %v2208
    %2210 = vmatprep.subr.mxu0 0.0
    %2211 = vmatpush2.xpose.msra.mxu0 0.0
    %2212 = vmatprep.subr.mxu0 0.0
    %2213 = vmatpush2.xpose.msra.mxu0 0.0
    %2214 = vmatprep.subr.mxu0 0.0
    %2215 = vmatpush2.xpose.msra.mxu0 0.0
    %2216 = vmatprep.subr.mxu0 0.0
    %2217 = vmatpush2.xpose.msra.mxu0 0.0
    %2218 = vmatprep.subr.mxu0 0.0
    %2219 = vmatpush2.xpose.msra.mxu0 0.0
    %2220 = vmatprep.subr.mxu0 0.0
    %2221 = vmatpush2.xpose.msra.mxu0 0.0
    %2222 = vmatprep.subr.mxu0 0.0
    %2223 = vmatpush2.xpose.msra.mxu0 0.0
    %2224 = vmatprep.subr.mxu0 0.0
    %2225 = vmatpush2.xpose.msra.mxu0 0.0
    %2226 = vmatprep.subr.mxu0 0.0
    %2227 = vmatpush2.xpose.msra.mxu0 0.0
    %2228 = vmatprep.subr.mxu0 0.0
    %2229 = vmatpush2.xpose.msra.mxu0 0.0
    %2230 = vmatprep.subr.mxu0 0.0
    %2231 = vmatpush2.xpose.msra.mxu0 0.0
    %2232 = vmatprep.subr.mxu0 0.0
    %2233 = vmatpush2.xpose.msra.mxu0 0.0
    %2234 = vmatprep.subr.mxu0 0.0
    %2235 = vmatpush2.xpose.msra.mxu0 0.0
    %2236 = vmatprep.subr.mxu0 0.0
    %2237 = vmatpush2.xpose.msra.mxu0 0.0
    %2238 = vmatprep.subr.mxu0 0.0
    %2239 = vmatpush2.xpose.msra.mxu0 0.0
    %2240 = vmatprep.subr.mxu0 0.0
    %2241 = vmatpush2.xpose.msra.mxu0 0.0
    %2242 = vmatprep.mubr.f32.mxu0 0.0
    %v2243 = vand.u32 %v2002, 4294901760
    %2244 = vmatmul.mubr.f32.gmra.mxu0 %v2243
    %v2245 = vpop.f32.mrf.mxu0
    %v2246 = vadd.f32 %v2095, %v2245
    %v2247 = vpop.f32.mrf.mxu0
    %2248 = vdwg.mxu0
    %2249 = vmatprep.subr.mxu0 0.0
    %v2250 = vand.u32 %v68, 4294901760
    %v2251 = vsub.f32 %v68, %v2250
    %2252 = vmatpush1.xpose.msra.mxu0 %v2251
    %2253 = vmatprep.subr.mxu0 0.0
    %v2254 = vand.u32 %v67, 4294901760
    %v2255 = vsub.f32 %v67, %v2254
    %2256 = vmatpush1.xpose.msra.mxu0 %v2255
    %2257 = vmatprep.subr.mxu0 0.0
    %v2258 = vand.u32 %v66, 4294901760
    %v2259 = vsub.f32 %v66, %v2258
    %2260 = vmatpush1.xpose.msra.mxu0 %v2259
    %2261 = vmatprep.subr.mxu0 0.0
    %v2262 = vand.u32 %v65, 4294901760
    %v2263 = vsub.f32 %v65, %v2262
    %2264 = vmatpush1.xpose.msra.mxu0 %v2263
    %2265 = vmatprep.subr.mxu0 0.0
    %v2266 = vand.u32 %v64, 4294901760
    %v2267 = vsub.f32 %v64, %v2266
    %2268 = vmatpush1.xpose.msra.mxu0 %v2267
    %2269 = vmatprep.subr.mxu0 0.0
    %v2270 = vand.u32 %v63, 4294901760
    %v2271 = vsub.f32 %v63, %v2270
    %2272 = vmatpush1.xpose.msra.mxu0 %v2271
    %2273 = vmatprep.subr.mxu0 0.0
    %v2274 = vand.u32 %v62, 4294901760
    %v2275 = vsub.f32 %v62, %v2274
    %2276 = vmatpush1.xpose.msra.mxu0 %v2275
    %2277 = vmatprep.subr.mxu0 0.0
    %v2278 = vand.u32 %v61, 4294901760
    %v2279 = vsub.f32 %v61, %v2278
    %2280 = vmatpush1.xpose.msra.mxu0 %v2279
    %2281 = vmatprep.subr.mxu0 0.0
    %v2282 = vand.u32 %v60, 4294901760
    %v2283 = vsub.f32 %v60, %v2282
    %2284 = vmatpush1.xpose.msra.mxu0 %v2283
    %2285 = vmatprep.subr.mxu0 0.0
    %v2286 = vand.u32 %v59, 4294901760
    %v2287 = vsub.f32 %v59, %v2286
    %2288 = vmatpush1.xpose.msra.mxu0 %v2287
    %2289 = vmatprep.subr.mxu0 0.0
    %v2290 = vand.u32 %v58, 4294901760
    %v2291 = vsub.f32 %v58, %v2290
    %2292 = vmatpush1.xpose.msra.mxu0 %v2291
    %2293 = vmatprep.subr.mxu0 0.0
    %v2294 = vand.u32 %v57, 4294901760
    %v2295 = vsub.f32 %v57, %v2294
    %2296 = vmatpush1.xpose.msra.mxu0 %v2295
    %2297 = vmatprep.subr.mxu0 0.0
    %v2298 = vand.u32 %v56, 4294901760
    %v2299 = vsub.f32 %v56, %v2298
    %2300 = vmatpush1.xpose.msra.mxu0 %v2299
    %2301 = vmatprep.subr.mxu0 0.0
    %v2302 = vand.u32 %v55, 4294901760
    %v2303 = vsub.f32 %v55, %v2302
    %2304 = vmatpush1.xpose.msra.mxu0 %v2303
    %2305 = vmatprep.subr.mxu0 0.0
    %v2306 = vand.u32 %v54, 4294901760
    %v2307 = vsub.f32 %v54, %v2306
    %2308 = vmatpush1.xpose.msra.mxu0 %v2307
    %2309 = vmatprep.subr.mxu0 0.0
    %v2310 = vand.u32 %v53, 4294901760
    %v2311 = vsub.f32 %v53, %v2310
    %2312 = vmatpush1.xpose.msra.mxu0 %v2311
    %2313 = vmatprep.subr.mxu0 0.0
    %2314 = vmatpush2.xpose.msra.mxu0 0.0
    %2315 = vmatprep.subr.mxu0 0.0
    %2316 = vmatpush2.xpose.msra.mxu0 0.0
    %2317 = vmatprep.subr.mxu0 0.0
    %2318 = vmatpush2.xpose.msra.mxu0 0.0
    %2319 = vmatprep.subr.mxu0 0.0
    %2320 = vmatpush2.xpose.msra.mxu0 0.0
    %2321 = vmatprep.subr.mxu0 0.0
    %2322 = vmatpush2.xpose.msra.mxu0 0.0
    %2323 = vmatprep.subr.mxu0 0.0
    %2324 = vmatpush2.xpose.msra.mxu0 0.0
    %2325 = vmatprep.subr.mxu0 0.0
    %2326 = vmatpush2.xpose.msra.mxu0 0.0
    %2327 = vmatprep.subr.mxu0 0.0
    %2328 = vmatpush2.xpose.msra.mxu0 0.0
    %2329 = vmatprep.subr.mxu0 0.0
    %2330 = vmatpush2.xpose.msra.mxu0 0.0
    %2331 = vmatprep.subr.mxu0 0.0
    %2332 = vmatpush2.xpose.msra.mxu0 0.0
    %2333 = vmatprep.subr.mxu0 0.0
    %2334 = vmatpush2.xpose.msra.mxu0 0.0
    %2335 = vmatprep.subr.mxu0 0.0
    %2336 = vmatpush2.xpose.msra.mxu0 0.0
    %2337 = vmatprep.subr.mxu0 0.0
    %2338 = vmatpush2.xpose.msra.mxu0 0.0
    %2339 = vmatprep.subr.mxu0 0.0
    %2340 = vmatpush2.xpose.msra.mxu0 0.0
    %2341 = vmatprep.subr.mxu0 0.0
    %2342 = vmatpush2.xpose.msra.mxu0 0.0
    %2343 = vmatprep.subr.mxu0 0.0
    %2344 = vmatpush2.xpose.msra.mxu0 0.0
    %2345 = vmatprep.mubr.f32.mxu0 0.0
    %v2346 = vand.u32 %v2002, 4294901760
    %v2347 = vsub.f32 %v2002, %v2346
    %2348 = vmatmul.mubr.f32.gmra.mxu0 %v2347
    %v2349 = vpop.f32.mrf.mxu0
    %v2350 = vadd.f32 %v2246, %v2349
    %v2351 = vpop.f32.mrf.mxu0
    %2352 = vdwg.mxu0
    %2353 = vmatprep.subr.mxu0 0.0
    %v2354 = vand.u32 %v68, 4294901760
    %2355 = vmatpush1.xpose.msra.mxu0 %v2354
    %2356 = vmatprep.subr.mxu0 0.0
    %v2357 = vand.u32 %v67, 4294901760
    %2358 = vmatpush1.xpose.msra.mxu0 %v2357
    %2359 = vmatprep.subr.mxu0 0.0
    %v2360 = vand.u32 %v66, 4294901760
    %2361 = vmatpush1.xpose.msra.mxu0 %v2360
    %2362 = vmatprep.subr.mxu0 0.0
    %v2363 = vand.u32 %v65, 4294901760
    %2364 = vmatpush1.xpose.msra.mxu0 %v2363
    %2365 = vmatprep.subr.mxu0 0.0
    %v2366 = vand.u32 %v64, 4294901760
    %2367 = vmatpush1.xpose.msra.mxu0 %v2366
    %2368 = vmatprep.subr.mxu0 0.0
    %v2369 = vand.u32 %v63, 4294901760
    %2370 = vmatpush1.xpose.msra.mxu0 %v2369
    %2371 = vmatprep.subr.mxu0 0.0
    %v2372 = vand.u32 %v62, 4294901760
    %2373 = vmatpush1.xpose.msra.mxu0 %v2372
    %2374 = vmatprep.subr.mxu0 0.0
    %v2375 = vand.u32 %v61, 4294901760
    %2376 = vmatpush1.xpose.msra.mxu0 %v2375
    %2377 = vmatprep.subr.mxu0 0.0
    %v2378 = vand.u32 %v60, 4294901760
    %2379 = vmatpush1.xpose.msra.mxu0 %v2378
    %2380 = vmatprep.subr.mxu0 0.0
    %v2381 = vand.u32 %v59, 4294901760
    %2382 = vmatpush1.xpose.msra.mxu0 %v2381
    %2383 = vmatprep.subr.mxu0 0.0
    %v2384 = vand.u32 %v58, 4294901760
    %2385 = vmatpush1.xpose.msra.mxu0 %v2384
    %2386 = vmatprep.subr.mxu0 0.0
    %v2387 = vand.u32 %v57, 4294901760
    %2388 = vmatpush1.xpose.msra.mxu0 %v2387
    %2389 = vmatprep.subr.mxu0 0.0
    %v2390 = vand.u32 %v56, 4294901760
    %2391 = vmatpush1.xpose.msra.mxu0 %v2390
    %2392 = vmatprep.subr.mxu0 0.0
    %v2393 = vand.u32 %v55, 4294901760
    %2394 = vmatpush1.xpose.msra.mxu0 %v2393
    %2395 = vmatprep.subr.mxu0 0.0
    %v2396 = vand.u32 %v54, 4294901760
    %2397 = vmatpush1.xpose.msra.mxu0 %v2396
    %2398 = vmatprep.subr.mxu0 0.0
    %v2399 = vand.u32 %v53, 4294901760
    %2400 = vmatpush1.xpose.msra.mxu0 %v2399
    %2401 = vmatprep.subr.mxu0 0.0
    %2402 = vmatpush2.xpose.msra.mxu0 0.0
    %2403 = vmatprep.subr.mxu0 0.0
    %2404 = vmatpush2.xpose.msra.mxu0 0.0
    %2405 = vmatprep.subr.mxu0 0.0
    %2406 = vmatpush2.xpose.msra.mxu0 0.0
    %2407 = vmatprep.subr.mxu0 0.0
    %2408 = vmatpush2.xpose.msra.mxu0 0.0
    %2409 = vmatprep.subr.mxu0 0.0
    %2410 = vmatpush2.xpose.msra.mxu0 0.0
    %2411 = vmatprep.subr.mxu0 0.0
    %2412 = vmatpush2.xpose.msra.mxu0 0.0
    %2413 = vmatprep.subr.mxu0 0.0
    %2414 = vmatpush2.xpose.msra.mxu0 0.0
    %2415 = vmatprep.subr.mxu0 0.0
    %2416 = vmatpush2.xpose.msra.mxu0 0.0
    %2417 = vmatprep.subr.mxu0 0.0
    %2418 = vmatpush2.xpose.msra.mxu0 0.0
    %2419 = vmatprep.subr.mxu0 0.0
    %2420 = vmatpush2.xpose.msra.mxu0 0.0
    %2421 = vmatprep.subr.mxu0 0.0
    %2422 = vmatpush2.xpose.msra.mxu0 0.0
    %2423 = vmatprep.subr.mxu0 0.0
    %2424 = vmatpush2.xpose.msra.mxu0 0.0
    %2425 = vmatprep.subr.mxu0 0.0
    %2426 = vmatpush2.xpose.msra.mxu0 0.0
    %2427 = vmatprep.subr.mxu0 0.0
    %2428 = vmatpush2.xpose.msra.mxu0 0.0
    %2429 = vmatprep.subr.mxu0 0.0
    %2430 = vmatpush2.xpose.msra.mxu0 0.0
    %2431 = vmatprep.subr.mxu0 0.0
    %2432 = vmatpush2.xpose.msra.mxu0 0.0
    %2433 = vmatprep.mubr.f32.mxu0 0.0
    %v2434 = vand.u32 %v2002, 4294901760
    %v2435 = vsub.f32 %v2002, %v2434
    %v2436 = vand.u32 %v2435, 4294901760
    %2437 = vmatmul.mubr.f32.gmra.mxu0 %v2436
    %v2438 = vpop.f32.mrf.mxu0
    %v2439 = vadd.f32 %v2350, %v2438
    %v2440 = vpop.f32.mrf.mxu0
    %2441 = vdwg.mxu0
    %2442 = vmatprep.subr.mxu0 0.0
    %v2443 = vand.u32 %v68, 4294901760
    %v2444 = vsub.f32 %v68, %v2443
    %v2445 = vand.u32 %v2444, 4294901760
    %2446 = vmatpush1.xpose.msra.mxu0 %v2445
    %2447 = vmatprep.subr.mxu0 0.0
    %v2448 = vand.u32 %v67, 4294901760
    %v2449 = vsub.f32 %v67, %v2448
    %v2450 = vand.u32 %v2449, 4294901760
    %2451 = vmatpush1.xpose.msra.mxu0 %v2450
    %2452 = vmatprep.subr.mxu0 0.0
    %v2453 = vand.u32 %v66, 4294901760
    %v2454 = vsub.f32 %v66, %v2453
    %v2455 = vand.u32 %v2454, 4294901760
    %2456 = vmatpush1.xpose.msra.mxu0 %v2455
    %2457 = vmatprep.subr.mxu0 0.0
    %v2458 = vand.u32 %v65, 4294901760
    %v2459 = vsub.f32 %v65, %v2458
    %v2460 = vand.u32 %v2459, 4294901760
    %2461 = vmatpush1.xpose.msra.mxu0 %v2460
    %2462 = vmatprep.subr.mxu0 0.0
    %v2463 = vand.u32 %v64, 4294901760
    %v2464 = vsub.f32 %v64, %v2463
    %v2465 = vand.u32 %v2464, 4294901760
    %2466 = vmatpush1.xpose.msra.mxu0 %v2465
    %2467 = vmatprep.subr.mxu0 0.0
    %v2468 = vand.u32 %v63, 4294901760
    %v2469 = vsub.f32 %v63, %v2468
    %v2470 = vand.u32 %v2469, 4294901760
    %2471 = vmatpush1.xpose.msra.mxu0 %v2470
    %2472 = vmatprep.subr.mxu0 0.0
    %v2473 = vand.u32 %v62, 4294901760
    %v2474 = vsub.f32 %v62, %v2473
    %v2475 = vand.u32 %v2474, 4294901760
    %2476 = vmatpush1.xpose.msra.mxu0 %v2475
    %2477 = vmatprep.subr.mxu0 0.0
    %v2478 = vand.u32 %v61, 4294901760
    %v2479 = vsub.f32 %v61, %v2478
    %v2480 = vand.u32 %v2479, 4294901760
    %2481 = vmatpush1.xpose.msra.mxu0 %v2480
    %2482 = vmatprep.subr.mxu0 0.0
    %v2483 = vand.u32 %v60, 4294901760
    %v2484 = vsub.f32 %v60, %v2483
    %v2485 = vand.u32 %v2484, 4294901760
    %2486 = vmatpush1.xpose.msra.mxu0 %v2485
    %2487 = vmatprep.subr.mxu0 0.0
    %v2488 = vand.u32 %v59, 4294901760
    %v2489 = vsub.f32 %v59, %v2488
    %v2490 = vand.u32 %v2489, 4294901760
    %2491 = vmatpush1.xpose.msra.mxu0 %v2490
    %2492 = vmatprep.subr.mxu0 0.0
    %v2493 = vand.u32 %v58, 4294901760
    %v2494 = vsub.f32 %v58, %v2493
    %v2495 = vand.u32 %v2494, 4294901760
    %2496 = vmatpush1.xpose.msra.mxu0 %v2495
    %2497 = vmatprep.subr.mxu0 0.0
    %v2498 = vand.u32 %v57, 4294901760
    %v2499 = vsub.f32 %v57, %v2498
    %v2500 = vand.u32 %v2499, 4294901760
    %2501 = vmatpush1.xpose.msra.mxu0 %v2500
    %2502 = vmatprep.subr.mxu0 0.0
    %v2503 = vand.u32 %v56, 4294901760
    %v2504 = vsub.f32 %v56, %v2503
    %v2505 = vand.u32 %v2504, 4294901760
    %2506 = vmatpush1.xpose.msra.mxu0 %v2505
    %2507 = vmatprep.subr.mxu0 0.0
    %v2508 = vand.u32 %v55, 4294901760
    %v2509 = vsub.f32 %v55, %v2508
    %v2510 = vand.u32 %v2509, 4294901760
    %2511 = vmatpush1.xpose.msra.mxu0 %v2510
    %2512 = vmatprep.subr.mxu0 0.0
    %v2513 = vand.u32 %v54, 4294901760
    %v2514 = vsub.f32 %v54, %v2513
    %v2515 = vand.u32 %v2514, 4294901760
    %2516 = vmatpush1.xpose.msra.mxu0 %v2515
    %2517 = vmatprep.subr.mxu0 0.0
    %v2518 = vand.u32 %v53, 4294901760
    %v2519 = vsub.f32 %v53, %v2518
    %v2520 = vand.u32 %v2519, 4294901760
    %2521 = vmatpush1.xpose.msra.mxu0 %v2520
    %2522 = vmatprep.subr.mxu0 0.0
    %2523 = vmatpush2.xpose.msra.mxu0 0.0
    %2524 = vmatprep.subr.mxu0 0.0
    %2525 = vmatpush2.xpose.msra.mxu0 0.0
    %2526 = vmatprep.subr.mxu0 0.0
    %2527 = vmatpush2.xpose.msra.mxu0 0.0
    %2528 = vmatprep.subr.mxu0 0.0
    %2529 = vmatpush2.xpose.msra.mxu0 0.0
    %2530 = vmatprep.subr.mxu0 0.0
    %2531 = vmatpush2.xpose.msra.mxu0 0.0
    %2532 = vmatprep.subr.mxu0 0.0
    %2533 = vmatpush2.xpose.msra.mxu0 0.0
    %2534 = vmatprep.subr.mxu0 0.0
    %2535 = vmatpush2.xpose.msra.mxu0 0.0
    %2536 = vmatprep.subr.mxu0 0.0
    %2537 = vmatpush2.xpose.msra.mxu0 0.0
    %2538 = vmatprep.subr.mxu0 0.0
    %2539 = vmatpush2.xpose.msra.mxu0 0.0
    %2540 = vmatprep.subr.mxu0 0.0
    %2541 = vmatpush2.xpose.msra.mxu0 0.0
    %2542 = vmatprep.subr.mxu0 0.0
    %2543 = vmatpush2.xpose.msra.mxu0 0.0
    %2544 = vmatprep.subr.mxu0 0.0
    %2545 = vmatpush2.xpose.msra.mxu0 0.0
    %2546 = vmatprep.subr.mxu0 0.0
    %2547 = vmatpush2.xpose.msra.mxu0 0.0
    %2548 = vmatprep.subr.mxu0 0.0
    %2549 = vmatpush2.xpose.msra.mxu0 0.0
    %2550 = vmatprep.subr.mxu0 0.0
    %2551 = vmatpush2.xpose.msra.mxu0 0.0
    %2552 = vmatprep.subr.mxu0 0.0
    %2553 = vmatpush2.xpose.msra.mxu0 0.0
    %2554 = vmatprep.mubr.f32.mxu0 0.0
    %v2555 = vand.u32 %v2002, 4294901760
    %2556 = vmatmul.mubr.f32.gmra.mxu0 %v2555
    %v2557 = vpop.f32.mrf.mxu0
    %v2558 = vadd.f32 %v2439, %v2557
    %v2559 = vpop.f32.mrf.mxu0
    %2560 = vdwg.mxu0
    %2561 = vmatprep.subr.mxu0 0.0
    %v2562 = vand.u32 %v68, 4294901760
    %2563 = vmatpush1.xpose.msra.mxu0 %v2562
    %2564 = vmatprep.subr.mxu0 0.0
    %v2565 = vand.u32 %v67, 4294901760
    %2566 = vmatpush1.xpose.msra.mxu0 %v2565
    %2567 = vmatprep.subr.mxu0 0.0
    %v2568 = vand.u32 %v66, 4294901760
    %2569 = vmatpush1.xpose.msra.mxu0 %v2568
    %2570 = vmatprep.subr.mxu0 0.0
    %v2571 = vand.u32 %v65, 4294901760
    %2572 = vmatpush1.xpose.msra.mxu0 %v2571
    %2573 = vmatprep.subr.mxu0 0.0
    %v2574 = vand.u32 %v64, 4294901760
    %2575 = vmatpush1.xpose.msra.mxu0 %v2574
    %2576 = vmatprep.subr.mxu0 0.0
    %v2577 = vand.u32 %v63, 4294901760
    %2578 = vmatpush1.xpose.msra.mxu0 %v2577
    %2579 = vmatprep.subr.mxu0 0.0
    %v2580 = vand.u32 %v62, 4294901760
    %2581 = vmatpush1.xpose.msra.mxu0 %v2580
    %2582 = vmatprep.subr.mxu0 0.0
    %v2583 = vand.u32 %v61, 4294901760
    %2584 = vmatpush1.xpose.msra.mxu0 %v2583
    %2585 = vmatprep.subr.mxu0 0.0
    %v2586 = vand.u32 %v60, 4294901760
    %2587 = vmatpush1.xpose.msra.mxu0 %v2586
    %2588 = vmatprep.subr.mxu0 0.0
    %v2589 = vand.u32 %v59, 4294901760
    %2590 = vmatpush1.xpose.msra.mxu0 %v2589
    %2591 = vmatprep.subr.mxu0 0.0
    %v2592 = vand.u32 %v58, 4294901760
    %2593 = vmatpush1.xpose.msra.mxu0 %v2592
    %2594 = vmatprep.subr.mxu0 0.0
    %v2595 = vand.u32 %v57, 4294901760
    %2596 = vmatpush1.xpose.msra.mxu0 %v2595
    %2597 = vmatprep.subr.mxu0 0.0
    %v2598 = vand.u32 %v56, 4294901760
    %2599 = vmatpush1.xpose.msra.mxu0 %v2598
    %2600 = vmatprep.subr.mxu0 0.0
    %v2601 = vand.u32 %v55, 4294901760
    %2602 = vmatpush1.xpose.msra.mxu0 %v2601
    %2603 = vmatprep.subr.mxu0 0.0
    %v2604 = vand.u32 %v54, 4294901760
    %2605 = vmatpush1.xpose.msra.mxu0 %v2604
    %2606 = vmatprep.subr.mxu0 0.0
    %v2607 = vand.u32 %v53, 4294901760
    %2608 = vmatpush1.xpose.msra.mxu0 %v2607
    %2609 = vmatprep.subr.mxu0 0.0
    %2610 = vmatpush2.xpose.msra.mxu0 0.0
    %2611 = vmatprep.subr.mxu0 0.0
    %2612 = vmatpush2.xpose.msra.mxu0 0.0
    %2613 = vmatprep.subr.mxu0 0.0
    %2614 = vmatpush2.xpose.msra.mxu0 0.0
    %2615 = vmatprep.subr.mxu0 0.0
    %2616 = vmatpush2.xpose.msra.mxu0 0.0
    %2617 = vmatprep.subr.mxu0 0.0
    %2618 = vmatpush2.xpose.msra.mxu0 0.0
    %2619 = vmatprep.subr.mxu0 0.0
    %2620 = vmatpush2.xpose.msra.mxu0 0.0
    %2621 = vmatprep.subr.mxu0 0.0
    %2622 = vmatpush2.xpose.msra.mxu0 0.0
    %2623 = vmatprep.subr.mxu0 0.0
    %2624 = vmatpush2.xpose.msra.mxu0 0.0
    %2625 = vmatprep.subr.mxu0 0.0
    %2626 = vmatpush2.xpose.msra.mxu0 0.0
    %2627 = vmatprep.subr.mxu0 0.0
    %2628 = vmatpush2.xpose.msra.mxu0 0.0
    %2629 = vmatprep.subr.mxu0 0.0
    %2630 = vmatpush2.xpose.msra.mxu0 0.0
    %2631 = vmatprep.subr.mxu0 0.0
    %2632 = vmatpush2.xpose.msra.mxu0 0.0
    %2633 = vmatprep.subr.mxu0 0.0
    %2634 = vmatpush2.xpose.msra.mxu0 0.0
    %2635 = vmatprep.subr.mxu0 0.0
    %2636 = vmatpush2.xpose.msra.mxu0 0.0
    %2637 = vmatprep.subr.mxu0 0.0
    %2638 = vmatpush2.xpose.msra.mxu0 0.0
    %2639 = vmatprep.subr.mxu0 0.0
    %2640 = vmatpush2.xpose.msra.mxu0 0.0
    %2641 = vmatprep.mubr.f32.mxu0 0.0
    %v2642 = vand.u32 %v2002, 4294901760
    %2643 = vmatmul.mubr.f32.gmra.mxu0 %v2642
    %v2644 = vpop.f32.mrf.mxu0
    %v2645 = vadd.f32 %v2558, %v2644
    %v2646 = vpop.f32.mrf.mxu0
    %2647 = vdwg.mxu0
    %s2648 = scalar_lea.vmem %s3, 32
    %2649 = vst [vmem:[%s2648] sm:$0xff] %v2645
    %2650 = vmatprep.subr.mxu0 0.0
    %v2651 = vand.u32 %v68, 4294901760
    %2652 = vmatpush1.xpose.msra.mxu0 %v2651
    %2653 = vmatprep.subr.mxu0 0.0
    %v2654 = vand.u32 %v67, 4294901760
    %2655 = vmatpush1.xpose.msra.mxu0 %v2654
    %2656 = vmatprep.subr.mxu0 0.0
    %v2657 = vand.u32 %v66, 4294901760
    %2658 = vmatpush1.xpose.msra.mxu0 %v2657
    %2659 = vmatprep.subr.mxu0 0.0
    %v2660 = vand.u32 %v65, 4294901760
    %2661 = vmatpush1.xpose.msra.mxu0 %v2660
    %2662 = vmatprep.subr.mxu0 0.0
    %v2663 = vand.u32 %v64, 4294901760
    %2664 = vmatpush1.xpose.msra.mxu0 %v2663
    %2665 = vmatprep.subr.mxu0 0.0
    %v2666 = vand.u32 %v63, 4294901760
    %2667 = vmatpush1.xpose.msra.mxu0 %v2666
    %2668 = vmatprep.subr.mxu0 0.0
    %v2669 = vand.u32 %v62, 4294901760
    %2670 = vmatpush1.xpose.msra.mxu0 %v2669
    %2671 = vmatprep.subr.mxu0 0.0
    %v2672 = vand.u32 %v61, 4294901760
    %2673 = vmatpush1.xpose.msra.mxu0 %v2672
    %2674 = vmatprep.subr.mxu0 0.0
    %v2675 = vand.u32 %v60, 4294901760
    %2676 = vmatpush1.xpose.msra.mxu0 %v2675
    %2677 = vmatprep.subr.mxu0 0.0
    %v2678 = vand.u32 %v59, 4294901760
    %2679 = vmatpush1.xpose.msra.mxu0 %v2678
    %2680 = vmatprep.subr.mxu0 0.0
    %v2681 = vand.u32 %v58, 4294901760
    %2682 = vmatpush1.xpose.msra.mxu0 %v2681
    %2683 = vmatprep.subr.mxu0 0.0
    %v2684 = vand.u32 %v57, 4294901760
    %2685 = vmatpush1.xpose.msra.mxu0 %v2684
    %2686 = vmatprep.subr.mxu0 0.0
    %v2687 = vand.u32 %v56, 4294901760
    %2688 = vmatpush1.xpose.msra.mxu0 %v2687
    %2689 = vmatprep.subr.mxu0 0.0
    %v2690 = vand.u32 %v55, 4294901760
    %2691 = vmatpush1.xpose.msra.mxu0 %v2690
    %2692 = vmatprep.subr.mxu0 0.0
    %v2693 = vand.u32 %v54, 4294901760
    %2694 = vmatpush1.xpose.msra.mxu0 %v2693
    %2695 = vmatprep.subr.mxu0 0.0
    %v2696 = vand.u32 %v53, 4294901760
    %2697 = vmatpush1.xpose.msra.mxu0 %v2696
    %2698 = vmatprep.subr.mxu0 0.0
    %2699 = vmatpush2.xpose.msra.mxu0 0.0
    %2700 = vmatprep.subr.mxu0 0.0
    %2701 = vmatpush2.xpose.msra.mxu0 0.0
    %2702 = vmatprep.subr.mxu0 0.0
    %2703 = vmatpush2.xpose.msra.mxu0 0.0
    %2704 = vmatprep.subr.mxu0 0.0
    %2705 = vmatpush2.xpose.msra.mxu0 0.0
    %2706 = vmatprep.subr.mxu0 0.0
    %2707 = vmatpush2.xpose.msra.mxu0 0.0
    %2708 = vmatprep.subr.mxu0 0.0
    %2709 = vmatpush2.xpose.msra.mxu0 0.0
    %2710 = vmatprep.subr.mxu0 0.0
    %2711 = vmatpush2.xpose.msra.mxu0 0.0
    %2712 = vmatprep.subr.mxu0 0.0
    %2713 = vmatpush2.xpose.msra.mxu0 0.0
    %2714 = vmatprep.subr.mxu0 0.0
    %2715 = vmatpush2.xpose.msra.mxu0 0.0
    %2716 = vmatprep.subr.mxu0 0.0
    %2717 = vmatpush2.xpose.msra.mxu0 0.0
    %2718 = vmatprep.subr.mxu0 0.0
    %2719 = vmatpush2.xpose.msra.mxu0 0.0
    %2720 = vmatprep.subr.mxu0 0.0
    %2721 = vmatpush2.xpose.msra.mxu0 0.0
    %2722 = vmatprep.subr.mxu0 0.0
    %2723 = vmatpush2.xpose.msra.mxu0 0.0
    %2724 = vmatprep.subr.mxu0 0.0
    %2725 = vmatpush2.xpose.msra.mxu0 0.0
    %2726 = vmatprep.subr.mxu0 0.0
    %2727 = vmatpush2.xpose.msra.mxu0 0.0
    %2728 = vmatprep.subr.mxu0 0.0
    %2729 = vmatpush2.xpose.msra.mxu0 0.0
    %2730 = vmatprep.mubr.f32.mxu0 0.0
    %v2731 = vand.u32 %v2645, 4294901760
    %v2732 = vsub.f32 %v2645, %v2731
    %v2733 = vand.u32 %v2732, 4294901760
    %v2734 = vsub.f32 %v2732, %v2733
    %v2735 = vand.u32 %v2734, 4294901760
    %2736 = vmatmul.mubr.f32.gmra.mxu0 %v2735
    %v2737 = vpop.f32.mrf.mxu0
    %v2738 = vadd.f32 %v74, %v2737
    %v2739 = vpop.f32.mrf.mxu0
    %2740 = vdwg.mxu0
    %2741 = vmatprep.subr.mxu0 0.0
    %v2742 = vand.u32 %v68, 4294901760
    %v2743 = vsub.f32 %v68, %v2742
    %v2744 = vand.u32 %v2743, 4294901760
    %v2745 = vsub.f32 %v2743, %v2744
    %v2746 = vand.u32 %v2745, 4294901760
    %2747 = vmatpush1.xpose.msra.mxu0 %v2746
    %2748 = vmatprep.subr.mxu0 0.0
    %v2749 = vand.u32 %v67, 4294901760
    %v2750 = vsub.f32 %v67, %v2749
    %v2751 = vand.u32 %v2750, 4294901760
    %v2752 = vsub.f32 %v2750, %v2751
    %v2753 = vand.u32 %v2752, 4294901760
    %2754 = vmatpush1.xpose.msra.mxu0 %v2753
    %2755 = vmatprep.subr.mxu0 0.0
    %v2756 = vand.u32 %v66, 4294901760
    %v2757 = vsub.f32 %v66, %v2756
    %v2758 = vand.u32 %v2757, 4294901760
    %v2759 = vsub.f32 %v2757, %v2758
    %v2760 = vand.u32 %v2759, 4294901760
    %2761 = vmatpush1.xpose.msra.mxu0 %v2760
    %2762 = vmatprep.subr.mxu0 0.0
    %v2763 = vand.u32 %v65, 4294901760
    %v2764 = vsub.f32 %v65, %v2763
    %v2765 = vand.u32 %v2764, 4294901760
    %v2766 = vsub.f32 %v2764, %v2765
    %v2767 = vand.u32 %v2766, 4294901760
    %2768 = vmatpush1.xpose.msra.mxu0 %v2767
    %2769 = vmatprep.subr.mxu0 0.0
    %v2770 = vand.u32 %v64, 4294901760
    %v2771 = vsub.f32 %v64, %v2770
    %v2772 = vand.u32 %v2771, 4294901760
    %v2773 = vsub.f32 %v2771, %v2772
    %v2774 = vand.u32 %v2773, 4294901760
    %2775 = vmatpush1.xpose.msra.mxu0 %v2774
    %2776 = vmatprep.subr.mxu0 0.0
    %v2777 = vand.u32 %v63, 4294901760
    %v2778 = vsub.f32 %v63, %v2777
    %v2779 = vand.u32 %v2778, 4294901760
    %v2780 = vsub.f32 %v2778, %v2779
    %v2781 = vand.u32 %v2780, 4294901760
    %2782 = vmatpush1.xpose.msra.mxu0 %v2781
    %2783 = vmatprep.subr.mxu0 0.0
    %v2784 = vand.u32 %v62, 4294901760
    %v2785 = vsub.f32 %v62, %v2784
    %v2786 = vand.u32 %v2785, 4294901760
    %v2787 = vsub.f32 %v2785, %v2786
    %v2788 = vand.u32 %v2787, 4294901760
    %2789 = vmatpush1.xpose.msra.mxu0 %v2788
    %2790 = vmatprep.subr.mxu0 0.0
    %v2791 = vand.u32 %v61, 4294901760
    %v2792 = vsub.f32 %v61, %v2791
    %v2793 = vand.u32 %v2792, 4294901760
    %v2794 = vsub.f32 %v2792, %v2793
    %v2795 = vand.u32 %v2794, 4294901760
    %2796 = vmatpush1.xpose.msra.mxu0 %v2795
    %2797 = vmatprep.subr.mxu0 0.0
    %v2798 = vand.u32 %v60, 4294901760
    %v2799 = vsub.f32 %v60, %v2798
    %v2800 = vand.u32 %v2799, 4294901760
    %v2801 = vsub.f32 %v2799, %v2800
    %v2802 = vand.u32 %v2801, 4294901760
    %2803 = vmatpush1.xpose.msra.mxu0 %v2802
    %2804 = vmatprep.subr.mxu0 0.0
    %v2805 = vand.u32 %v59, 4294901760
    %v2806 = vsub.f32 %v59, %v2805
    %v2807 = vand.u32 %v2806, 4294901760
    %v2808 = vsub.f32 %v2806, %v2807
    %v2809 = vand.u32 %v2808, 4294901760
    %2810 = vmatpush1.xpose.msra.mxu0 %v2809
    %2811 = vmatprep.subr.mxu0 0.0
    %v2812 = vand.u32 %v58, 4294901760
    %v2813 = vsub.f32 %v58, %v2812
    %v2814 = vand.u32 %v2813, 4294901760
    %v2815 = vsub.f32 %v2813, %v2814
    %v2816 = vand.u32 %v2815, 4294901760
    %2817 = vmatpush1.xpose.msra.mxu0 %v2816
    %2818 = vmatprep.subr.mxu0 0.0
    %v2819 = vand.u32 %v57, 4294901760
    %v2820 = vsub.f32 %v57, %v2819
    %v2821 = vand.u32 %v2820, 4294901760
    %v2822 = vsub.f32 %v2820, %v2821
    %v2823 = vand.u32 %v2822, 4294901760
    %2824 = vmatpush1.xpose.msra.mxu0 %v2823
    %2825 = vmatprep.subr.mxu0 0.0
    %v2826 = vand.u32 %v56, 4294901760
    %v2827 = vsub.f32 %v56, %v2826
    %v2828 = vand.u32 %v2827, 4294901760
    %v2829 = vsub.f32 %v2827, %v2828
    %v2830 = vand.u32 %v2829, 4294901760
    %2831 = vmatpush1.xpose.msra.mxu0 %v2830
    %2832 = vmatprep.subr.mxu0 0.0
    %v2833 = vand.u32 %v55, 4294901760
    %v2834 = vsub.f32 %v55, %v2833
    %v2835 = vand.u32 %v2834, 4294901760
    %v2836 = vsub.f32 %v2834, %v2835
    %v2837 = vand.u32 %v2836, 4294901760
    %2838 = vmatpush1.xpose.msra.mxu0 %v2837
    %2839 = vmatprep.subr.mxu0 0.0
    %v2840 = vand.u32 %v54, 4294901760
    %v2841 = vsub.f32 %v54, %v2840
    %v2842 = vand.u32 %v2841, 4294901760
    %v2843 = vsub.f32 %v2841, %v2842
    %v2844 = vand.u32 %v2843, 4294901760
    %2845 = vmatpush1.xpose.msra.mxu0 %v2844
    %2846 = vmatprep.subr.mxu0 0.0
    %v2847 = vand.u32 %v53, 4294901760
    %v2848 = vsub.f32 %v53, %v2847
    %v2849 = vand.u32 %v2848, 4294901760
    %v2850 = vsub.f32 %v2848, %v2849
    %v2851 = vand.u32 %v2850, 4294901760
    %2852 = vmatpush1.xpose.msra.mxu0 %v2851
    %2853 = vmatprep.subr.mxu0 0.0
    %2854 = vmatpush2.xpose.msra.mxu0 0.0
    %2855 = vmatprep.subr.mxu0 0.0
    %2856 = vmatpush2.xpose.msra.mxu0 0.0
    %2857 = vmatprep.subr.mxu0 0.0
    %2858 = vmatpush2.xpose.msra.mxu0 0.0
    %2859 = vmatprep.subr.mxu0 0.0
    %2860 = vmatpush2.xpose.msra.mxu0 0.0
    %2861 = vmatprep.subr.mxu0 0.0
    %2862 = vmatpush2.xpose.msra.mxu0 0.0
    %2863 = vmatprep.subr.mxu0 0.0
    %2864 = vmatpush2.xpose.msra.mxu0 0.0
    %2865 = vmatprep.subr.mxu0 0.0
    %2866 = vmatpush2.xpose.msra.mxu0 0.0
    %2867 = vmatprep.subr.mxu0 0.0
    %2868 = vmatpush2.xpose.msra.mxu0 0.0
    %2869 = vmatprep.subr.mxu0 0.0
    %2870 = vmatpush2.xpose.msra.mxu0 0.0
    %2871 = vmatprep.subr.mxu0 0.0
    %2872 = vmatpush2.xpose.msra.mxu0 0.0
    %2873 = vmatprep.subr.mxu0 0.0
    %2874 = vmatpush2.xpose.msra.mxu0 0.0
    %2875 = vmatprep.subr.mxu0 0.0
    %2876 = vmatpush2.xpose.msra.mxu0 0.0
    %2877 = vmatprep.subr.mxu0 0.0
    %2878 = vmatpush2.xpose.msra.mxu0 0.0
    %2879 = vmatprep.subr.mxu0 0.0
    %2880 = vmatpush2.xpose.msra.mxu0 0.0
    %2881 = vmatprep.subr.mxu0 0.0
    %2882 = vmatpush2.xpose.msra.mxu0 0.0
    %2883 = vmatprep.subr.mxu0 0.0
    %2884 = vmatpush2.xpose.msra.mxu0 0.0
    %2885 = vmatprep.mubr.f32.mxu0 0.0
    %v2886 = vand.u32 %v2645, 4294901760
    %2887 = vmatmul.mubr.f32.gmra.mxu0 %v2886
    %v2888 = vpop.f32.mrf.mxu0
    %v2889 = vadd.f32 %v2738, %v2888
    %v2890 = vpop.f32.mrf.mxu0
    %2891 = vdwg.mxu0
    %2892 = vmatprep.subr.mxu0 0.0
    %v2893 = vand.u32 %v68, 4294901760
    %v2894 = vsub.f32 %v68, %v2893
    %2895 = vmatpush1.xpose.msra.mxu0 %v2894
    %2896 = vmatprep.subr.mxu0 0.0
    %v2897 = vand.u32 %v67, 4294901760
    %v2898 = vsub.f32 %v67, %v2897
    %2899 = vmatpush1.xpose.msra.mxu0 %v2898
    %2900 = vmatprep.subr.mxu0 0.0
    %v2901 = vand.u32 %v66, 4294901760
    %v2902 = vsub.f32 %v66, %v2901
    %2903 = vmatpush1.xpose.msra.mxu0 %v2902
    %2904 = vmatprep.subr.mxu0 0.0
    %v2905 = vand.u32 %v65, 4294901760
    %v2906 = vsub.f32 %v65, %v2905
    %2907 = vmatpush1.xpose.msra.mxu0 %v2906
    %2908 = vmatprep.subr.mxu0 0.0
    %v2909 = vand.u32 %v64, 4294901760
    %v2910 = vsub.f32 %v64, %v2909
    %2911 = vmatpush1.xpose.msra.mxu0 %v2910
    %2912 = vmatprep.subr.mxu0 0.0
    %v2913 = vand.u32 %v63, 4294901760
    %v2914 = vsub.f32 %v63, %v2913
    %2915 = vmatpush1.xpose.msra.mxu0 %v2914
    %2916 = vmatprep.subr.mxu0 0.0
    %v2917 = vand.u32 %v62, 4294901760
    %v2918 = vsub.f32 %v62, %v2917
    %2919 = vmatpush1.xpose.msra.mxu0 %v2918
    %2920 = vmatprep.subr.mxu0 0.0
    %v2921 = vand.u32 %v61, 4294901760
    %v2922 = vsub.f32 %v61, %v2921
    %2923 = vmatpush1.xpose.msra.mxu0 %v2922
    %2924 = vmatprep.subr.mxu0 0.0
    %v2925 = vand.u32 %v60, 4294901760
    %v2926 = vsub.f32 %v60, %v2925
    %2927 = vmatpush1.xpose.msra.mxu0 %v2926
    %2928 = vmatprep.subr.mxu0 0.0
    %v2929 = vand.u32 %v59, 4294901760
    %v2930 = vsub.f32 %v59, %v2929
    %2931 = vmatpush1.xpose.msra.mxu0 %v2930
    %2932 = vmatprep.subr.mxu0 0.0
    %v2933 = vand.u32 %v58, 4294901760
    %v2934 = vsub.f32 %v58, %v2933
    %2935 = vmatpush1.xpose.msra.mxu0 %v2934
    %2936 = vmatprep.subr.mxu0 0.0
    %v2937 = vand.u32 %v57, 4294901760
    %v2938 = vsub.f32 %v57, %v2937
    %2939 = vmatpush1.xpose.msra.mxu0 %v2938
    %2940 = vmatprep.subr.mxu0 0.0
    %v2941 = vand.u32 %v56, 4294901760
    %v2942 = vsub.f32 %v56, %v2941
    %2943 = vmatpush1.xpose.msra.mxu0 %v2942
    %2944 = vmatprep.subr.mxu0 0.0
    %v2945 = vand.u32 %v55, 4294901760
    %v2946 = vsub.f32 %v55, %v2945
    %2947 = vmatpush1.xpose.msra.mxu0 %v2946
    %2948 = vmatprep.subr.mxu0 0.0
    %v2949 = vand.u32 %v54, 4294901760
    %v2950 = vsub.f32 %v54, %v2949
    %2951 = vmatpush1.xpose.msra.mxu0 %v2950
    %2952 = vmatprep.subr.mxu0 0.0
    %v2953 = vand.u32 %v53, 4294901760
    %v2954 = vsub.f32 %v53, %v2953
    %2955 = vmatpush1.xpose.msra.mxu0 %v2954
    %2956 = vmatprep.subr.mxu0 0.0
    %2957 = vmatpush2.xpose.msra.mxu0 0.0
    %2958 = vmatprep.subr.mxu0 0.0
    %2959 = vmatpush2.xpose.msra.mxu0 0.0
    %2960 = vmatprep.subr.mxu0 0.0
    %2961 = vmatpush2.xpose.msra.mxu0 0.0
    %2962 = vmatprep.subr.mxu0 0.0
    %2963 = vmatpush2.xpose.msra.mxu0 0.0
    %2964 = vmatprep.subr.mxu0 0.0
    %2965 = vmatpush2.xpose.msra.mxu0 0.0
    %2966 = vmatprep.subr.mxu0 0.0
    %2967 = vmatpush2.xpose.msra.mxu0 0.0
    %2968 = vmatprep.subr.mxu0 0.0
    %2969 = vmatpush2.xpose.msra.mxu0 0.0
    %2970 = vmatprep.subr.mxu0 0.0
    %2971 = vmatpush2.xpose.msra.mxu0 0.0
    %2972 = vmatprep.subr.mxu0 0.0
    %2973 = vmatpush2.xpose.msra.mxu0 0.0
    %2974 = vmatprep.subr.mxu0 0.0
    %2975 = vmatpush2.xpose.msra.mxu0 0.0
    %2976 = vmatprep.subr.mxu0 0.0
    %2977 = vmatpush2.xpose.msra.mxu0 0.0
    %2978 = vmatprep.subr.mxu0 0.0
    %2979 = vmatpush2.xpose.msra.mxu0 0.0
    %2980 = vmatprep.subr.mxu0 0.0
    %2981 = vmatpush2.xpose.msra.mxu0 0.0
    %2982 = vmatprep.subr.mxu0 0.0
    %2983 = vmatpush2.xpose.msra.mxu0 0.0
    %2984 = vmatprep.subr.mxu0 0.0
    %2985 = vmatpush2.xpose.msra.mxu0 0.0
    %2986 = vmatprep.subr.mxu0 0.0
    %2987 = vmatpush2.xpose.msra.mxu0 0.0
    %2988 = vmatprep.mubr.f32.mxu0 0.0
    %v2989 = vand.u32 %v2645, 4294901760
    %v2990 = vsub.f32 %v2645, %v2989
    %2991 = vmatmul.mubr.f32.gmra.mxu0 %v2990
    %v2992 = vpop.f32.mrf.mxu0
    %v2993 = vadd.f32 %v2889, %v2992
    %v2994 = vpop.f32.mrf.mxu0
    %2995 = vdwg.mxu0
    %2996 = vmatprep.subr.mxu0 0.0
    %v2997 = vand.u32 %v68, 4294901760
    %2998 = vmatpush1.xpose.msra.mxu0 %v2997
    %2999 = vmatprep.subr.mxu0 0.0
    %v3000 = vand.u32 %v67, 4294901760
    %3001 = vmatpush1.xpose.msra.mxu0 %v3000
    %3002 = vmatprep.subr.mxu0 0.0
    %v3003 = vand.u32 %v66, 4294901760
    %3004 = vmatpush1.xpose.msra.mxu0 %v3003
    %3005 = vmatprep.subr.mxu0 0.0
    %v3006 = vand.u32 %v65, 4294901760
    %3007 = vmatpush1.xpose.msra.mxu0 %v3006
    %3008 = vmatprep.subr.mxu0 0.0
    %v3009 = vand.u32 %v64, 4294901760
    %3010 = vmatpush1.xpose.msra.mxu0 %v3009
    %3011 = vmatprep.subr.mxu0 0.0
    %v3012 = vand.u32 %v63, 4294901760
    %3013 = vmatpush1.xpose.msra.mxu0 %v3012
    %3014 = vmatprep.subr.mxu0 0.0
    %v3015 = vand.u32 %v62, 4294901760
    %3016 = vmatpush1.xpose.msra.mxu0 %v3015
    %3017 = vmatprep.subr.mxu0 0.0
    %v3018 = vand.u32 %v61, 4294901760
    %3019 = vmatpush1.xpose.msra.mxu0 %v3018
    %3020 = vmatprep.subr.mxu0 0.0
    %v3021 = vand.u32 %v60, 4294901760
    %3022 = vmatpush1.xpose.msra.mxu0 %v3021
    %3023 = vmatprep.subr.mxu0 0.0
    %v3024 = vand.u32 %v59, 4294901760
    %3025 = vmatpush1.xpose.msra.mxu0 %v3024
    %3026 = vmatprep.subr.mxu0 0.0
    %v3027 = vand.u32 %v58, 4294901760
    %3028 = vmatpush1.xpose.msra.mxu0 %v3027
    %3029 = vmatprep.subr.mxu0 0.0
    %v3030 = vand.u32 %v57, 4294901760
    %3031 = vmatpush1.xpose.msra.mxu0 %v3030
    %3032 = vmatprep.subr.mxu0 0.0
    %v3033 = vand.u32 %v56, 4294901760
    %3034 = vmatpush1.xpose.msra.mxu0 %v3033
    %3035 = vmatprep.subr.mxu0 0.0
    %v3036 = vand.u32 %v55, 4294901760
    %3037 = vmatpush1.xpose.msra.mxu0 %v3036
    %3038 = vmatprep.subr.mxu0 0.0
    %v3039 = vand.u32 %v54, 4294901760
    %3040 = vmatpush1.xpose.msra.mxu0 %v3039
    %3041 = vmatprep.subr.mxu0 0.0
    %v3042 = vand.u32 %v53, 4294901760
    %3043 = vmatpush1.xpose.msra.mxu0 %v3042
    %3044 = vmatprep.subr.mxu0 0.0
    %3045 = vmatpush2.xpose.msra.mxu0 0.0
    %3046 = vmatprep.subr.mxu0 0.0
    %3047 = vmatpush2.xpose.msra.mxu0 0.0
    %3048 = vmatprep.subr.mxu0 0.0
    %3049 = vmatpush2.xpose.msra.mxu0 0.0
    %3050 = vmatprep.subr.mxu0 0.0
    %3051 = vmatpush2.xpose.msra.mxu0 0.0
    %3052 = vmatprep.subr.mxu0 0.0
    %3053 = vmatpush2.xpose.msra.mxu0 0.0
    %3054 = vmatprep.subr.mxu0 0.0
    %3055 = vmatpush2.xpose.msra.mxu0 0.0
    %3056 = vmatprep.subr.mxu0 0.0
    %3057 = vmatpush2.xpose.msra.mxu0 0.0
    %3058 = vmatprep.subr.mxu0 0.0
    %3059 = vmatpush2.xpose.msra.mxu0 0.0
    %3060 = vmatprep.subr.mxu0 0.0
    %3061 = vmatpush2.xpose.msra.mxu0 0.0
    %3062 = vmatprep.subr.mxu0 0.0
    %3063 = vmatpush2.xpose.msra.mxu0 0.0
    %3064 = vmatprep.subr.mxu0 0.0
    %3065 = vmatpush2.xpose.msra.mxu0 0.0
    %3066 = vmatprep.subr.mxu0 0.0
    %3067 = vmatpush2.xpose.msra.mxu0 0.0
    %3068 = vmatprep.subr.mxu0 0.0
    %3069 = vmatpush2.xpose.msra.mxu0 0.0
    %3070 = vmatprep.subr.mxu0 0.0
    %3071 = vmatpush2.xpose.msra.mxu0 0.0
    %3072 = vmatprep.subr.mxu0 0.0
    %3073 = vmatpush2.xpose.msra.mxu0 0.0
    %3074 = vmatprep.subr.mxu0 0.0
    %3075 = vmatpush2.xpose.msra.mxu0 0.0
    %3076 = vmatprep.mubr.f32.mxu0 0.0
    %v3077 = vand.u32 %v2645, 4294901760
    %v3078 = vsub.f32 %v2645, %v3077
    %v3079 = vand.u32 %v3078, 4294901760
    %3080 = vmatmul.mubr.f32.gmra.mxu0 %v3079
    %v3081 = vpop.f32.mrf.mxu0
    %v3082 = vadd.f32 %v2993, %v3081
    %v3083 = vpop.f32.mrf.mxu0
    %3084 = vdwg.mxu0
    %3085 = vmatprep.subr.mxu0 0.0
    %v3086 = vand.u32 %v68, 4294901760
    %v3087 = vsub.f32 %v68, %v3086
    %v3088 = vand.u32 %v3087, 4294901760
    %3089 = vmatpush1.xpose.msra.mxu0 %v3088
    %3090 = vmatprep.subr.mxu0 0.0
    %v3091 = vand.u32 %v67, 4294901760
    %v3092 = vsub.f32 %v67, %v3091
    %v3093 = vand.u32 %v3092, 4294901760
    %3094 = vmatpush1.xpose.msra.mxu0 %v3093
    %3095 = vmatprep.subr.mxu0 0.0
    %v3096 = vand.u32 %v66, 4294901760
    %v3097 = vsub.f32 %v66, %v3096
    %v3098 = vand.u32 %v3097, 4294901760
    %3099 = vmatpush1.xpose.msra.mxu0 %v3098
    %3100 = vmatprep.subr.mxu0 0.0
    %v3101 = vand.u32 %v65, 4294901760
    %v3102 = vsub.f32 %v65, %v3101
    %v3103 = vand.u32 %v3102, 4294901760
    %3104 = vmatpush1.xpose.msra.mxu0 %v3103
    %3105 = vmatprep.subr.mxu0 0.0
    %v3106 = vand.u32 %v64, 4294901760
    %v3107 = vsub.f32 %v64, %v3106
    %v3108 = vand.u32 %v3107, 4294901760
    %3109 = vmatpush1.xpose.msra.mxu0 %v3108
    %3110 = vmatprep.subr.mxu0 0.0
    %v3111 = vand.u32 %v63, 4294901760
    %v3112 = vsub.f32 %v63, %v3111
    %v3113 = vand.u32 %v3112, 4294901760
    %3114 = vmatpush1.xpose.msra.mxu0 %v3113
    %3115 = vmatprep.subr.mxu0 0.0
    %v3116 = vand.u32 %v62, 4294901760
    %v3117 = vsub.f32 %v62, %v3116
    %v3118 = vand.u32 %v3117, 4294901760
    %3119 = vmatpush1.xpose.msra.mxu0 %v3118
    %3120 = vmatprep.subr.mxu0 0.0
    %v3121 = vand.u32 %v61, 4294901760
    %v3122 = vsub.f32 %v61, %v3121
    %v3123 = vand.u32 %v3122, 4294901760
    %3124 = vmatpush1.xpose.msra.mxu0 %v3123
    %3125 = vmatprep.subr.mxu0 0.0
    %v3126 = vand.u32 %v60, 4294901760
    %v3127 = vsub.f32 %v60, %v3126
    %v3128 = vand.u32 %v3127, 4294901760
    %3129 = vmatpush1.xpose.msra.mxu0 %v3128
    %3130 = vmatprep.subr.mxu0 0.0
    %v3131 = vand.u32 %v59, 4294901760
    %v3132 = vsub.f32 %v59, %v3131
    %v3133 = vand.u32 %v3132, 4294901760
    %3134 = vmatpush1.xpose.msra.mxu0 %v3133
    %3135 = vmatprep.subr.mxu0 0.0
    %v3136 = vand.u32 %v58, 4294901760
    %v3137 = vsub.f32 %v58, %v3136
    %v3138 = vand.u32 %v3137, 4294901760
    %3139 = vmatpush1.xpose.msra.mxu0 %v3138
    %3140 = vmatprep.subr.mxu0 0.0
    %v3141 = vand.u32 %v57, 4294901760
    %v3142 = vsub.f32 %v57, %v3141
    %v3143 = vand.u32 %v3142, 4294901760
    %3144 = vmatpush1.xpose.msra.mxu0 %v3143
    %3145 = vmatprep.subr.mxu0 0.0
    %v3146 = vand.u32 %v56, 4294901760
    %v3147 = vsub.f32 %v56, %v3146
    %v3148 = vand.u32 %v3147, 4294901760
    %3149 = vmatpush1.xpose.msra.mxu0 %v3148
    %3150 = vmatprep.subr.mxu0 0.0
    %v3151 = vand.u32 %v55, 4294901760
    %v3152 = vsub.f32 %v55, %v3151
    %v3153 = vand.u32 %v3152, 4294901760
    %3154 = vmatpush1.xpose.msra.mxu0 %v3153
    %3155 = vmatprep.subr.mxu0 0.0
    %v3156 = vand.u32 %v54, 4294901760
    %v3157 = vsub.f32 %v54, %v3156
    %v3158 = vand.u32 %v3157, 4294901760
    %3159 = vmatpush1.xpose.msra.mxu0 %v3158
    %3160 = vmatprep.subr.mxu0 0.0
    %v3161 = vand.u32 %v53, 4294901760
    %v3162 = vsub.f32 %v53, %v3161
    %v3163 = vand.u32 %v3162, 4294901760
    %3164 = vmatpush1.xpose.msra.mxu0 %v3163
    %3165 = vmatprep.subr.mxu0 0.0
    %3166 = vmatpush2.xpose.msra.mxu0 0.0
    %3167 = vmatprep.subr.mxu0 0.0
    %3168 = vmatpush2.xpose.msra.mxu0 0.0
    %3169 = vmatprep.subr.mxu0 0.0
    %3170 = vmatpush2.xpose.msra.mxu0 0.0
    %3171 = vmatprep.subr.mxu0 0.0
    %3172 = vmatpush2.xpose.msra.mxu0 0.0
    %3173 = vmatprep.subr.mxu0 0.0
    %3174 = vmatpush2.xpose.msra.mxu0 0.0
    %3175 = vmatprep.subr.mxu0 0.0
    %3176 = vmatpush2.xpose.msra.mxu0 0.0
    %3177 = vmatprep.subr.mxu0 0.0
    %3178 = vmatpush2.xpose.msra.mxu0 0.0
    %3179 = vmatprep.subr.mxu0 0.0
    %3180 = vmatpush2.xpose.msra.mxu0 0.0
    %3181 = vmatprep.subr.mxu0 0.0
    %3182 = vmatpush2.xpose.msra.mxu0 0.0
    %3183 = vmatprep.subr.mxu0 0.0
    %3184 = vmatpush2.xpose.msra.mxu0 0.0
    %3185 = vmatprep.subr.mxu0 0.0
    %3186 = vmatpush2.xpose.msra.mxu0 0.0
    %3187 = vmatprep.subr.mxu0 0.0
    %3188 = vmatpush2.xpose.msra.mxu0 0.0
    %3189 = vmatprep.subr.mxu0 0.0
    %3190 = vmatpush2.xpose.msra.mxu0 0.0
    %3191 = vmatprep.subr.mxu0 0.0
    %3192 = vmatpush2.xpose.msra.mxu0 0.0
    %3193 = vmatprep.subr.mxu0 0.0
    %3194 = vmatpush2.xpose.msra.mxu0 0.0
    %3195 = vmatprep.subr.mxu0 0.0
    %3196 = vmatpush2.xpose.msra.mxu0 0.0
    %3197 = vmatprep.mubr.f32.mxu0 0.0
    %v3198 = vand.u32 %v2645, 4294901760
    %3199 = vmatmul.mubr.f32.gmra.mxu0 %v3198
    %v3200 = vpop.f32.mrf.mxu0
    %v3201 = vadd.f32 %v3082, %v3200
    %v3202 = vpop.f32.mrf.mxu0
    %3203 = vdwg.mxu0
    %3204 = vmatprep.subr.mxu0 0.0
    %v3205 = vand.u32 %v68, 4294901760
    %3206 = vmatpush1.xpose.msra.mxu0 %v3205
    %3207 = vmatprep.subr.mxu0 0.0
    %v3208 = vand.u32 %v67, 4294901760
    %3209 = vmatpush1.xpose.msra.mxu0 %v3208
    %3210 = vmatprep.subr.mxu0 0.0
    %v3211 = vand.u32 %v66, 4294901760
    %3212 = vmatpush1.xpose.msra.mxu0 %v3211
    %3213 = vmatprep.subr.mxu0 0.0
    %v3214 = vand.u32 %v65, 4294901760
    %3215 = vmatpush1.xpose.msra.mxu0 %v3214
    %3216 = vmatprep.subr.mxu0 0.0
    %v3217 = vand.u32 %v64, 4294901760
    %3218 = vmatpush1.xpose.msra.mxu0 %v3217
    %3219 = vmatprep.subr.mxu0 0.0
    %v3220 = vand.u32 %v63, 4294901760
    %3221 = vmatpush1.xpose.msra.mxu0 %v3220
    %3222 = vmatprep.subr.mxu0 0.0
    %v3223 = vand.u32 %v62, 4294901760
    %3224 = vmatpush1.xpose.msra.mxu0 %v3223
    %3225 = vmatprep.subr.mxu0 0.0
    %v3226 = vand.u32 %v61, 4294901760
    %3227 = vmatpush1.xpose.msra.mxu0 %v3226
    %3228 = vmatprep.subr.mxu0 0.0
    %v3229 = vand.u32 %v60, 4294901760
    %3230 = vmatpush1.xpose.msra.mxu0 %v3229
    %3231 = vmatprep.subr.mxu0 0.0
    %v3232 = vand.u32 %v59, 4294901760
    %3233 = vmatpush1.xpose.msra.mxu0 %v3232
    %3234 = vmatprep.subr.mxu0 0.0
    %v3235 = vand.u32 %v58, 4294901760
    %3236 = vmatpush1.xpose.msra.mxu0 %v3235
    %3237 = vmatprep.subr.mxu0 0.0
    %v3238 = vand.u32 %v57, 4294901760
    %3239 = vmatpush1.xpose.msra.mxu0 %v3238
    %3240 = vmatprep.subr.mxu0 0.0
    %v3241 = vand.u32 %v56, 4294901760
    %3242 = vmatpush1.xpose.msra.mxu0 %v3241
    %3243 = vmatprep.subr.mxu0 0.0
    %v3244 = vand.u32 %v55, 4294901760
    %3245 = vmatpush1.xpose.msra.mxu0 %v3244
    %3246 = vmatprep.subr.mxu0 0.0
    %v3247 = vand.u32 %v54, 4294901760
    %3248 = vmatpush1.xpose.msra.mxu0 %v3247
    %3249 = vmatprep.subr.mxu0 0.0
    %v3250 = vand.u32 %v53, 4294901760
    %3251 = vmatpush1.xpose.msra.mxu0 %v3250
    %3252 = vmatprep.subr.mxu0 0.0
    %3253 = vmatpush2.xpose.msra.mxu0 0.0
    %3254 = vmatprep.subr.mxu0 0.0
    %3255 = vmatpush2.xpose.msra.mxu0 0.0
    %3256 = vmatprep.subr.mxu0 0.0
    %3257 = vmatpush2.xpose.msra.mxu0 0.0
    %3258 = vmatprep.subr.mxu0 0.0
    %3259 = vmatpush2.xpose.msra.mxu0 0.0
    %3260 = vmatprep.subr.mxu0 0.0
    %3261 = vmatpush2.xpose.msra.mxu0 0.0
    %3262 = vmatprep.subr.mxu0 0.0
    %3263 = vmatpush2.xpose.msra.mxu0 0.0
    %3264 = vmatprep.subr.mxu0 0.0
    %3265 = vmatpush2.xpose.msra.mxu0 0.0
    %3266 = vmatprep.subr.mxu0 0.0
    %3267 = vmatpush2.xpose.msra.mxu0 0.0
    %3268 = vmatprep.subr.mxu0 0.0
    %3269 = vmatpush2.xpose.msra.mxu0 0.0
    %3270 = vmatprep.subr.mxu0 0.0
    %3271 = vmatpush2.xpose.msra.mxu0 0.0
    %3272 = vmatprep.subr.mxu0 0.0
    %3273 = vmatpush2.xpose.msra.mxu0 0.0
    %3274 = vmatprep.subr.mxu0 0.0
    %3275 = vmatpush2.xpose.msra.mxu0 0.0
    %3276 = vmatprep.subr.mxu0 0.0
    %3277 = vmatpush2.xpose.msra.mxu0 0.0
    %3278 = vmatprep.subr.mxu0 0.0
    %3279 = vmatpush2.xpose.msra.mxu0 0.0
    %3280 = vmatprep.subr.mxu0 0.0
    %3281 = vmatpush2.xpose.msra.mxu0 0.0
    %3282 = vmatprep.subr.mxu0 0.0
    %3283 = vmatpush2.xpose.msra.mxu0 0.0
    %3284 = vmatprep.mubr.f32.mxu0 0.0
    %v3285 = vand.u32 %v2645, 4294901760
    %3286 = vmatmul.mubr.f32.gmra.mxu0 %v3285
    %v3287 = vpop.f32.mrf.mxu0
    %v3288 = vadd.f32 %v3201, %v3287
    %v3289 = vpop.f32.mrf.mxu0
    %3290 = vdwg.mxu0
    %s3291 = scalar_lea.vmem %s3, 40
    %3292 = vst [vmem:[%s3291] sm:$0xff] %v3288
    %3293 = vmatprep.subr.mxu0 0.0
    %v3294 = vand.u32 %v68, 4294901760
    %3295 = vmatpush1.xpose.msra.mxu0 %v3294
    %3296 = vmatprep.subr.mxu0 0.0
    %v3297 = vand.u32 %v67, 4294901760
    %3298 = vmatpush1.xpose.msra.mxu0 %v3297
    %3299 = vmatprep.subr.mxu0 0.0
    %v3300 = vand.u32 %v66, 4294901760
    %3301 = vmatpush1.xpose.msra.mxu0 %v3300
    %3302 = vmatprep.subr.mxu0 0.0
    %v3303 = vand.u32 %v65, 4294901760
    %3304 = vmatpush1.xpose.msra.mxu0 %v3303
    %3305 = vmatprep.subr.mxu0 0.0
    %v3306 = vand.u32 %v64, 4294901760
    %3307 = vmatpush1.xpose.msra.mxu0 %v3306
    %3308 = vmatprep.subr.mxu0 0.0
    %v3309 = vand.u32 %v63, 4294901760
    %3310 = vmatpush1.xpose.msra.mxu0 %v3309
    %3311 = vmatprep.subr.mxu0 0.0
    %v3312 = vand.u32 %v62, 4294901760
    %3313 = vmatpush1.xpose.msra.mxu0 %v3312
    %3314 = vmatprep.subr.mxu0 0.0
    %v3315 = vand.u32 %v61, 4294901760
    %3316 = vmatpush1.xpose.msra.mxu0 %v3315
    %3317 = vmatprep.subr.mxu0 0.0
    %v3318 = vand.u32 %v60, 4294901760
    %3319 = vmatpush1.xpose.msra.mxu0 %v3318
    %3320 = vmatprep.subr.mxu0 0.0
    %v3321 = vand.u32 %v59, 4294901760
    %3322 = vmatpush1.xpose.msra.mxu0 %v3321
    %3323 = vmatprep.subr.mxu0 0.0
    %v3324 = vand.u32 %v58, 4294901760
    %3325 = vmatpush1.xpose.msra.mxu0 %v3324
    %3326 = vmatprep.subr.mxu0 0.0
    %v3327 = vand.u32 %v57, 4294901760
    %3328 = vmatpush1.xpose.msra.mxu0 %v3327
    %3329 = vmatprep.subr.mxu0 0.0
    %v3330 = vand.u32 %v56, 4294901760
    %3331 = vmatpush1.xpose.msra.mxu0 %v3330
    %3332 = vmatprep.subr.mxu0 0.0
    %v3333 = vand.u32 %v55, 4294901760
    %3334 = vmatpush1.xpose.msra.mxu0 %v3333
    %3335 = vmatprep.subr.mxu0 0.0
    %v3336 = vand.u32 %v54, 4294901760
    %3337 = vmatpush1.xpose.msra.mxu0 %v3336
    %3338 = vmatprep.subr.mxu0 0.0
    %v3339 = vand.u32 %v53, 4294901760
    %3340 = vmatpush1.xpose.msra.mxu0 %v3339
    %3341 = vmatprep.subr.mxu0 0.0
    %3342 = vmatpush2.xpose.msra.mxu0 0.0
    %3343 = vmatprep.subr.mxu0 0.0
    %3344 = vmatpush2.xpose.msra.mxu0 0.0
    %3345 = vmatprep.subr.mxu0 0.0
    %3346 = vmatpush2.xpose.msra.mxu0 0.0
    %3347 = vmatprep.subr.mxu0 0.0
    %3348 = vmatpush2.xpose.msra.mxu0 0.0
    %3349 = vmatprep.subr.mxu0 0.0
    %3350 = vmatpush2.xpose.msra.mxu0 0.0
    %3351 = vmatprep.subr.mxu0 0.0
    %3352 = vmatpush2.xpose.msra.mxu0 0.0
    %3353 = vmatprep.subr.mxu0 0.0
    %3354 = vmatpush2.xpose.msra.mxu0 0.0
    %3355 = vmatprep.subr.mxu0 0.0
    %3356 = vmatpush2.xpose.msra.mxu0 0.0
    %3357 = vmatprep.subr.mxu0 0.0
    %3358 = vmatpush2.xpose.msra.mxu0 0.0
    %3359 = vmatprep.subr.mxu0 0.0
    %3360 = vmatpush2.xpose.msra.mxu0 0.0
    %3361 = vmatprep.subr.mxu0 0.0
    %3362 = vmatpush2.xpose.msra.mxu0 0.0
    %3363 = vmatprep.subr.mxu0 0.0
    %3364 = vmatpush2.xpose.msra.mxu0 0.0
    %3365 = vmatprep.subr.mxu0 0.0
    %3366 = vmatpush2.xpose.msra.mxu0 0.0
    %3367 = vmatprep.subr.mxu0 0.0
    %3368 = vmatpush2.xpose.msra.mxu0 0.0
    %3369 = vmatprep.subr.mxu0 0.0
    %3370 = vmatpush2.xpose.msra.mxu0 0.0
    %3371 = vmatprep.subr.mxu0 0.0
    %3372 = vmatpush2.xpose.msra.mxu0 0.0
    %3373 = vmatprep.mubr.f32.mxu0 0.0
    %v3374 = vand.u32 %v3288, 4294901760
    %v3375 = vsub.f32 %v3288, %v3374
    %v3376 = vand.u32 %v3375, 4294901760
    %v3377 = vsub.f32 %v3375, %v3376
    %v3378 = vand.u32 %v3377, 4294901760
    %3379 = vmatmul.mubr.f32.gmra.mxu0 %v3378
    %v3380 = vpop.f32.mrf.mxu0
    %v3381 = vadd.f32 %v74, %v3380
    %v3382 = vpop.f32.mrf.mxu0
    %3383 = vdwg.mxu0
    %3384 = vmatprep.subr.mxu0 0.0
    %v3385 = vand.u32 %v68, 4294901760
    %v3386 = vsub.f32 %v68, %v3385
    %v3387 = vand.u32 %v3386, 4294901760
    %v3388 = vsub.f32 %v3386, %v3387
    %v3389 = vand.u32 %v3388, 4294901760
    %3390 = vmatpush1.xpose.msra.mxu0 %v3389
    %3391 = vmatprep.subr.mxu0 0.0
    %v3392 = vand.u32 %v67, 4294901760
    %v3393 = vsub.f32 %v67, %v3392
    %v3394 = vand.u32 %v3393, 4294901760
    %v3395 = vsub.f32 %v3393, %v3394
    %v3396 = vand.u32 %v3395, 4294901760
    %3397 = vmatpush1.xpose.msra.mxu0 %v3396
    %3398 = vmatprep.subr.mxu0 0.0
    %v3399 = vand.u32 %v66, 4294901760
    %v3400 = vsub.f32 %v66, %v3399
    %v3401 = vand.u32 %v3400, 4294901760
    %v3402 = vsub.f32 %v3400, %v3401
    %v3403 = vand.u32 %v3402, 4294901760
    %3404 = vmatpush1.xpose.msra.mxu0 %v3403
    %3405 = vmatprep.subr.mxu0 0.0
    %v3406 = vand.u32 %v65, 4294901760
    %v3407 = vsub.f32 %v65, %v3406
    %v3408 = vand.u32 %v3407, 4294901760
    %v3409 = vsub.f32 %v3407, %v3408
    %v3410 = vand.u32 %v3409, 4294901760
    %3411 = vmatpush1.xpose.msra.mxu0 %v3410
    %3412 = vmatprep.subr.mxu0 0.0
    %v3413 = vand.u32 %v64, 4294901760
    %v3414 = vsub.f32 %v64, %v3413
    %v3415 = vand.u32 %v3414, 4294901760
    %v3416 = vsub.f32 %v3414, %v3415
    %v3417 = vand.u32 %v3416, 4294901760
    %3418 = vmatpush1.xpose.msra.mxu0 %v3417
    %3419 = vmatprep.subr.mxu0 0.0
    %v3420 = vand.u32 %v63, 4294901760
    %v3421 = vsub.f32 %v63, %v3420
    %v3422 = vand.u32 %v3421, 4294901760
    %v3423 = vsub.f32 %v3421, %v3422
    %v3424 = vand.u32 %v3423, 4294901760
    %3425 = vmatpush1.xpose.msra.mxu0 %v3424
    %3426 = vmatprep.subr.mxu0 0.0
    %v3427 = vand.u32 %v62, 4294901760
    %v3428 = vsub.f32 %v62, %v3427
    %v3429 = vand.u32 %v3428, 4294901760
    %v3430 = vsub.f32 %v3428, %v3429
    %v3431 = vand.u32 %v3430, 4294901760
    %3432 = vmatpush1.xpose.msra.mxu0 %v3431
    %3433 = vmatprep.subr.mxu0 0.0
    %v3434 = vand.u32 %v61, 4294901760
    %v3435 = vsub.f32 %v61, %v3434
    %v3436 = vand.u32 %v3435, 4294901760
    %v3437 = vsub.f32 %v3435, %v3436
    %v3438 = vand.u32 %v3437, 4294901760
    %3439 = vmatpush1.xpose.msra.mxu0 %v3438
    %3440 = vmatprep.subr.mxu0 0.0
    %v3441 = vand.u32 %v60, 4294901760
    %v3442 = vsub.f32 %v60, %v3441
    %v3443 = vand.u32 %v3442, 4294901760
    %v3444 = vsub.f32 %v3442, %v3443
    %v3445 = vand.u32 %v3444, 4294901760
    %3446 = vmatpush1.xpose.msra.mxu0 %v3445
    %3447 = vmatprep.subr.mxu0 0.0
    %v3448 = vand.u32 %v59, 4294901760
    %v3449 = vsub.f32 %v59, %v3448
    %v3450 = vand.u32 %v3449, 4294901760
    %v3451 = vsub.f32 %v3449, %v3450
    %v3452 = vand.u32 %v3451, 4294901760
    %3453 = vmatpush1.xpose.msra.mxu0 %v3452
    %3454 = vmatprep.subr.mxu0 0.0
    %v3455 = vand.u32 %v58, 4294901760
    %v3456 = vsub.f32 %v58, %v3455
    %v3457 = vand.u32 %v3456, 4294901760
    %v3458 = vsub.f32 %v3456, %v3457
    %v3459 = vand.u32 %v3458, 4294901760
    %3460 = vmatpush1.xpose.msra.mxu0 %v3459
    %3461 = vmatprep.subr.mxu0 0.0
    %v3462 = vand.u32 %v57, 4294901760
    %v3463 = vsub.f32 %v57, %v3462
    %v3464 = vand.u32 %v3463, 4294901760
    %v3465 = vsub.f32 %v3463, %v3464
    %v3466 = vand.u32 %v3465, 4294901760
    %3467 = vmatpush1.xpose.msra.mxu0 %v3466
    %3468 = vmatprep.subr.mxu0 0.0
    %v3469 = vand.u32 %v56, 4294901760
    %v3470 = vsub.f32 %v56, %v3469
    %v3471 = vand.u32 %v3470, 4294901760
    %v3472 = vsub.f32 %v3470, %v3471
    %v3473 = vand.u32 %v3472, 4294901760
    %3474 = vmatpush1.xpose.msra.mxu0 %v3473
    %3475 = vmatprep.subr.mxu0 0.0
    %v3476 = vand.u32 %v55, 4294901760
    %v3477 = vsub.f32 %v55, %v3476
    %v3478 = vand.u32 %v3477, 4294901760
    %v3479 = vsub.f32 %v3477, %v3478
    %v3480 = vand.u32 %v3479, 4294901760
    %3481 = vmatpush1.xpose.msra.mxu0 %v3480
    %3482 = vmatprep.subr.mxu0 0.0
    %v3483 = vand.u32 %v54, 4294901760
    %v3484 = vsub.f32 %v54, %v3483
    %v3485 = vand.u32 %v3484, 4294901760
    %v3486 = vsub.f32 %v3484, %v3485
    %v3487 = vand.u32 %v3486, 4294901760
    %3488 = vmatpush1.xpose.msra.mxu0 %v3487
    %3489 = vmatprep.subr.mxu0 0.0
    %v3490 = vand.u32 %v53, 4294901760
    %v3491 = vsub.f32 %v53, %v3490
    %v3492 = vand.u32 %v3491, 4294901760
    %v3493 = vsub.f32 %v3491, %v3492
    %v3494 = vand.u32 %v3493, 4294901760
    %3495 = vmatpush1.xpose.msra.mxu0 %v3494
    %3496 = vmatprep.subr.mxu0 0.0
    %3497 = vmatpush2.xpose.msra.mxu0 0.0
    %3498 = vmatprep.subr.mxu0 0.0
    %3499 = vmatpush2.xpose.msra.mxu0 0.0
    %3500 = vmatprep.subr.mxu0 0.0
    %3501 = vmatpush2.xpose.msra.mxu0 0.0
    %3502 = vmatprep.subr.mxu0 0.0
    %3503 = vmatpush2.xpose.msra.mxu0 0.0
    %3504 = vmatprep.subr.mxu0 0.0
    %3505 = vmatpush2.xpose.msra.mxu0 0.0
    %3506 = vmatprep.subr.mxu0 0.0
    %3507 = vmatpush2.xpose.msra.mxu0 0.0
    %3508 = vmatprep.subr.mxu0 0.0
    %3509 = vmatpush2.xpose.msra.mxu0 0.0
    %3510 = vmatprep.subr.mxu0 0.0
    %3511 = vmatpush2.xpose.msra.mxu0 0.0
    %3512 = vmatprep.subr.mxu0 0.0
    %3513 = vmatpush2.xpose.msra.mxu0 0.0
    %3514 = vmatprep.subr.mxu0 0.0
    %3515 = vmatpush2.xpose.msra.mxu0 0.0
    %3516 = vmatprep.subr.mxu0 0.0
    %3517 = vmatpush2.xpose.msra.mxu0 0.0
    %3518 = vmatprep.subr.mxu0 0.0
    %3519 = vmatpush2.xpose.msra.mxu0 0.0
    %3520 = vmatprep.subr.mxu0 0.0
    %3521 = vmatpush2.xpose.msra.mxu0 0.0
    %3522 = vmatprep.subr.mxu0 0.0
    %3523 = vmatpush2.xpose.msra.mxu0 0.0
    %3524 = vmatprep.subr.mxu0 0.0
    %3525 = vmatpush2.xpose.msra.mxu0 0.0
    %3526 = vmatprep.subr.mxu0 0.0
    %3527 = vmatpush2.xpose.msra.mxu0 0.0
    %3528 = vmatprep.mubr.f32.mxu0 0.0
    %v3529 = vand.u32 %v3288, 4294901760
    %3530 = vmatmul.mubr.f32.gmra.mxu0 %v3529
    %v3531 = vpop.f32.mrf.mxu0
    %v3532 = vadd.f32 %v3381, %v3531
    %v3533 = vpop.f32.mrf.mxu0
    %3534 = vdwg.mxu0
    %3535 = vmatprep.subr.mxu0 0.0
    %v3536 = vand.u32 %v68, 4294901760
    %v3537 = vsub.f32 %v68, %v3536
    %3538 = vmatpush1.xpose.msra.mxu0 %v3537
    %3539 = vmatprep.subr.mxu0 0.0
    %v3540 = vand.u32 %v67, 4294901760
    %v3541 = vsub.f32 %v67, %v3540
    %3542 = vmatpush1.xpose.msra.mxu0 %v3541
    %3543 = vmatprep.subr.mxu0 0.0
    %v3544 = vand.u32 %v66, 4294901760
    %v3545 = vsub.f32 %v66, %v3544
    %3546 = vmatpush1.xpose.msra.mxu0 %v3545
    %3547 = vmatprep.subr.mxu0 0.0
    %v3548 = vand.u32 %v65, 4294901760
    %v3549 = vsub.f32 %v65, %v3548
    %3550 = vmatpush1.xpose.msra.mxu0 %v3549
    %3551 = vmatprep.subr.mxu0 0.0
    %v3552 = vand.u32 %v64, 4294901760
    %v3553 = vsub.f32 %v64, %v3552
    %3554 = vmatpush1.xpose.msra.mxu0 %v3553
    %3555 = vmatprep.subr.mxu0 0.0
    %v3556 = vand.u32 %v63, 4294901760
    %v3557 = vsub.f32 %v63, %v3556
    %3558 = vmatpush1.xpose.msra.mxu0 %v3557
    %3559 = vmatprep.subr.mxu0 0.0
    %v3560 = vand.u32 %v62, 4294901760
    %v3561 = vsub.f32 %v62, %v3560
    %3562 = vmatpush1.xpose.msra.mxu0 %v3561
    %3563 = vmatprep.subr.mxu0 0.0
    %v3564 = vand.u32 %v61, 4294901760
    %v3565 = vsub.f32 %v61, %v3564
    %3566 = vmatpush1.xpose.msra.mxu0 %v3565
    %3567 = vmatprep.subr.mxu0 0.0
    %v3568 = vand.u32 %v60, 4294901760
    %v3569 = vsub.f32 %v60, %v3568
    %3570 = vmatpush1.xpose.msra.mxu0 %v3569
    %3571 = vmatprep.subr.mxu0 0.0
    %v3572 = vand.u32 %v59, 4294901760
    %v3573 = vsub.f32 %v59, %v3572
    %3574 = vmatpush1.xpose.msra.mxu0 %v3573
    %3575 = vmatprep.subr.mxu0 0.0
    %v3576 = vand.u32 %v58, 4294901760
    %v3577 = vsub.f32 %v58, %v3576
    %3578 = vmatpush1.xpose.msra.mxu0 %v3577
    %3579 = vmatprep.subr.mxu0 0.0
    %v3580 = vand.u32 %v57, 4294901760
    %v3581 = vsub.f32 %v57, %v3580
    %3582 = vmatpush1.xpose.msra.mxu0 %v3581
    %3583 = vmatprep.subr.mxu0 0.0
    %v3584 = vand.u32 %v56, 4294901760
    %v3585 = vsub.f32 %v56, %v3584
    %3586 = vmatpush1.xpose.msra.mxu0 %v3585
    %3587 = vmatprep.subr.mxu0 0.0
    %v3588 = vand.u32 %v55, 4294901760
    %v3589 = vsub.f32 %v55, %v3588
    %3590 = vmatpush1.xpose.msra.mxu0 %v3589
    %3591 = vmatprep.subr.mxu0 0.0
    %v3592 = vand.u32 %v54, 4294901760
    %v3593 = vsub.f32 %v54, %v3592
    %3594 = vmatpush1.xpose.msra.mxu0 %v3593
    %3595 = vmatprep.subr.mxu0 0.0
    %v3596 = vand.u32 %v53, 4294901760
    %v3597 = vsub.f32 %v53, %v3596
    %3598 = vmatpush1.xpose.msra.mxu0 %v3597
    %3599 = vmatprep.subr.mxu0 0.0
    %3600 = vmatpush2.xpose.msra.mxu0 0.0
    %3601 = vmatprep.subr.mxu0 0.0
    %3602 = vmatpush2.xpose.msra.mxu0 0.0
    %3603 = vmatprep.subr.mxu0 0.0
    %3604 = vmatpush2.xpose.msra.mxu0 0.0
    %3605 = vmatprep.subr.mxu0 0.0
    %3606 = vmatpush2.xpose.msra.mxu0 0.0
    %3607 = vmatprep.subr.mxu0 0.0
    %3608 = vmatpush2.xpose.msra.mxu0 0.0
    %3609 = vmatprep.subr.mxu0 0.0
    %3610 = vmatpush2.xpose.msra.mxu0 0.0
    %3611 = vmatprep.subr.mxu0 0.0
    %3612 = vmatpush2.xpose.msra.mxu0 0.0
    %3613 = vmatprep.subr.mxu0 0.0
    %3614 = vmatpush2.xpose.msra.mxu0 0.0
    %3615 = vmatprep.subr.mxu0 0.0
    %3616 = vmatpush2.xpose.msra.mxu0 0.0
    %3617 = vmatprep.subr.mxu0 0.0
    %3618 = vmatpush2.xpose.msra.mxu0 0.0
    %3619 = vmatprep.subr.mxu0 0.0
    %3620 = vmatpush2.xpose.msra.mxu0 0.0
    %3621 = vmatprep.subr.mxu0 0.0
    %3622 = vmatpush2.xpose.msra.mxu0 0.0
    %3623 = vmatprep.subr.mxu0 0.0
    %3624 = vmatpush2.xpose.msra.mxu0 0.0
    %3625 = vmatprep.subr.mxu0 0.0
    %3626 = vmatpush2.xpose.msra.mxu0 0.0
    %3627 = vmatprep.subr.mxu0 0.0
    %3628 = vmatpush2.xpose.msra.mxu0 0.0
    %3629 = vmatprep.subr.mxu0 0.0
    %3630 = vmatpush2.xpose.msra.mxu0 0.0
    %3631 = vmatprep.mubr.f32.mxu0 0.0
    %v3632 = vand.u32 %v3288, 4294901760
    %v3633 = vsub.f32 %v3288, %v3632
    %3634 = vmatmul.mubr.f32.gmra.mxu0 %v3633
    %v3635 = vpop.f32.mrf.mxu0
    %v3636 = vadd.f32 %v3532, %v3635
    %v3637 = vpop.f32.mrf.mxu0
    %3638 = vdwg.mxu0
    %3639 = vmatprep.subr.mxu0 0.0
    %v3640 = vand.u32 %v68, 4294901760
    %3641 = vmatpush1.xpose.msra.mxu0 %v3640
    %3642 = vmatprep.subr.mxu0 0.0
    %v3643 = vand.u32 %v67, 4294901760
    %3644 = vmatpush1.xpose.msra.mxu0 %v3643
    %3645 = vmatprep.subr.mxu0 0.0
    %v3646 = vand.u32 %v66, 4294901760
    %3647 = vmatpush1.xpose.msra.mxu0 %v3646
    %3648 = vmatprep.subr.mxu0 0.0
    %v3649 = vand.u32 %v65, 4294901760
    %3650 = vmatpush1.xpose.msra.mxu0 %v3649
    %3651 = vmatprep.subr.mxu0 0.0
    %v3652 = vand.u32 %v64, 4294901760
    %3653 = vmatpush1.xpose.msra.mxu0 %v3652
    %3654 = vmatprep.subr.mxu0 0.0
    %v3655 = vand.u32 %v63, 4294901760
    %3656 = vmatpush1.xpose.msra.mxu0 %v3655
    %3657 = vmatprep.subr.mxu0 0.0
    %v3658 = vand.u32 %v62, 4294901760
    %3659 = vmatpush1.xpose.msra.mxu0 %v3658
    %3660 = vmatprep.subr.mxu0 0.0
    %v3661 = vand.u32 %v61, 4294901760
    %3662 = vmatpush1.xpose.msra.mxu0 %v3661
    %3663 = vmatprep.subr.mxu0 0.0
    %v3664 = vand.u32 %v60, 4294901760
    %3665 = vmatpush1.xpose.msra.mxu0 %v3664
    %3666 = vmatprep.subr.mxu0 0.0
    %v3667 = vand.u32 %v59, 4294901760
    %3668 = vmatpush1.xpose.msra.mxu0 %v3667
    %3669 = vmatprep.subr.mxu0 0.0
    %v3670 = vand.u32 %v58, 4294901760
    %3671 = vmatpush1.xpose.msra.mxu0 %v3670
    %3672 = vmatprep.subr.mxu0 0.0
    %v3673 = vand.u32 %v57, 4294901760
    %3674 = vmatpush1.xpose.msra.mxu0 %v3673
    %3675 = vmatprep.subr.mxu0 0.0
    %v3676 = vand.u32 %v56, 4294901760
    %3677 = vmatpush1.xpose.msra.mxu0 %v3676
    %3678 = vmatprep.subr.mxu0 0.0
    %v3679 = vand.u32 %v55, 4294901760
    %3680 = vmatpush1.xpose.msra.mxu0 %v3679
    %3681 = vmatprep.subr.mxu0 0.0
    %v3682 = vand.u32 %v54, 4294901760
    %3683 = vmatpush1.xpose.msra.mxu0 %v3682
    %3684 = vmatprep.subr.mxu0 0.0
    %v3685 = vand.u32 %v53, 4294901760
    %3686 = vmatpush1.xpose.msra.mxu0 %v3685
    %3687 = vmatprep.subr.mxu0 0.0
    %3688 = vmatpush2.xpose.msra.mxu0 0.0
    %3689 = vmatprep.subr.mxu0 0.0
    %3690 = vmatpush2.xpose.msra.mxu0 0.0
    %3691 = vmatprep.subr.mxu0 0.0
    %3692 = vmatpush2.xpose.msra.mxu0 0.0
    %3693 = vmatprep.subr.mxu0 0.0
    %3694 = vmatpush2.xpose.msra.mxu0 0.0
    %3695 = vmatprep.subr.mxu0 0.0
    %3696 = vmatpush2.xpose.msra.mxu0 0.0
    %3697 = vmatprep.subr.mxu0 0.0
    %3698 = vmatpush2.xpose.msra.mxu0 0.0
    %3699 = vmatprep.subr.mxu0 0.0
    %3700 = vmatpush2.xpose.msra.mxu0 0.0
    %3701 = vmatprep.subr.mxu0 0.0
    %3702 = vmatpush2.xpose.msra.mxu0 0.0
    %3703 = vmatprep.subr.mxu0 0.0
    %3704 = vmatpush2.xpose.msra.mxu0 0.0
    %3705 = vmatprep.subr.mxu0 0.0
    %3706 = vmatpush2.xpose.msra.mxu0 0.0
    %3707 = vmatprep.subr.mxu0 0.0
    %3708 = vmatpush2.xpose.msra.mxu0 0.0
    %3709 = vmatprep.subr.mxu0 0.0
    %3710 = vmatpush2.xpose.msra.mxu0 0.0
    %3711 = vmatprep.subr.mxu0 0.0
    %3712 = vmatpush2.xpose.msra.mxu0 0.0
    %3713 = vmatprep.subr.mxu0 0.0
    %3714 = vmatpush2.xpose.msra.mxu0 0.0
    %3715 = vmatprep.subr.mxu0 0.0
    %3716 = vmatpush2.xpose.msra.mxu0 0.0
    %3717 = vmatprep.subr.mxu0 0.0
    %3718 = vmatpush2.xpose.msra.mxu0 0.0
    %3719 = vmatprep.mubr.f32.mxu0 0.0
    %v3720 = vand.u32 %v3288, 4294901760
    %v3721 = vsub.f32 %v3288, %v3720
    %v3722 = vand.u32 %v3721, 4294901760
    %3723 = vmatmul.mubr.f32.gmra.mxu0 %v3722
    %v3724 = vpop.f32.mrf.mxu0
    %v3725 = vadd.f32 %v3636, %v3724
    %v3726 = vpop.f32.mrf.mxu0
    %3727 = vdwg.mxu0
    %3728 = vmatprep.subr.mxu0 0.0
    %v3729 = vand.u32 %v68, 4294901760
    %v3730 = vsub.f32 %v68, %v3729
    %v3731 = vand.u32 %v3730, 4294901760
    %3732 = vmatpush1.xpose.msra.mxu0 %v3731
    %3733 = vmatprep.subr.mxu0 0.0
    %v3734 = vand.u32 %v67, 4294901760
    %v3735 = vsub.f32 %v67, %v3734
    %v3736 = vand.u32 %v3735, 4294901760
    %3737 = vmatpush1.xpose.msra.mxu0 %v3736
    %3738 = vmatprep.subr.mxu0 0.0
    %v3739 = vand.u32 %v66, 4294901760
    %v3740 = vsub.f32 %v66, %v3739
    %v3741 = vand.u32 %v3740, 4294901760
    %3742 = vmatpush1.xpose.msra.mxu0 %v3741
    %3743 = vmatprep.subr.mxu0 0.0
    %v3744 = vand.u32 %v65, 4294901760
    %v3745 = vsub.f32 %v65, %v3744
    %v3746 = vand.u32 %v3745, 4294901760
    %3747 = vmatpush1.xpose.msra.mxu0 %v3746
    %3748 = vmatprep.subr.mxu0 0.0
    %v3749 = vand.u32 %v64, 4294901760
    %v3750 = vsub.f32 %v64, %v3749
    %v3751 = vand.u32 %v3750, 4294901760
    %3752 = vmatpush1.xpose.msra.mxu0 %v3751
    %3753 = vmatprep.subr.mxu0 0.0
    %v3754 = vand.u32 %v63, 4294901760
    %v3755 = vsub.f32 %v63, %v3754
    %v3756 = vand.u32 %v3755, 4294901760
    %3757 = vmatpush1.xpose.msra.mxu0 %v3756
    %3758 = vmatprep.subr.mxu0 0.0
    %v3759 = vand.u32 %v62, 4294901760
    %v3760 = vsub.f32 %v62, %v3759
    %v3761 = vand.u32 %v3760, 4294901760
    %3762 = vmatpush1.xpose.msra.mxu0 %v3761
    %3763 = vmatprep.subr.mxu0 0.0
    %v3764 = vand.u32 %v61, 4294901760
    %v3765 = vsub.f32 %v61, %v3764
    %v3766 = vand.u32 %v3765, 4294901760
    %3767 = vmatpush1.xpose.msra.mxu0 %v3766
    %3768 = vmatprep.subr.mxu0 0.0
    %v3769 = vand.u32 %v60, 4294901760
    %v3770 = vsub.f32 %v60, %v3769
    %v3771 = vand.u32 %v3770, 4294901760
    %3772 = vmatpush1.xpose.msra.mxu0 %v3771
    %3773 = vmatprep.subr.mxu0 0.0
    %v3774 = vand.u32 %v59, 4294901760
    %v3775 = vsub.f32 %v59, %v3774
    %v3776 = vand.u32 %v3775, 4294901760
    %3777 = vmatpush1.xpose.msra.mxu0 %v3776
    %3778 = vmatprep.subr.mxu0 0.0
    %v3779 = vand.u32 %v58, 4294901760
    %v3780 = vsub.f32 %v58, %v3779
    %v3781 = vand.u32 %v3780, 4294901760
    %3782 = vmatpush1.xpose.msra.mxu0 %v3781
    %3783 = vmatprep.subr.mxu0 0.0
    %v3784 = vand.u32 %v57, 4294901760
    %v3785 = vsub.f32 %v57, %v3784
    %v3786 = vand.u32 %v3785, 4294901760
    %3787 = vmatpush1.xpose.msra.mxu0 %v3786
    %3788 = vmatprep.subr.mxu0 0.0
    %v3789 = vand.u32 %v56, 4294901760
    %v3790 = vsub.f32 %v56, %v3789
    %v3791 = vand.u32 %v3790, 4294901760
    %3792 = vmatpush1.xpose.msra.mxu0 %v3791
    %3793 = vmatprep.subr.mxu0 0.0
    %v3794 = vand.u32 %v55, 4294901760
    %v3795 = vsub.f32 %v55, %v3794
    %v3796 = vand.u32 %v3795, 4294901760
    %3797 = vmatpush1.xpose.msra.mxu0 %v3796
    %3798 = vmatprep.subr.mxu0 0.0
    %v3799 = vand.u32 %v54, 4294901760
    %v3800 = vsub.f32 %v54, %v3799
    %v3801 = vand.u32 %v3800, 4294901760
    %3802 = vmatpush1.xpose.msra.mxu0 %v3801
    %3803 = vmatprep.subr.mxu0 0.0
    %v3804 = vand.u32 %v53, 4294901760
    %v3805 = vsub.f32 %v53, %v3804
    %v3806 = vand.u32 %v3805, 4294901760
    %3807 = vmatpush1.xpose.msra.mxu0 %v3806
    %3808 = vmatprep.subr.mxu0 0.0
    %3809 = vmatpush2.xpose.msra.mxu0 0.0
    %3810 = vmatprep.subr.mxu0 0.0
    %3811 = vmatpush2.xpose.msra.mxu0 0.0
    %3812 = vmatprep.subr.mxu0 0.0
    %3813 = vmatpush2.xpose.msra.mxu0 0.0
    %3814 = vmatprep.subr.mxu0 0.0
    %3815 = vmatpush2.xpose.msra.mxu0 0.0
    %3816 = vmatprep.subr.mxu0 0.0
    %3817 = vmatpush2.xpose.msra.mxu0 0.0
    %3818 = vmatprep.subr.mxu0 0.0
    %3819 = vmatpush2.xpose.msra.mxu0 0.0
    %3820 = vmatprep.subr.mxu0 0.0
    %3821 = vmatpush2.xpose.msra.mxu0 0.0
    %3822 = vmatprep.subr.mxu0 0.0
    %3823 = vmatpush2.xpose.msra.mxu0 0.0
    %3824 = vmatprep.subr.mxu0 0.0
    %3825 = vmatpush2.xpose.msra.mxu0 0.0
    %3826 = vmatprep.subr.mxu0 0.0
    %3827 = vmatpush2.xpose.msra.mxu0 0.0
    %3828 = vmatprep.subr.mxu0 0.0
    %3829 = vmatpush2.xpose.msra.mxu0 0.0
    %3830 = vmatprep.subr.mxu0 0.0
    %3831 = vmatpush2.xpose.msra.mxu0 0.0
    %3832 = vmatprep.subr.mxu0 0.0
    %3833 = vmatpush2.xpose.msra.mxu0 0.0
    %3834 = vmatprep.subr.mxu0 0.0
    %3835 = vmatpush2.xpose.msra.mxu0 0.0
    %3836 = vmatprep.subr.mxu0 0.0
    %3837 = vmatpush2.xpose.msra.mxu0 0.0
    %3838 = vmatprep.subr.mxu0 0.0
    %3839 = vmatpush2.xpose.msra.mxu0 0.0
    %3840 = vmatprep.mubr.f32.mxu0 0.0
    %v3841 = vand.u32 %v3288, 4294901760
    %3842 = vmatmul.mubr.f32.gmra.mxu0 %v3841
    %v3843 = vpop.f32.mrf.mxu0
    %v3844 = vadd.f32 %v3725, %v3843
    %v3845 = vpop.f32.mrf.mxu0
    %3846 = vdwg.mxu0
    %3847 = vmatprep.subr.mxu0 0.0
    %v3848 = vand.u32 %v68, 4294901760
    %3849 = vmatpush1.xpose.msra.mxu0 %v3848
    %3850 = vmatprep.subr.mxu0 0.0
    %v3851 = vand.u32 %v67, 4294901760
    %3852 = vmatpush1.xpose.msra.mxu0 %v3851
    %3853 = vmatprep.subr.mxu0 0.0
    %v3854 = vand.u32 %v66, 4294901760
    %3855 = vmatpush1.xpose.msra.mxu0 %v3854
    %3856 = vmatprep.subr.mxu0 0.0
    %v3857 = vand.u32 %v65, 4294901760
    %3858 = vmatpush1.xpose.msra.mxu0 %v3857
    %3859 = vmatprep.subr.mxu0 0.0
    %v3860 = vand.u32 %v64, 4294901760
    %3861 = vmatpush1.xpose.msra.mxu0 %v3860
    %3862 = vmatprep.subr.mxu0 0.0
    %v3863 = vand.u32 %v63, 4294901760
    %3864 = vmatpush1.xpose.msra.mxu0 %v3863
    %3865 = vmatprep.subr.mxu0 0.0
    %v3866 = vand.u32 %v62, 4294901760
    %3867 = vmatpush1.xpose.msra.mxu0 %v3866
    %3868 = vmatprep.subr.mxu0 0.0
    %v3869 = vand.u32 %v61, 4294901760
    %3870 = vmatpush1.xpose.msra.mxu0 %v3869
    %3871 = vmatprep.subr.mxu0 0.0
    %v3872 = vand.u32 %v60, 4294901760
    %3873 = vmatpush1.xpose.msra.mxu0 %v3872
    %3874 = vmatprep.subr.mxu0 0.0
    %v3875 = vand.u32 %v59, 4294901760
    %3876 = vmatpush1.xpose.msra.mxu0 %v3875
    %3877 = vmatprep.subr.mxu0 0.0
    %v3878 = vand.u32 %v58, 4294901760
    %3879 = vmatpush1.xpose.msra.mxu0 %v3878
    %3880 = vmatprep.subr.mxu0 0.0
    %v3881 = vand.u32 %v57, 4294901760
    %3882 = vmatpush1.xpose.msra.mxu0 %v3881
    %3883 = vmatprep.subr.mxu0 0.0
    %v3884 = vand.u32 %v56, 4294901760
    %3885 = vmatpush1.xpose.msra.mxu0 %v3884
    %3886 = vmatprep.subr.mxu0 0.0
    %v3887 = vand.u32 %v55, 4294901760
    %3888 = vmatpush1.xpose.msra.mxu0 %v3887
    %3889 = vmatprep.subr.mxu0 0.0
    %v3890 = vand.u32 %v54, 4294901760
    %3891 = vmatpush1.xpose.msra.mxu0 %v3890
    %3892 = vmatprep.subr.mxu0 0.0
    %v3893 = vand.u32 %v53, 4294901760
    %3894 = vmatpush1.xpose.msra.mxu0 %v3893
    %3895 = vmatprep.subr.mxu0 0.0
    %3896 = vmatpush2.xpose.msra.mxu0 0.0
    %3897 = vmatprep.subr.mxu0 0.0
    %3898 = vmatpush2.xpose.msra.mxu0 0.0
    %3899 = vmatprep.subr.mxu0 0.0
    %3900 = vmatpush2.xpose.msra.mxu0 0.0
    %3901 = vmatprep.subr.mxu0 0.0
    %3902 = vmatpush2.xpose.msra.mxu0 0.0
    %3903 = vmatprep.subr.mxu0 0.0
    %3904 = vmatpush2.xpose.msra.mxu0 0.0
    %3905 = vmatprep.subr.mxu0 0.0
    %3906 = vmatpush2.xpose.msra.mxu0 0.0
    %3907 = vmatprep.subr.mxu0 0.0
    %3908 = vmatpush2.xpose.msra.mxu0 0.0
    %3909 = vmatprep.subr.mxu0 0.0
    %3910 = vmatpush2.xpose.msra.mxu0 0.0
    %3911 = vmatprep.subr.mxu0 0.0
    %3912 = vmatpush2.xpose.msra.mxu0 0.0
    %3913 = vmatprep.subr.mxu0 0.0
    %3914 = vmatpush2.xpose.msra.mxu0 0.0
    %3915 = vmatprep.subr.mxu0 0.0
    %3916 = vmatpush2.xpose.msra.mxu0 0.0
    %3917 = vmatprep.subr.mxu0 0.0
    %3918 = vmatpush2.xpose.msra.mxu0 0.0
    %3919 = vmatprep.subr.mxu0 0.0
    %3920 = vmatpush2.xpose.msra.mxu0 0.0
    %3921 = vmatprep.subr.mxu0 0.0
    %3922 = vmatpush2.xpose.msra.mxu0 0.0
    %3923 = vmatprep.subr.mxu0 0.0
    %3924 = vmatpush2.xpose.msra.mxu0 0.0
    %3925 = vmatprep.subr.mxu0 0.0
    %3926 = vmatpush2.xpose.msra.mxu0 0.0
    %3927 = vmatprep.mubr.f32.mxu0 0.0
    %v3928 = vand.u32 %v3288, 4294901760
    %3929 = vmatmul.mubr.f32.gmra.mxu0 %v3928
    %v3930 = vpop.f32.mrf.mxu0
    %v3931 = vadd.f32 %v3844, %v3930
    %v3932 = vpop.f32.mrf.mxu0
    %3933 = vdwg.mxu0
    %s3934 = scalar_lea.vmem %s3, 48
    %3935 = vst [vmem:[%s3934] sm:$0xff] %v3931
    %3936 = vmatprep.subr.mxu0 0.0
    %v3937 = vand.u32 %v68, 4294901760
    %3938 = vmatpush1.xpose.msra.mxu0 %v3937
    %3939 = vmatprep.subr.mxu0 0.0
    %v3940 = vand.u32 %v67, 4294901760
    %3941 = vmatpush1.xpose.msra.mxu0 %v3940
    %3942 = vmatprep.subr.mxu0 0.0
    %v3943 = vand.u32 %v66, 4294901760
    %3944 = vmatpush1.xpose.msra.mxu0 %v3943
    %3945 = vmatprep.subr.mxu0 0.0
    %v3946 = vand.u32 %v65, 4294901760
    %3947 = vmatpush1.xpose.msra.mxu0 %v3946
    %3948 = vmatprep.subr.mxu0 0.0
    %v3949 = vand.u32 %v64, 4294901760
    %3950 = vmatpush1.xpose.msra.mxu0 %v3949
    %3951 = vmatprep.subr.mxu0 0.0
    %v3952 = vand.u32 %v63, 4294901760
    %3953 = vmatpush1.xpose.msra.mxu0 %v3952
    %3954 = vmatprep.subr.mxu0 0.0
    %v3955 = vand.u32 %v62, 4294901760
    %3956 = vmatpush1.xpose.msra.mxu0 %v3955
    %3957 = vmatprep.subr.mxu0 0.0
    %v3958 = vand.u32 %v61, 4294901760
    %3959 = vmatpush1.xpose.msra.mxu0 %v3958
    %3960 = vmatprep.subr.mxu0 0.0
    %v3961 = vand.u32 %v60, 4294901760
    %3962 = vmatpush1.xpose.msra.mxu0 %v3961
    %3963 = vmatprep.subr.mxu0 0.0
    %v3964 = vand.u32 %v59, 4294901760
    %3965 = vmatpush1.xpose.msra.mxu0 %v3964
    %3966 = vmatprep.subr.mxu0 0.0
    %v3967 = vand.u32 %v58, 4294901760
    %3968 = vmatpush1.xpose.msra.mxu0 %v3967
    %3969 = vmatprep.subr.mxu0 0.0
    %v3970 = vand.u32 %v57, 4294901760
    %3971 = vmatpush1.xpose.msra.mxu0 %v3970
    %3972 = vmatprep.subr.mxu0 0.0
    %v3973 = vand.u32 %v56, 4294901760
    %3974 = vmatpush1.xpose.msra.mxu0 %v3973
    %3975 = vmatprep.subr.mxu0 0.0
    %v3976 = vand.u32 %v55, 4294901760
    %3977 = vmatpush1.xpose.msra.mxu0 %v3976
    %3978 = vmatprep.subr.mxu0 0.0
    %v3979 = vand.u32 %v54, 4294901760
    %3980 = vmatpush1.xpose.msra.mxu0 %v3979
    %3981 = vmatprep.subr.mxu0 0.0
    %v3982 = vand.u32 %v53, 4294901760
    %3983 = vmatpush1.xpose.msra.mxu0 %v3982
    %3984 = vmatprep.subr.mxu0 0.0
    %3985 = vmatpush2.xpose.msra.mxu0 0.0
    %3986 = vmatprep.subr.mxu0 0.0
    %3987 = vmatpush2.xpose.msra.mxu0 0.0
    %3988 = vmatprep.subr.mxu0 0.0
    %3989 = vmatpush2.xpose.msra.mxu0 0.0
    %3990 = vmatprep.subr.mxu0 0.0
    %3991 = vmatpush2.xpose.msra.mxu0 0.0
    %3992 = vmatprep.subr.mxu0 0.0
    %3993 = vmatpush2.xpose.msra.mxu0 0.0
    %3994 = vmatprep.subr.mxu0 0.0
    %3995 = vmatpush2.xpose.msra.mxu0 0.0
    %3996 = vmatprep.subr.mxu0 0.0
    %3997 = vmatpush2.xpose.msra.mxu0 0.0
    %3998 = vmatprep.subr.mxu0 0.0
    %3999 = vmatpush2.xpose.msra.mxu0 0.0
    %4000 = vmatprep.subr.mxu0 0.0
    %4001 = vmatpush2.xpose.msra.mxu0 0.0
    %4002 = vmatprep.subr.mxu0 0.0
    %4003 = vmatpush2.xpose.msra.mxu0 0.0
    %4004 = vmatprep.subr.mxu0 0.0
    %4005 = vmatpush2.xpose.msra.mxu0 0.0
    %4006 = vmatprep.subr.mxu0 0.0
    %4007 = vmatpush2.xpose.msra.mxu0 0.0
    %4008 = vmatprep.subr.mxu0 0.0
    %4009 = vmatpush2.xpose.msra.mxu0 0.0
    %4010 = vmatprep.subr.mxu0 0.0
    %4011 = vmatpush2.xpose.msra.mxu0 0.0
    %4012 = vmatprep.subr.mxu0 0.0
    %4013 = vmatpush2.xpose.msra.mxu0 0.0
    %4014 = vmatprep.subr.mxu0 0.0
    %4015 = vmatpush2.xpose.msra.mxu0 0.0
    %4016 = vmatprep.mubr.f32.mxu0 0.0
    %v4017 = vand.u32 %v3931, 4294901760
    %v4018 = vsub.f32 %v3931, %v4017
    %v4019 = vand.u32 %v4018, 4294901760
    %v4020 = vsub.f32 %v4018, %v4019
    %v4021 = vand.u32 %v4020, 4294901760
    %4022 = vmatmul.mubr.f32.gmra.mxu0 %v4021
    %v4023 = vpop.f32.mrf.mxu0
    %v4024 = vadd.f32 %v74, %v4023
    %v4025 = vpop.f32.mrf.mxu0
    %4026 = vdwg.mxu0
    %4027 = vmatprep.subr.mxu0 0.0
    %v4028 = vand.u32 %v68, 4294901760
    %v4029 = vsub.f32 %v68, %v4028
    %v4030 = vand.u32 %v4029, 4294901760
    %v4031 = vsub.f32 %v4029, %v4030
    %v4032 = vand.u32 %v4031, 4294901760
    %4033 = vmatpush1.xpose.msra.mxu0 %v4032
    %4034 = vmatprep.subr.mxu0 0.0
    %v4035 = vand.u32 %v67, 4294901760
    %v4036 = vsub.f32 %v67, %v4035
    %v4037 = vand.u32 %v4036, 4294901760
    %v4038 = vsub.f32 %v4036, %v4037
    %v4039 = vand.u32 %v4038, 4294901760
    %4040 = vmatpush1.xpose.msra.mxu0 %v4039
    %4041 = vmatprep.subr.mxu0 0.0
    %v4042 = vand.u32 %v66, 4294901760
    %v4043 = vsub.f32 %v66, %v4042
    %v4044 = vand.u32 %v4043, 4294901760
    %v4045 = vsub.f32 %v4043, %v4044
    %v4046 = vand.u32 %v4045, 4294901760
    %4047 = vmatpush1.xpose.msra.mxu0 %v4046
    %4048 = vmatprep.subr.mxu0 0.0
    %v4049 = vand.u32 %v65, 4294901760
    %v4050 = vsub.f32 %v65, %v4049
    %v4051 = vand.u32 %v4050, 4294901760
    %v4052 = vsub.f32 %v4050, %v4051
    %v4053 = vand.u32 %v4052, 4294901760
    %4054 = vmatpush1.xpose.msra.mxu0 %v4053
    %4055 = vmatprep.subr.mxu0 0.0
    %v4056 = vand.u32 %v64, 4294901760
    %v4057 = vsub.f32 %v64, %v4056
    %v4058 = vand.u32 %v4057, 4294901760
    %v4059 = vsub.f32 %v4057, %v4058
    %v4060 = vand.u32 %v4059, 4294901760
    %4061 = vmatpush1.xpose.msra.mxu0 %v4060
    %4062 = vmatprep.subr.mxu0 0.0
    %v4063 = vand.u32 %v63, 4294901760
    %v4064 = vsub.f32 %v63, %v4063
    %v4065 = vand.u32 %v4064, 4294901760
    %v4066 = vsub.f32 %v4064, %v4065
    %v4067 = vand.u32 %v4066, 4294901760
    %4068 = vmatpush1.xpose.msra.mxu0 %v4067
    %4069 = vmatprep.subr.mxu0 0.0
    %v4070 = vand.u32 %v62, 4294901760
    %v4071 = vsub.f32 %v62, %v4070
    %v4072 = vand.u32 %v4071, 4294901760
    %v4073 = vsub.f32 %v4071, %v4072
    %v4074 = vand.u32 %v4073, 4294901760
    %4075 = vmatpush1.xpose.msra.mxu0 %v4074
    %4076 = vmatprep.subr.mxu0 0.0
    %v4077 = vand.u32 %v61, 4294901760
    %v4078 = vsub.f32 %v61, %v4077
    %v4079 = vand.u32 %v4078, 4294901760
    %v4080 = vsub.f32 %v4078, %v4079
    %v4081 = vand.u32 %v4080, 4294901760
    %4082 = vmatpush1.xpose.msra.mxu0 %v4081
    %4083 = vmatprep.subr.mxu0 0.0
    %v4084 = vand.u32 %v60, 4294901760
    %v4085 = vsub.f32 %v60, %v4084
    %v4086 = vand.u32 %v4085, 4294901760
    %v4087 = vsub.f32 %v4085, %v4086
    %v4088 = vand.u32 %v4087, 4294901760
    %4089 = vmatpush1.xpose.msra.mxu0 %v4088
    %4090 = vmatprep.subr.mxu0 0.0
    %v4091 = vand.u32 %v59, 4294901760
    %v4092 = vsub.f32 %v59, %v4091
    %v4093 = vand.u32 %v4092, 4294901760
    %v4094 = vsub.f32 %v4092, %v4093
    %v4095 = vand.u32 %v4094, 4294901760
    %4096 = vmatpush1.xpose.msra.mxu0 %v4095
    %4097 = vmatprep.subr.mxu0 0.0
    %v4098 = vand.u32 %v58, 4294901760
    %v4099 = vsub.f32 %v58, %v4098
    %v4100 = vand.u32 %v4099, 4294901760
    %v4101 = vsub.f32 %v4099, %v4100
    %v4102 = vand.u32 %v4101, 4294901760
    %4103 = vmatpush1.xpose.msra.mxu0 %v4102
    %4104 = vmatprep.subr.mxu0 0.0
    %v4105 = vand.u32 %v57, 4294901760
    %v4106 = vsub.f32 %v57, %v4105
    %v4107 = vand.u32 %v4106, 4294901760
    %v4108 = vsub.f32 %v4106, %v4107
    %v4109 = vand.u32 %v4108, 4294901760
    %4110 = vmatpush1.xpose.msra.mxu0 %v4109
    %4111 = vmatprep.subr.mxu0 0.0
    %v4112 = vand.u32 %v56, 4294901760
    %v4113 = vsub.f32 %v56, %v4112
    %v4114 = vand.u32 %v4113, 4294901760
    %v4115 = vsub.f32 %v4113, %v4114
    %v4116 = vand.u32 %v4115, 4294901760
    %4117 = vmatpush1.xpose.msra.mxu0 %v4116
    %4118 = vmatprep.subr.mxu0 0.0
    %v4119 = vand.u32 %v55, 4294901760
    %v4120 = vsub.f32 %v55, %v4119
    %v4121 = vand.u32 %v4120, 4294901760
    %v4122 = vsub.f32 %v4120, %v4121
    %v4123 = vand.u32 %v4122, 4294901760
    %4124 = vmatpush1.xpose.msra.mxu0 %v4123
    %4125 = vmatprep.subr.mxu0 0.0
    %v4126 = vand.u32 %v54, 4294901760
    %v4127 = vsub.f32 %v54, %v4126
    %v4128 = vand.u32 %v4127, 4294901760
    %v4129 = vsub.f32 %v4127, %v4128
    %v4130 = vand.u32 %v4129, 4294901760
    %4131 = vmatpush1.xpose.msra.mxu0 %v4130
    %4132 = vmatprep.subr.mxu0 0.0
    %v4133 = vand.u32 %v53, 4294901760
    %v4134 = vsub.f32 %v53, %v4133
    %v4135 = vand.u32 %v4134, 4294901760
    %v4136 = vsub.f32 %v4134, %v4135
    %v4137 = vand.u32 %v4136, 4294901760
    %4138 = vmatpush1.xpose.msra.mxu0 %v4137
    %4139 = vmatprep.subr.mxu0 0.0
    %4140 = vmatpush2.xpose.msra.mxu0 0.0
    %4141 = vmatprep.subr.mxu0 0.0
    %4142 = vmatpush2.xpose.msra.mxu0 0.0
    %4143 = vmatprep.subr.mxu0 0.0
    %4144 = vmatpush2.xpose.msra.mxu0 0.0
    %4145 = vmatprep.subr.mxu0 0.0
    %4146 = vmatpush2.xpose.msra.mxu0 0.0
    %4147 = vmatprep.subr.mxu0 0.0
    %4148 = vmatpush2.xpose.msra.mxu0 0.0
    %4149 = vmatprep.subr.mxu0 0.0
    %4150 = vmatpush2.xpose.msra.mxu0 0.0
    %4151 = vmatprep.subr.mxu0 0.0
    %4152 = vmatpush2.xpose.msra.mxu0 0.0
    %4153 = vmatprep.subr.mxu0 0.0
    %4154 = vmatpush2.xpose.msra.mxu0 0.0
    %4155 = vmatprep.subr.mxu0 0.0
    %4156 = vmatpush2.xpose.msra.mxu0 0.0
    %4157 = vmatprep.subr.mxu0 0.0
    %4158 = vmatpush2.xpose.msra.mxu0 0.0
    %4159 = vmatprep.subr.mxu0 0.0
    %4160 = vmatpush2.xpose.msra.mxu0 0.0
    %4161 = vmatprep.subr.mxu0 0.0
    %4162 = vmatpush2.xpose.msra.mxu0 0.0
    %4163 = vmatprep.subr.mxu0 0.0
    %4164 = vmatpush2.xpose.msra.mxu0 0.0
    %4165 = vmatprep.subr.mxu0 0.0
    %4166 = vmatpush2.xpose.msra.mxu0 0.0
    %4167 = vmatprep.subr.mxu0 0.0
    %4168 = vmatpush2.xpose.msra.mxu0 0.0
    %4169 = vmatprep.subr.mxu0 0.0
    %4170 = vmatpush2.xpose.msra.mxu0 0.0
    %4171 = vmatprep.mubr.f32.mxu0 0.0
    %v4172 = vand.u32 %v3931, 4294901760
    %4173 = vmatmul.mubr.f32.gmra.mxu0 %v4172
    %v4174 = vpop.f32.mrf.mxu0
    %v4175 = vadd.f32 %v4024, %v4174
    %v4176 = vpop.f32.mrf.mxu0
    %4177 = vdwg.mxu0
    %4178 = vmatprep.subr.mxu0 0.0
    %v4179 = vand.u32 %v68, 4294901760
    %v4180 = vsub.f32 %v68, %v4179
    %4181 = vmatpush1.xpose.msra.mxu0 %v4180
    %4182 = vmatprep.subr.mxu0 0.0
    %v4183 = vand.u32 %v67, 4294901760
    %v4184 = vsub.f32 %v67, %v4183
    %4185 = vmatpush1.xpose.msra.mxu0 %v4184
    %4186 = vmatprep.subr.mxu0 0.0
    %v4187 = vand.u32 %v66, 4294901760
    %v4188 = vsub.f32 %v66, %v4187
    %4189 = vmatpush1.xpose.msra.mxu0 %v4188
    %4190 = vmatprep.subr.mxu0 0.0
    %v4191 = vand.u32 %v65, 4294901760
    %v4192 = vsub.f32 %v65, %v4191
    %4193 = vmatpush1.xpose.msra.mxu0 %v4192
    %4194 = vmatprep.subr.mxu0 0.0
    %v4195 = vand.u32 %v64, 4294901760
    %v4196 = vsub.f32 %v64, %v4195
    %4197 = vmatpush1.xpose.msra.mxu0 %v4196
    %4198 = vmatprep.subr.mxu0 0.0
    %v4199 = vand.u32 %v63, 4294901760
    %v4200 = vsub.f32 %v63, %v4199
    %4201 = vmatpush1.xpose.msra.mxu0 %v4200
    %4202 = vmatprep.subr.mxu0 0.0
    %v4203 = vand.u32 %v62, 4294901760
    %v4204 = vsub.f32 %v62, %v4203
    %4205 = vmatpush1.xpose.msra.mxu0 %v4204
    %4206 = vmatprep.subr.mxu0 0.0
    %v4207 = vand.u32 %v61, 4294901760
    %v4208 = vsub.f32 %v61, %v4207
    %4209 = vmatpush1.xpose.msra.mxu0 %v4208
    %4210 = vmatprep.subr.mxu0 0.0
    %v4211 = vand.u32 %v60, 4294901760
    %v4212 = vsub.f32 %v60, %v4211
    %4213 = vmatpush1.xpose.msra.mxu0 %v4212
    %4214 = vmatprep.subr.mxu0 0.0
    %v4215 = vand.u32 %v59, 4294901760
    %v4216 = vsub.f32 %v59, %v4215
    %4217 = vmatpush1.xpose.msra.mxu0 %v4216
    %4218 = vmatprep.subr.mxu0 0.0
    %v4219 = vand.u32 %v58, 4294901760
    %v4220 = vsub.f32 %v58, %v4219
    %4221 = vmatpush1.xpose.msra.mxu0 %v4220
    %4222 = vmatprep.subr.mxu0 0.0
    %v4223 = vand.u32 %v57, 4294901760
    %v4224 = vsub.f32 %v57, %v4223
    %4225 = vmatpush1.xpose.msra.mxu0 %v4224
    %4226 = vmatprep.subr.mxu0 0.0
    %v4227 = vand.u32 %v56, 4294901760
    %v4228 = vsub.f32 %v56, %v4227
    %4229 = vmatpush1.xpose.msra.mxu0 %v4228
    %4230 = vmatprep.subr.mxu0 0.0
    %v4231 = vand.u32 %v55, 4294901760
    %v4232 = vsub.f32 %v55, %v4231
    %4233 = vmatpush1.xpose.msra.mxu0 %v4232
    %4234 = vmatprep.subr.mxu0 0.0
    %v4235 = vand.u32 %v54, 4294901760
    %v4236 = vsub.f32 %v54, %v4235
    %4237 = vmatpush1.xpose.msra.mxu0 %v4236
    %4238 = vmatprep.subr.mxu0 0.0
    %v4239 = vand.u32 %v53, 4294901760
    %v4240 = vsub.f32 %v53, %v4239
    %4241 = vmatpush1.xpose.msra.mxu0 %v4240
    %4242 = vmatprep.subr.mxu0 0.0
    %4243 = vmatpush2.xpose.msra.mxu0 0.0
    %4244 = vmatprep.subr.mxu0 0.0
    %4245 = vmatpush2.xpose.msra.mxu0 0.0
    %4246 = vmatprep.subr.mxu0 0.0
    %4247 = vmatpush2.xpose.msra.mxu0 0.0
    %4248 = vmatprep.subr.mxu0 0.0
    %4249 = vmatpush2.xpose.msra.mxu0 0.0
    %4250 = vmatprep.subr.mxu0 0.0
    %4251 = vmatpush2.xpose.msra.mxu0 0.0
    %4252 = vmatprep.subr.mxu0 0.0
    %4253 = vmatpush2.xpose.msra.mxu0 0.0
    %4254 = vmatprep.subr.mxu0 0.0
    %4255 = vmatpush2.xpose.msra.mxu0 0.0
    %4256 = vmatprep.subr.mxu0 0.0
    %4257 = vmatpush2.xpose.msra.mxu0 0.0
    %4258 = vmatprep.subr.mxu0 0.0
    %4259 = vmatpush2.xpose.msra.mxu0 0.0
    %4260 = vmatprep.subr.mxu0 0.0
    %4261 = vmatpush2.xpose.msra.mxu0 0.0
    %4262 = vmatprep.subr.mxu0 0.0
    %4263 = vmatpush2.xpose.msra.mxu0 0.0
    %4264 = vmatprep.subr.mxu0 0.0
    %4265 = vmatpush2.xpose.msra.mxu0 0.0
    %4266 = vmatprep.subr.mxu0 0.0
    %4267 = vmatpush2.xpose.msra.mxu0 0.0
    %4268 = vmatprep.subr.mxu0 0.0
    %4269 = vmatpush2.xpose.msra.mxu0 0.0
    %4270 = vmatprep.subr.mxu0 0.0
    %4271 = vmatpush2.xpose.msra.mxu0 0.0
    %4272 = vmatprep.subr.mxu0 0.0
    %4273 = vmatpush2.xpose.msra.mxu0 0.0
    %4274 = vmatprep.mubr.f32.mxu0 0.0
    %v4275 = vand.u32 %v3931, 4294901760
    %v4276 = vsub.f32 %v3931, %v4275
    %4277 = vmatmul.mubr.f32.gmra.mxu0 %v4276
    %v4278 = vpop.f32.mrf.mxu0
    %v4279 = vadd.f32 %v4175, %v4278
    %v4280 = vpop.f32.mrf.mxu0
    %4281 = vdwg.mxu0
    %4282 = vmatprep.subr.mxu0 0.0
    %v4283 = vand.u32 %v68, 4294901760
    %4284 = vmatpush1.xpose.msra.mxu0 %v4283
    %4285 = vmatprep.subr.mxu0 0.0
    %v4286 = vand.u32 %v67, 4294901760
    %4287 = vmatpush1.xpose.msra.mxu0 %v4286
    %4288 = vmatprep.subr.mxu0 0.0
    %v4289 = vand.u32 %v66, 4294901760
    %4290 = vmatpush1.xpose.msra.mxu0 %v4289
    %4291 = vmatprep.subr.mxu0 0.0
    %v4292 = vand.u32 %v65, 4294901760
    %4293 = vmatpush1.xpose.msra.mxu0 %v4292
    %4294 = vmatprep.subr.mxu0 0.0
    %v4295 = vand.u32 %v64, 4294901760
    %4296 = vmatpush1.xpose.msra.mxu0 %v4295
    %4297 = vmatprep.subr.mxu0 0.0
    %v4298 = vand.u32 %v63, 4294901760
    %4299 = vmatpush1.xpose.msra.mxu0 %v4298
    %4300 = vmatprep.subr.mxu0 0.0
    %v4301 = vand.u32 %v62, 4294901760
    %4302 = vmatpush1.xpose.msra.mxu0 %v4301
    %4303 = vmatprep.subr.mxu0 0.0
    %v4304 = vand.u32 %v61, 4294901760
    %4305 = vmatpush1.xpose.msra.mxu0 %v4304
    %4306 = vmatprep.subr.mxu0 0.0
    %v4307 = vand.u32 %v60, 4294901760
    %4308 = vmatpush1.xpose.msra.mxu0 %v4307
    %4309 = vmatprep.subr.mxu0 0.0
    %v4310 = vand.u32 %v59, 4294901760
    %4311 = vmatpush1.xpose.msra.mxu0 %v4310
    %4312 = vmatprep.subr.mxu0 0.0
    %v4313 = vand.u32 %v58, 4294901760
    %4314 = vmatpush1.xpose.msra.mxu0 %v4313
    %4315 = vmatprep.subr.mxu0 0.0
    %v4316 = vand.u32 %v57, 4294901760
    %4317 = vmatpush1.xpose.msra.mxu0 %v4316
    %4318 = vmatprep.subr.mxu0 0.0
    %v4319 = vand.u32 %v56, 4294901760
    %4320 = vmatpush1.xpose.msra.mxu0 %v4319
    %4321 = vmatprep.subr.mxu0 0.0
    %v4322 = vand.u32 %v55, 4294901760
    %4323 = vmatpush1.xpose.msra.mxu0 %v4322
    %4324 = vmatprep.subr.mxu0 0.0
    %v4325 = vand.u32 %v54, 4294901760
    %4326 = vmatpush1.xpose.msra.mxu0 %v4325
    %4327 = vmatprep.subr.mxu0 0.0
    %v4328 = vand.u32 %v53, 4294901760
    %4329 = vmatpush1.xpose.msra.mxu0 %v4328
    %4330 = vmatprep.subr.mxu0 0.0
    %4331 = vmatpush2.xpose.msra.mxu0 0.0
    %4332 = vmatprep.subr.mxu0 0.0
    %4333 = vmatpush2.xpose.msra.mxu0 0.0
    %4334 = vmatprep.subr.mxu0 0.0
    %4335 = vmatpush2.xpose.msra.mxu0 0.0
    %4336 = vmatprep.subr.mxu0 0.0
    %4337 = vmatpush2.xpose.msra.mxu0 0.0
    %4338 = vmatprep.subr.mxu0 0.0
    %4339 = vmatpush2.xpose.msra.mxu0 0.0
    %4340 = vmatprep.subr.mxu0 0.0
    %4341 = vmatpush2.xpose.msra.mxu0 0.0
    %4342 = vmatprep.subr.mxu0 0.0
    %4343 = vmatpush2.xpose.msra.mxu0 0.0
    %4344 = vmatprep.subr.mxu0 0.0
    %4345 = vmatpush2.xpose.msra.mxu0 0.0
    %4346 = vmatprep.subr.mxu0 0.0
    %4347 = vmatpush2.xpose.msra.mxu0 0.0
    %4348 = vmatprep.subr.mxu0 0.0
    %4349 = vmatpush2.xpose.msra.mxu0 0.0
    %4350 = vmatprep.subr.mxu0 0.0
    %4351 = vmatpush2.xpose.msra.mxu0 0.0
    %4352 = vmatprep.subr.mxu0 0.0
    %4353 = vmatpush2.xpose.msra.mxu0 0.0
    %4354 = vmatprep.subr.mxu0 0.0
    %4355 = vmatpush2.xpose.msra.mxu0 0.0
    %4356 = vmatprep.subr.mxu0 0.0
    %4357 = vmatpush2.xpose.msra.mxu0 0.0
    %4358 = vmatprep.subr.mxu0 0.0
    %4359 = vmatpush2.xpose.msra.mxu0 0.0
    %4360 = vmatprep.subr.mxu0 0.0
    %4361 = vmatpush2.xpose.msra.mxu0 0.0
    %4362 = vmatprep.mubr.f32.mxu0 0.0
    %v4363 = vand.u32 %v3931, 4294901760
    %v4364 = vsub.f32 %v3931, %v4363
    %v4365 = vand.u32 %v4364, 4294901760
    %4366 = vmatmul.mubr.f32.gmra.mxu0 %v4365
    %v4367 = vpop.f32.mrf.mxu0
    %v4368 = vadd.f32 %v4279, %v4367
    %v4369 = vpop.f32.mrf.mxu0
    %4370 = vdwg.mxu0
    %4371 = vmatprep.subr.mxu0 0.0
    %v4372 = vand.u32 %v68, 4294901760
    %v4373 = vsub.f32 %v68, %v4372
    %v4374 = vand.u32 %v4373, 4294901760
    %4375 = vmatpush1.xpose.msra.mxu0 %v4374
    %4376 = vmatprep.subr.mxu0 0.0
    %v4377 = vand.u32 %v67, 4294901760
    %v4378 = vsub.f32 %v67, %v4377
    %v4379 = vand.u32 %v4378, 4294901760
    %4380 = vmatpush1.xpose.msra.mxu0 %v4379
    %4381 = vmatprep.subr.mxu0 0.0
    %v4382 = vand.u32 %v66, 4294901760
    %v4383 = vsub.f32 %v66, %v4382
    %v4384 = vand.u32 %v4383, 4294901760
    %4385 = vmatpush1.xpose.msra.mxu0 %v4384
    %4386 = vmatprep.subr.mxu0 0.0
    %v4387 = vand.u32 %v65, 4294901760
    %v4388 = vsub.f32 %v65, %v4387
    %v4389 = vand.u32 %v4388, 4294901760
    %4390 = vmatpush1.xpose.msra.mxu0 %v4389
    %4391 = vmatprep.subr.mxu0 0.0
    %v4392 = vand.u32 %v64, 4294901760
    %v4393 = vsub.f32 %v64, %v4392
    %v4394 = vand.u32 %v4393, 4294901760
    %4395 = vmatpush1.xpose.msra.mxu0 %v4394
    %4396 = vmatprep.subr.mxu0 0.0
    %v4397 = vand.u32 %v63, 4294901760
    %v4398 = vsub.f32 %v63, %v4397
    %v4399 = vand.u32 %v4398, 4294901760
    %4400 = vmatpush1.xpose.msra.mxu0 %v4399
    %4401 = vmatprep.subr.mxu0 0.0
    %v4402 = vand.u32 %v62, 4294901760
    %v4403 = vsub.f32 %v62, %v4402
    %v4404 = vand.u32 %v4403, 4294901760
    %4405 = vmatpush1.xpose.msra.mxu0 %v4404
    %4406 = vmatprep.subr.mxu0 0.0
    %v4407 = vand.u32 %v61, 4294901760
    %v4408 = vsub.f32 %v61, %v4407
    %v4409 = vand.u32 %v4408, 4294901760
    %4410 = vmatpush1.xpose.msra.mxu0 %v4409
    %4411 = vmatprep.subr.mxu0 0.0
    %v4412 = vand.u32 %v60, 4294901760
    %v4413 = vsub.f32 %v60, %v4412
    %v4414 = vand.u32 %v4413, 4294901760
    %4415 = vmatpush1.xpose.msra.mxu0 %v4414
    %4416 = vmatprep.subr.mxu0 0.0
    %v4417 = vand.u32 %v59, 4294901760
    %v4418 = vsub.f32 %v59, %v4417
    %v4419 = vand.u32 %v4418, 4294901760
    %4420 = vmatpush1.xpose.msra.mxu0 %v4419
    %4421 = vmatprep.subr.mxu0 0.0
    %v4422 = vand.u32 %v58, 4294901760
    %v4423 = vsub.f32 %v58, %v4422
    %v4424 = vand.u32 %v4423, 4294901760
    %4425 = vmatpush1.xpose.msra.mxu0 %v4424
    %4426 = vmatprep.subr.mxu0 0.0
    %v4427 = vand.u32 %v57, 4294901760
    %v4428 = vsub.f32 %v57, %v4427
    %v4429 = vand.u32 %v4428, 4294901760
    %4430 = vmatpush1.xpose.msra.mxu0 %v4429
    %4431 = vmatprep.subr.mxu0 0.0
    %v4432 = vand.u32 %v56, 4294901760
    %v4433 = vsub.f32 %v56, %v4432
    %v4434 = vand.u32 %v4433, 4294901760
    %4435 = vmatpush1.xpose.msra.mxu0 %v4434
    %4436 = vmatprep.subr.mxu0 0.0
    %v4437 = vand.u32 %v55, 4294901760
    %v4438 = vsub.f32 %v55, %v4437
    %v4439 = vand.u32 %v4438, 4294901760
    %4440 = vmatpush1.xpose.msra.mxu0 %v4439
    %4441 = vmatprep.subr.mxu0 0.0
    %v4442 = vand.u32 %v54, 4294901760
    %v4443 = vsub.f32 %v54, %v4442
    %v4444 = vand.u32 %v4443, 4294901760
    %4445 = vmatpush1.xpose.msra.mxu0 %v4444
    %4446 = vmatprep.subr.mxu0 0.0
    %v4447 = vand.u32 %v53, 4294901760
    %v4448 = vsub.f32 %v53, %v4447
    %v4449 = vand.u32 %v4448, 4294901760
    %4450 = vmatpush1.xpose.msra.mxu0 %v4449
    %4451 = vmatprep.subr.mxu0 0.0
    %4452 = vmatpush2.xpose.msra.mxu0 0.0
    %4453 = vmatprep.subr.mxu0 0.0
    %4454 = vmatpush2.xpose.msra.mxu0 0.0
    %4455 = vmatprep.subr.mxu0 0.0
    %4456 = vmatpush2.xpose.msra.mxu0 0.0
    %4457 = vmatprep.subr.mxu0 0.0
    %4458 = vmatpush2.xpose.msra.mxu0 0.0
    %4459 = vmatprep.subr.mxu0 0.0
    %4460 = vmatpush2.xpose.msra.mxu0 0.0
    %4461 = vmatprep.subr.mxu0 0.0
    %4462 = vmatpush2.xpose.msra.mxu0 0.0
    %4463 = vmatprep.subr.mxu0 0.0
    %4464 = vmatpush2.xpose.msra.mxu0 0.0
    %4465 = vmatprep.subr.mxu0 0.0
    %4466 = vmatpush2.xpose.msra.mxu0 0.0
    %4467 = vmatprep.subr.mxu0 0.0
    %4468 = vmatpush2.xpose.msra.mxu0 0.0
    %4469 = vmatprep.subr.mxu0 0.0
    %4470 = vmatpush2.xpose.msra.mxu0 0.0
    %4471 = vmatprep.subr.mxu0 0.0
    %4472 = vmatpush2.xpose.msra.mxu0 0.0
    %4473 = vmatprep.subr.mxu0 0.0
    %4474 = vmatpush2.xpose.msra.mxu0 0.0
    %4475 = vmatprep.subr.mxu0 0.0
    %4476 = vmatpush2.xpose.msra.mxu0 0.0
    %4477 = vmatprep.subr.mxu0 0.0
    %4478 = vmatpush2.xpose.msra.mxu0 0.0
    %4479 = vmatprep.subr.mxu0 0.0
    %4480 = vmatpush2.xpose.msra.mxu0 0.0
    %4481 = vmatprep.subr.mxu0 0.0
    %4482 = vmatpush2.xpose.msra.mxu0 0.0
    %4483 = vmatprep.mubr.f32.mxu0 0.0
    %v4484 = vand.u32 %v3931, 4294901760
    %4485 = vmatmul.mubr.f32.gmra.mxu0 %v4484
    %v4486 = vpop.f32.mrf.mxu0
    %v4487 = vadd.f32 %v4368, %v4486
    %v4488 = vpop.f32.mrf.mxu0
    %4489 = vdwg.mxu0
    %4490 = vmatprep.subr.mxu0 0.0
    %v4491 = vand.u32 %v68, 4294901760
    %4492 = vmatpush1.xpose.msra.mxu0 %v4491
    %4493 = vmatprep.subr.mxu0 0.0
    %v4494 = vand.u32 %v67, 4294901760
    %4495 = vmatpush1.xpose.msra.mxu0 %v4494
    %4496 = vmatprep.subr.mxu0 0.0
    %v4497 = vand.u32 %v66, 4294901760
    %4498 = vmatpush1.xpose.msra.mxu0 %v4497
    %4499 = vmatprep.subr.mxu0 0.0
    %v4500 = vand.u32 %v65, 4294901760
    %4501 = vmatpush1.xpose.msra.mxu0 %v4500
    %4502 = vmatprep.subr.mxu0 0.0
    %v4503 = vand.u32 %v64, 4294901760
    %4504 = vmatpush1.xpose.msra.mxu0 %v4503
    %4505 = vmatprep.subr.mxu0 0.0
    %v4506 = vand.u32 %v63, 4294901760
    %4507 = vmatpush1.xpose.msra.mxu0 %v4506
    %4508 = vmatprep.subr.mxu0 0.0
    %v4509 = vand.u32 %v62, 4294901760
    %4510 = vmatpush1.xpose.msra.mxu0 %v4509
    %4511 = vmatprep.subr.mxu0 0.0
    %v4512 = vand.u32 %v61, 4294901760
    %4513 = vmatpush1.xpose.msra.mxu0 %v4512
    %4514 = vmatprep.subr.mxu0 0.0
    %v4515 = vand.u32 %v60, 4294901760
    %4516 = vmatpush1.xpose.msra.mxu0 %v4515
    %4517 = vmatprep.subr.mxu0 0.0
    %v4518 = vand.u32 %v59, 4294901760
    %4519 = vmatpush1.xpose.msra.mxu0 %v4518
    %4520 = vmatprep.subr.mxu0 0.0
    %v4521 = vand.u32 %v58, 4294901760
    %4522 = vmatpush1.xpose.msra.mxu0 %v4521
    %4523 = vmatprep.subr.mxu0 0.0
    %v4524 = vand.u32 %v57, 4294901760
    %4525 = vmatpush1.xpose.msra.mxu0 %v4524
    %4526 = vmatprep.subr.mxu0 0.0
    %v4527 = vand.u32 %v56, 4294901760
    %4528 = vmatpush1.xpose.msra.mxu0 %v4527
    %4529 = vmatprep.subr.mxu0 0.0
    %v4530 = vand.u32 %v55, 4294901760
    %4531 = vmatpush1.xpose.msra.mxu0 %v4530
    %4532 = vmatprep.subr.mxu0 0.0
    %v4533 = vand.u32 %v54, 4294901760
    %4534 = vmatpush1.xpose.msra.mxu0 %v4533
    %4535 = vmatprep.subr.mxu0 0.0
    %v4536 = vand.u32 %v53, 4294901760
    %4537 = vmatpush1.xpose.msra.mxu0 %v4536
    %4538 = vmatprep.subr.mxu0 0.0
    %4539 = vmatpush2.xpose.msra.mxu0 0.0
    %4540 = vmatprep.subr.mxu0 0.0
    %4541 = vmatpush2.xpose.msra.mxu0 0.0
    %4542 = vmatprep.subr.mxu0 0.0
    %4543 = vmatpush2.xpose.msra.mxu0 0.0
    %4544 = vmatprep.subr.mxu0 0.0
    %4545 = vmatpush2.xpose.msra.mxu0 0.0
    %4546 = vmatprep.subr.mxu0 0.0
    %4547 = vmatpush2.xpose.msra.mxu0 0.0
    %4548 = vmatprep.subr.mxu0 0.0
    %4549 = vmatpush2.xpose.msra.mxu0 0.0
    %4550 = vmatprep.subr.mxu0 0.0
    %4551 = vmatpush2.xpose.msra.mxu0 0.0
    %4552 = vmatprep.subr.mxu0 0.0
    %4553 = vmatpush2.xpose.msra.mxu0 0.0
    %4554 = vmatprep.subr.mxu0 0.0
    %4555 = vmatpush2.xpose.msra.mxu0 0.0
    %4556 = vmatprep.subr.mxu0 0.0
    %4557 = vmatpush2.xpose.msra.mxu0 0.0
    %4558 = vmatprep.subr.mxu0 0.0
    %4559 = vmatpush2.xpose.msra.mxu0 0.0
    %4560 = vmatprep.subr.mxu0 0.0
    %4561 = vmatpush2.xpose.msra.mxu0 0.0
    %4562 = vmatprep.subr.mxu0 0.0
    %4563 = vmatpush2.xpose.msra.mxu0 0.0
    %4564 = vmatprep.subr.mxu0 0.0
    %4565 = vmatpush2.xpose.msra.mxu0 0.0
    %4566 = vmatprep.subr.mxu0 0.0
    %4567 = vmatpush2.xpose.msra.mxu0 0.0
    %4568 = vmatprep.subr.mxu0 0.0
    %4569 = vmatpush2.xpose.msra.mxu0 0.0
    %4570 = vmatprep.mubr.f32.mxu0 0.0
    %v4571 = vand.u32 %v3931, 4294901760
    %4572 = vmatmul.mubr.f32.gmra.mxu0 %v4571
    %v4573 = vpop.f32.mrf.mxu0
    %v4574 = vadd.f32 %v4487, %v4573
    %v4575 = vpop.f32.mrf.mxu0
    %4576 = vdwg.mxu0
    %s4577 = scalar_lea.vmem %s3, 56
    %4578 = vst [vmem:[%s4577] sm:$0xff] %v4574
    // Predicated region
    $region18: #{state_only_rnn.1} parent=1 // pred_check
      _
    $region19: #{state_only_rnn.1} parent=1 // pred_check_branch
      %4580 = sbr.rel (0) target = $region21
    $region20: #{state_only_rnn.1} parent=1 // pred_region
      _
    $region21: #{state_only_rnn.1} parent=1 // pred_fallthru
      _
    // Predicated region
    $region22: #{state_only_rnn.1} parent=1 // pred_check
      _
    $region23: #{state_only_rnn.1} parent=1 // pred_check_branch
      %4582 = sbr.rel (0) target = $region25
    $region24: #{state_only_rnn.1} parent=1 // pred_region
      _
    $region25: #{state_only_rnn.1} parent=1 // pred_fallthru
      _
    %4583 = vsyncpa [#allocation4], 1

</llo_original>
